<compile_context>
chip_gen: v6e
topology: v6e:2x2x1
jax: 0.10.0
libtpu: 0.0.40
codegen_flags: <defaults>
</compile_context>

<pallas_src>
import math

import jax
import jax.numpy as jnp
from jax import lax
from jax.experimental import pallas as pl
from jax.experimental.pallas import tpu as pltpu

KSIZE = 7
PAD = 3
EPS = 1e-6
_INV_SQRT2 = 1.0 / math.sqrt(2.0)


def convnext_block_kernel(xpad_ref, dww_ref, dwb_ref, lnw_ref, lnb_ref,
                          w1_ref, b1_ref, w2_ref, b2_ref, gamma_ref, o_ref):
    # xpad_ref : (1, H+6, W+6, C) f32   padded NHWC image (resident per batch)
    # dww_ref  : (49, C)          f32   depthwise taps, row = kh*7+kw
    # dwb_ref  : (1, C)           f32   depthwise bias
    # lnw/lnb  : (1, C)           f32   LayerNorm affine
    # w1_ref   : (C, 4C)          bf16  pwconv1 weight
    # b1_ref   : (1, 4C)          f32
    # w2_ref   : (4C, C)          bf16  pwconv2 weight
    # b2_ref   : (1, C)           f32
    # gamma_ref: (1, C)           f32   layer scale
    # o_ref    : (1, TH, W, C)          output row tile
    r = pl.program_id(1)
    TH, W, C = o_ref.shape[1], o_ref.shape[2], o_ref.shape[3]
    row0 = pl.multiple_of(r * TH, TH)

    # --- depthwise 7x7 conv: 49 taps read straight from the VMEM ref ---
    acc = jnp.zeros((TH, W, C), jnp.float32)
    for kh in range(KSIZE):
        for kw in range(KSIZE):
            tap = xpad_ref[0, pl.ds(row0 + kh, TH), kw:kw + W, :]
            acc = acc + tap.astype(jnp.float32) * dww_ref[kh * KSIZE + kw, :]
    acc = acc + dwb_ref[0]

    # --- LayerNorm over channels (channels_last, eps=1e-6) ---
    u = jnp.mean(acc, axis=-1, keepdims=True)
    xc = acc - u
    var = jnp.mean(xc * xc, axis=-1, keepdims=True)
    xn = xc * lax.rsqrt(var + EPS) * lnw_ref[0] + lnb_ref[0]

    # --- pointwise MLP: Linear -> GELU (exact erf, matches nn.GELU()) -> Linear ---
    # bf16 operands + f32 accumulation; the bf16 error is further scaled by gamma (1e-6).
    xf = xn.reshape(TH * W, C).astype(jnp.bfloat16)
    h = jnp.dot(xf, w1_ref[...], preferred_element_type=jnp.float32) + b1_ref[0]
    h = 0.5 * h * (1.0 + lax.erf(h * _INV_SQRT2))
    y = jnp.dot(h.astype(jnp.bfloat16), w2_ref[...],
                preferred_element_type=jnp.float32) + b2_ref[0]

    # --- layer scale + residual (drop_path = Identity since drop_path = 0.0) ---
    y = y * gamma_ref[0]
    res = xpad_ref[0, pl.ds(row0 + PAD, TH), PAD:PAD + W, :]
    o_ref[0] = (res.astype(jnp.float32) + y.reshape(TH, W, C)).astype(o_ref.dtype)


def _row_tile(H):
    # largest divisor of H that is <= 8 (keeps TH*W matmul rows >=128 at real ConvNeXt sizes
    # while bounding the per-step vreg/VMEM footprint).
    for th in range(min(H, 8), 0, -1):
        if H % th == 0:
            return th
    return 1


def convnext_block(x_nchw, params):
    """x_nchw: (B, C, H, W) float32. Returns (B, C, H, W)."""
    dww, dwb, lnw, lnb, w1, b1, w2, b2, gamma = params
    B, C, H, W = x_nchw.shape
    hidden = w1.shape[1]
    Hp, Wp = H + 2 * PAD, W + 2 * PAD
    TH = _row_tile(H)
    nr = H // TH

    x_nhwc = jnp.transpose(x_nchw, (0, 2, 3, 1))
    # Halo handled by one HBM-side pad (the NCHW->NHWC transpose is already a copy and XLA
    # can fuse the pad into it); in-kernel edge masking would remove this pass entirely but
    # adds boundary branches to all 49 taps.
    x_pad = jnp.pad(x_nhwc, ((0, 0), (PAD, PAD), (PAD, PAD), (0, 0)))

    dww49 = dww.reshape(KSIZE * KSIZE, C)        # one sublane row per tap
    w1_bf = w1.astype(jnp.bfloat16)
    w2_bf = w2.astype(jnp.bfloat16)

    out = pl.pallas_call(
        convnext_block_kernel,
        out_shape=jax.ShapeDtypeStruct((B, H, W, C), x_nhwc.dtype),
        grid_spec=pltpu.PrefetchScalarGridSpec(
            num_scalar_prefetch=0,
            grid=(B, nr),
            in_specs=[
                # padded image: block index constant over r -> DMA'd once per batch, resident
                pl.BlockSpec((1, Hp, Wp, C), lambda b, r: (b, 0, 0, 0)),
                pl.BlockSpec((KSIZE * KSIZE, C), lambda b, r: (0, 0)),
                pl.BlockSpec((1, C), lambda b, r: (0, 0)),
                pl.BlockSpec((1, C), lambda b, r: (0, 0)),
                pl.BlockSpec((1, C), lambda b, r: (0, 0)),
                pl.BlockSpec((C, hidden), lambda b, r: (0, 0)),
                pl.BlockSpec((1, hidden), lambda b, r: (0, 0)),
                pl.BlockSpec((hidden, C), lambda b, r: (0, 0)),
                pl.BlockSpec((1, C), lambda b, r: (0, 0)),
                pl.BlockSpec((1, C), lambda b, r: (0, 0)),
            ],
            out_specs=pl.BlockSpec((1, TH, W, C), lambda b, r: (b, r, 0, 0)),
        ),
        compiler_params=pltpu.CompilerParams(
            dimension_semantics=("parallel", "parallel"),
            vmem_limit_bytes=48 * 1024 * 1024,   # explicit, with headroom for v7x's 64 MiB VMEM
        ),
    )(x_pad, dww49, dwb, lnw, lnb, w1_bf, b1, w2_bf, b2, gamma)

    return jnp.transpose(out, (0, 3, 1, 2))  # back to NCHW


def reference_block(x_nchw, params):
    """Pure-JAX f32 reference with the module's math (NHWC internally)."""
    dww, dwb, lnw, lnb, w1, b1, w2, b2, gamma = params
    B, C, H, W = x_nchw.shape
    x = jnp.transpose(x_nchw, (0, 2, 3, 1))
    xpad = jnp.pad(x, ((0, 0), (PAD, PAD), (PAD, PAD), (0, 0)))
    acc = jnp.zeros((B, H, W, C), jnp.float32)
    for kh in range(KSIZE):
        for kw in range(KSIZE):
            acc = acc + xpad[:, kh:kh + H, kw:kw + W, :] * dww[kh, kw, :]
    acc = acc + dwb[0]
    u = jnp.mean(acc, axis=-1, keepdims=True)
    xc = acc - u
    var = jnp.mean(xc * xc, axis=-1, keepdims=True)
    xn = xc * lax.rsqrt(var + EPS) * lnw[0] + lnb[0]
    h = jnp.einsum('bhwc,cd->bhwd', xn, w1) + b1[0]
    h = 0.5 * h * (1.0 + lax.erf(h * _INV_SQRT2))
    y = jnp.einsum('bhwd,dc->bhwc', h, w2) + b2[0]
    y = y * gamma[0]
    return jnp.transpose(x + y, (0, 3, 1, 2))


if __name__ == "__main__":
    key = jax.random.PRNGKey(0)
    B, C, H, W = 2, 32, 16, 16  # dim=32 -> hidden=128
    keys = jax.random.split(key, 7)

    x = jax.random.normal(keys[0], (B, C, H, W), jnp.float32)

    # Deterministic synthetic parameters (shapes follow Block.__init__ with dim=C).
    dww = jax.random.normal(keys[1], (KSIZE, KSIZE, C), jnp.float32) * (1.0 / KSIZE)
    dwb = jax.random.normal(keys[2], (1, C), jnp.float32) * 0.1
    lnw = jnp.ones((1, C), jnp.float32)           # LayerNorm.weight = ones
    lnb = jnp.zeros((1, C), jnp.float32)          # LayerNorm.bias  = zeros
    w1 = jax.random.normal(keys[3], (C, 4 * C), jnp.float32) * (1.0 / math.sqrt(C))
    b1 = jax.random.normal(keys[4], (1, 4 * C), jnp.float32) * 0.1
    w2 = jax.random.normal(keys[5], (4 * C, C), jnp.float32) * (1.0 / math.sqrt(4 * C))
    b2 = jax.random.normal(keys[6], (1, C), jnp.float32) * 0.1
    gamma = jnp.full((1, C), 1e-6, jnp.float32)   # layer_scale_init_value * ones

    params = (dww, dwb, lnw, lnb, w1, b1, w2, b2, gamma)

    out = convnext_block(x, params)
    jax.block_until_ready(out)

    ref = reference_block(x, params)
    assert out.shape == (B, C, H, W)
    err = float(jnp.max(jnp.abs(out - ref)))
    assert jnp.allclose(out, ref, rtol=1e-4, atol=1e-4), err

    print("KERNEL_OK")
</pallas_src>

<mosaic_0001>
module attributes {stable_mosaic.version = 11 : i64} {
  func.func @convnext_block_kernel(%arg0: i32, %arg1: i32, %arg2: memref<1x22x22x32xf32, #tpu.memory_space<vmem>>, %arg3: memref<49x32xf32, #tpu.memory_space<vmem>>, %arg4: memref<1x32xf32, #tpu.memory_space<vmem>>, %arg5: memref<1x32xf32, #tpu.memory_space<vmem>>, %arg6: memref<1x32xf32, #tpu.memory_space<vmem>>, %arg7: memref<32x128xbf16, #tpu.memory_space<vmem>>, %arg8: memref<1x128xf32, #tpu.memory_space<vmem>>, %arg9: memref<128x32xbf16, #tpu.memory_space<vmem>>, %arg10: memref<1x32xf32, #tpu.memory_space<vmem>>, %arg11: memref<1x32xf32, #tpu.memory_space<vmem>>, %arg12: memref<1x8x16x32xf32, #tpu.memory_space<vmem>>) attributes {dimension_semantics = [#tpu.dimension_semantics<parallel>, #tpu.dimension_semantics<parallel>], iteration_bounds = array<i64: 2, 2>, scalar_prefetch = 0 : i64, scratch_operands = 0 : i64, tpu.core_type = #tpu.core_type<tc>, window_params = [{transform_indices = @transform_0, window_bounds = array<i64: 1, 22, 22, 32>}, {pipeline_mode = #tpu.pipeline_mode<synchronous>, transform_indices = @transform_1, window_bounds = array<i64: 49, 32>}, {pipeline_mode = #tpu.pipeline_mode<synchronous>, transform_indices = @transform_2, window_bounds = array<i64: 1, 32>}, {pipeline_mode = #tpu.pipeline_mode<synchronous>, transform_indices = @transform_3, window_bounds = array<i64: 1, 32>}, {pipeline_mode = #tpu.pipeline_mode<synchronous>, transform_indices = @transform_4, window_bounds = array<i64: 1, 32>}, {pipeline_mode = #tpu.pipeline_mode<synchronous>, transform_indices = @transform_5, window_bounds = array<i64: 32, 128>}, {pipeline_mode = #tpu.pipeline_mode<synchronous>, transform_indices = @transform_6, window_bounds = array<i64: 1, 128>}, {pipeline_mode = #tpu.pipeline_mode<synchronous>, transform_indices = @transform_7, window_bounds = array<i64: 128, 32>}, {pipeline_mode = #tpu.pipeline_mode<synchronous>, transform_indices = @transform_8, window_bounds = array<i64: 1, 32>}, {pipeline_mode = #tpu.pipeline_mode<synchronous>, transform_indices = @transform_9, window_bounds = array<i64: 1, 32>}, {transform_indices = @transform_10, window_bounds = array<i64: 1, 8, 16, 32>}]} {
    %c8_i32 = arith.constant 8 : i32
    %0 = arith.muli %arg1, %c8_i32 : i32
    %1 = tpu.assume_multiple %0, 8 : i32
    %cst = arith.constant 0.000000e+00 : f32
    %2 = vector.broadcast %cst : f32 to vector<8x16x32xf32>
    %c0_i32 = arith.constant 0 : i32
    %3 = arith.addi %1, %c0_i32 : i32
    %c0 = arith.constant 0 : index
    %4 = arith.index_cast %3 : i32 to index
    %c0_0 = arith.constant 0 : index
    %c0_1 = arith.constant 0 : index
    %5 = vector.load %arg2[%c0, %4, %c0_0, %c0_1] : memref<1x22x22x32xf32, #tpu.memory_space<vmem>>, vector<1x8x16x32xf32>
    %6 = vector.shape_cast %5 : vector<1x8x16x32xf32> to vector<8x16x32xf32>
    %c0_2 = arith.constant 0 : index
    %c0_3 = arith.constant 0 : index
    %7 = vector.load %arg3[%c0_2, %c0_3] : memref<49x32xf32, #tpu.memory_space<vmem>>, vector<1x32xf32>
    %8 = vector.shape_cast %7 : vector<1x32xf32> to vector<32xf32>
    %9 = vector.shape_cast %8 : vector<32xf32> to vector<1x1x32xf32>
    %10 = vector.broadcast %9 : vector<1x1x32xf32> to vector<8x16x32xf32>
    %11 = arith.mulf %6, %10 : vector<8x16x32xf32>
    %12 = arith.addf %2, %11 : vector<8x16x32xf32>
    %c0_i32_4 = arith.constant 0 : i32
    %13 = arith.addi %1, %c0_i32_4 : i32
    %c0_5 = arith.constant 0 : index
    %14 = arith.index_cast %13 : i32 to index
    %c1 = arith.constant 1 : index
    %c0_6 = arith.constant 0 : index
    %15 = vector.load %arg2[%c0_5, %14, %c1, %c0_6] : memref<1x22x22x32xf32, #tpu.memory_space<vmem>>, vector<1x8x16x32xf32>
    %16 = vector.shape_cast %15 : vector<1x8x16x32xf32> to vector<8x16x32xf32>
    %c1_7 = arith.constant 1 : index
    %c0_8 = arith.constant 0 : index
    %17 = vector.load %arg3[%c1_7, %c0_8] : memref<49x32xf32, #tpu.memory_space<vmem>>, vector<1x32xf32>
    %18 = vector.shape_cast %17 : vector<1x32xf32> to vector<32xf32>
    %19 = vector.shape_cast %18 : vector<32xf32> to vector<1x1x32xf32>
    %20 = vector.broadcast %19 : vector<1x1x32xf32> to vector<8x16x32xf32>
    %21 = arith.mulf %16, %20 : vector<8x16x32xf32>
    %22 = arith.addf %12, %21 : vector<8x16x32xf32>
    %c0_i32_9 = arith.constant 0 : i32
    %23 = arith.addi %1, %c0_i32_9 : i32
    %c0_10 = arith.constant 0 : index
    %24 = arith.index_cast %23 : i32 to index
    %c2 = arith.constant 2 : index
    %c0_11 = arith.constant 0 : index
    %25 = vector.load %arg2[%c0_10, %24, %c2, %c0_11] : memref<1x22x22x32xf32, #tpu.memory_space<vmem>>, vector<1x8x16x32xf32>
    %26 = vector.shape_cast %25 : vector<1x8x16x32xf32> to vector<8x16x32xf32>
    %c2_12 = arith.constant 2 : index
    %c0_13 = arith.constant 0 : index
    %27 = vector.load %arg3[%c2_12, %c0_13] : memref<49x32xf32, #tpu.memory_space<vmem>>, vector<1x32xf32>
    %28 = vector.shape_cast %27 : vector<1x32xf32> to vector<32xf32>
    %29 = vector.shape_cast %28 : vector<32xf32> to vector<1x1x32xf32>
    %30 = vector.broadcast %29 : vector<1x1x32xf32> to vector<8x16x32xf32>
    %31 = arith.mulf %26, %30 : vector<8x16x32xf32>
    %32 = arith.addf %22, %31 : vector<8x16x32xf32>
    %c0_i32_14 = arith.constant 0 : i32
    %33 = arith.addi %1, %c0_i32_14 : i32
    %c0_15 = arith.constant 0 : index
    %34 = arith.index_cast %33 : i32 to index
    %c3 = arith.constant 3 : index
    %c0_16 = arith.constant 0 : index
    %35 = vector.load %arg2[%c0_15, %34, %c3, %c0_16] : memref<1x22x22x32xf32, #tpu.memory_space<vmem>>, vector<1x8x16x32xf32>
    %36 = vector.shape_cast %35 : vector<1x8x16x32xf32> to vector<8x16x32xf32>
    %c3_17 = arith.constant 3 : index
    %c0_18 = arith.constant 0 : index
    %37 = vector.load %arg3[%c3_17, %c0_18] : memref<49x32xf32, #tpu.memory_space<vmem>>, vector<1x32xf32>
    %38 = vector.shape_cast %37 : vector<1x32xf32> to vector<32xf32>
    %39 = vector.shape_cast %38 : vector<32xf32> to vector<1x1x32xf32>
    %40 = vector.broadcast %39 : vector<1x1x32xf32> to vector<8x16x32xf32>
    %41 = arith.mulf %36, %40 : vector<8x16x32xf32>
    %42 = arith.addf %32, %41 : vector<8x16x32xf32>
    %c0_i32_19 = arith.constant 0 : i32
    %43 = arith.addi %1, %c0_i32_19 : i32
    %c0_20 = arith.constant 0 : index
    %44 = arith.index_cast %43 : i32 to index
    %c4 = arith.constant 4 : index
    %c0_21 = arith.constant 0 : index
    %45 = vector.load %arg2[%c0_20, %44, %c4, %c0_21] : memref<1x22x22x32xf32, #tpu.memory_space<vmem>>, vector<1x8x16x32xf32>
    %46 = vector.shape_cast %45 : vector<1x8x16x32xf32> to vector<8x16x32xf32>
    %c4_22 = arith.constant 4 : index
    %c0_23 = arith.constant 0 : index
    %47 = vector.load %arg3[%c4_22, %c0_23] : memref<49x32xf32, #tpu.memory_space<vmem>>, vector<1x32xf32>
    %48 = vector.shape_cast %47 : vector<1x32xf32> to vector<32xf32>
    %49 = vector.shape_cast %48 : vector<32xf32> to vector<1x1x32xf32>
    %50 = vector.broadcast %49 : vector<1x1x32xf32> to vector<8x16x32xf32>
    %51 = arith.mulf %46, %50 : vector<8x16x32xf32>
    %52 = arith.addf %42, %51 : vector<8x16x32xf32>
    %c0_i32_24 = arith.constant 0 : i32
    %53 = arith.addi %1, %c0_i32_24 : i32
    %c0_25 = arith.constant 0 : index
    %54 = arith.index_cast %53 : i32 to index
    %c5 = arith.constant 5 : index
    %c0_26 = arith.constant 0 : index
    %55 = vector.load %arg2[%c0_25, %54, %c5, %c0_26] : memref<1x22x22x32xf32, #tpu.memory_space<vmem>>, vector<1x8x16x32xf32>
    %56 = vector.shape_cast %55 : vector<1x8x16x32xf32> to vector<8x16x32xf32>
    %c5_27 = arith.constant 5 : index
    %c0_28 = arith.constant 0 : index
    %57 = vector.load %arg3[%c5_27, %c0_28] : memref<49x32xf32, #tpu.memory_space<vmem>>, vector<1x32xf32>
    %58 = vector.shape_cast %57 : vector<1x32xf32> to vector<32xf32>
    %59 = vector.shape_cast %58 : vector<32xf32> to vector<1x1x32xf32>
    %60 = vector.broadcast %59 : vector<1x1x32xf32> to vector<8x16x32xf32>
    %61 = arith.mulf %56, %60 : vector<8x16x32xf32>
    %62 = arith.addf %52, %61 : vector<8x16x32xf32>
    %c0_i32_29 = arith.constant 0 : i32
    %63 = arith.addi %1, %c0_i32_29 : i32
    %c0_30 = arith.constant 0 : index
    %64 = arith.index_cast %63 : i32 to index
    %c6 = arith.constant 6 : index
    %c0_31 = arith.constant 0 : index
    %65 = vector.load %arg2[%c0_30, %64, %c6, %c0_31] : memref<1x22x22x32xf32, #tpu.memory_space<vmem>>, vector<1x8x16x32xf32>
    %66 = vector.shape_cast %65 : vector<1x8x16x32xf32> to vector<8x16x32xf32>
    %c6_32 = arith.constant 6 : index
    %c0_33 = arith.constant 0 : index
    %67 = vector.load %arg3[%c6_32, %c0_33] : memref<49x32xf32, #tpu.memory_space<vmem>>, vector<1x32xf32>
    %68 = vector.shape_cast %67 : vector<1x32xf32> to vector<32xf32>
    %69 = vector.shape_cast %68 : vector<32xf32> to vector<1x1x32xf32>
    %70 = vector.broadcast %69 : vector<1x1x32xf32> to vector<8x16x32xf32>
    %71 = arith.mulf %66, %70 : vector<8x16x32xf32>
    %72 = arith.addf %62, %71 : vector<8x16x32xf32>
    %c1_i32 = arith.constant 1 : i32
    %73 = arith.addi %1, %c1_i32 : i32
    %c0_34 = arith.constant 0 : index
    %74 = arith.index_cast %73 : i32 to index
    %c0_35 = arith.constant 0 : index
    %c0_36 = arith.constant 0 : index
    %75 = vector.load %arg2[%c0_34, %74, %c0_35, %c0_36] : memref<1x22x22x32xf32, #tpu.memory_space<vmem>>, vector<1x8x16x32xf32>
    %76 = vector.shape_cast %75 : vector<1x8x16x32xf32> to vector<8x16x32xf32>
    %c7 = arith.constant 7 : index
    %c0_37 = arith.constant 0 : index
    %77 = vector.load %arg3[%c7, %c0_37] : memref<49x32xf32, #tpu.memory_space<vmem>>, vector<1x32xf32>
    %78 = vector.shape_cast %77 : vector<1x32xf32> to vector<32xf32>
    %79 = vector.shape_cast %78 : vector<32xf32> to vector<1x1x32xf32>
    %80 = vector.broadcast %79 : vector<1x1x32xf32> to vector<8x16x32xf32>
    %81 = arith.mulf %76, %80 : vector<8x16x32xf32>
    %82 = arith.addf %72, %81 : vector<8x16x32xf32>
    %c1_i32_38 = arith.constant 1 : i32
    %83 = arith.addi %1, %c1_i32_38 : i32
    %c0_39 = arith.constant 0 : index
    %84 = arith.index_cast %83 : i32 to index
    %c1_40 = arith.constant 1 : index
    %c0_41 = arith.constant 0 : index
    %85 = vector.load %arg2[%c0_39, %84, %c1_40, %c0_41] : memref<1x22x22x32xf32, #tpu.memory_space<vmem>>, vector<1x8x16x32xf32>
    %86 = vector.shape_cast %85 : vector<1x8x16x32xf32> to vector<8x16x32xf32>
    %c8 = arith.constant 8 : index
    %c0_42 = arith.constant 0 : index
    %87 = vector.load %arg3[%c8, %c0_42] : memref<49x32xf32, #tpu.memory_space<vmem>>, vector<1x32xf32>
    %88 = vector.shape_cast %87 : vector<1x32xf32> to vector<32xf32>
    %89 = vector.shape_cast %88 : vector<32xf32> to vector<1x1x32xf32>
    %90 = vector.broadcast %89 : vector<1x1x32xf32> to vector<8x16x32xf32>
    %91 = arith.mulf %86, %90 : vector<8x16x32xf32>
    %92 = arith.addf %82, %91 : vector<8x16x32xf32>
    %c1_i32_43 = arith.constant 1 : i32
    %93 = arith.addi %1, %c1_i32_43 : i32
    %c0_44 = arith.constant 0 : index
    %94 = arith.index_cast %93 : i32 to index
    %c2_45 = arith.constant 2 : index
    %c0_46 = arith.constant 0 : index
    %95 = vector.load %arg2[%c0_44, %94, %c2_45, %c0_46] : memref<1x22x22x32xf32, #tpu.memory_space<vmem>>, vector<1x8x16x32xf32>
    %96 = vector.shape_cast %95 : vector<1x8x16x32xf32> to vector<8x16x32xf32>
    %c9 = arith.constant 9 : index
    %c0_47 = arith.constant 0 : index
    %97 = vector.load %arg3[%c9, %c0_47] : memref<49x32xf32, #tpu.memory_space<vmem>>, vector<1x32xf32>
    %98 = vector.shape_cast %97 : vector<1x32xf32> to vector<32xf32>
    %99 = vector.shape_cast %98 : vector<32xf32> to vector<1x1x32xf32>
    %100 = vector.broadcast %99 : vector<1x1x32xf32> to vector<8x16x32xf32>
    %101 = arith.mulf %96, %100 : vector<8x16x32xf32>
    %102 = arith.addf %92, %101 : vector<8x16x32xf32>
    %c1_i32_48 = arith.constant 1 : i32
    %103 = arith.addi %1, %c1_i32_48 : i32
    %c0_49 = arith.constant 0 : index
    %104 = arith.index_cast %103 : i32 to index
    %c3_50 = arith.constant 3 : index
    %c0_51 = arith.constant 0 : index
    %105 = vector.load %arg2[%c0_49, %104, %c3_50, %c0_51] : memref<1x22x22x32xf32, #tpu.memory_space<vmem>>, vector<1x8x16x32xf32>
    %106 = vector.shape_cast %105 : vector<1x8x16x32xf32> to vector<8x16x32xf32>
    %c10 = arith.constant 10 : index
    %c0_52 = arith.constant 0 : index
    %107 = vector.load %arg3[%c10, %c0_52] : memref<49x32xf32, #tpu.memory_space<vmem>>, vector<1x32xf32>
    %108 = vector.shape_cast %107 : vector<1x32xf32> to vector<32xf32>
    %109 = vector.shape_cast %108 : vector<32xf32> to vector<1x1x32xf32>
    %110 = vector.broadcast %109 : vector<1x1x32xf32> to vector<8x16x32xf32>
    %111 = arith.mulf %106, %110 : vector<8x16x32xf32>
    %112 = arith.addf %102, %111 : vector<8x16x32xf32>
    %c1_i32_53 = arith.constant 1 : i32
    %113 = arith.addi %1, %c1_i32_53 : i32
    %c0_54 = arith.constant 0 : index
    %114 = arith.index_cast %113 : i32 to index
    %c4_55 = arith.constant 4 : index
    %c0_56 = arith.constant 0 : index
    %115 = vector.load %arg2[%c0_54, %114, %c4_55, %c0_56] : memref<1x22x22x32xf32, #tpu.memory_space<vmem>>, vector<1x8x16x32xf32>
    %116 = vector.shape_cast %115 : vector<1x8x16x32xf32> to vector<8x16x32xf32>
    %c11 = arith.constant 11 : index
    %c0_57 = arith.constant 0 : index
    %117 = vector.load %arg3[%c11, %c0_57] : memref<49x32xf32, #tpu.memory_space<vmem>>, vector<1x32xf32>
    %118 = vector.shape_cast %117 : vector<1x32xf32> to vector<32xf32>
    %119 = vector.shape_cast %118 : vector<32xf32> to vector<1x1x32xf32>
    %120 = vector.broadcast %119 : vector<1x1x32xf32> to vector<8x16x32xf32>
    %121 = arith.mulf %116, %120 : vector<8x16x32xf32>
    %122 = arith.addf %112, %121 : vector<8x16x32xf32>
    %c1_i32_58 = arith.constant 1 : i32
    %123 = arith.addi %1, %c1_i32_58 : i32
    %c0_59 = arith.constant 0 : index
    %124 = arith.index_cast %123 : i32 to index
    %c5_60 = arith.constant 5 : index
    %c0_61 = arith.constant 0 : index
    %125 = vector.load %arg2[%c0_59, %124, %c5_60, %c0_61] : memref<1x22x22x32xf32, #tpu.memory_space<vmem>>, vector<1x8x16x32xf32>
    %126 = vector.shape_cast %125 : vector<1x8x16x32xf32> to vector<8x16x32xf32>
    %c12 = arith.constant 12 : index
    %c0_62 = arith.constant 0 : index
    %127 = vector.load %arg3[%c12, %c0_62] : memref<49x32xf32, #tpu.memory_space<vmem>>, vector<1x32xf32>
    %128 = vector.shape_cast %127 : vector<1x32xf32> to vector<32xf32>
    %129 = vector.shape_cast %128 : vector<32xf32> to vector<1x1x32xf32>
    %130 = vector.broadcast %129 : vector<1x1x32xf32> to vector<8x16x32xf32>
    %131 = arith.mulf %126, %130 : vector<8x16x32xf32>
    %132 = arith.addf %122, %131 : vector<8x16x32xf32>
    %c1_i32_63 = arith.constant 1 : i32
    %133 = arith.addi %1, %c1_i32_63 : i32
    %c0_64 = arith.constant 0 : index
    %134 = arith.index_cast %133 : i32 to index
    %c6_65 = arith.constant 6 : index
    %c0_66 = arith.constant 0 : index
    %135 = vector.load %arg2[%c0_64, %134, %c6_65, %c0_66] : memref<1x22x22x32xf32, #tpu.memory_space<vmem>>, vector<1x8x16x32xf32>
    %136 = vector.shape_cast %135 : vector<1x8x16x32xf32> to vector<8x16x32xf32>
    %c13 = arith.constant 13 : index
    %c0_67 = arith.constant 0 : index
    %137 = vector.load %arg3[%c13, %c0_67] : memref<49x32xf32, #tpu.memory_space<vmem>>, vector<1x32xf32>
    %138 = vector.shape_cast %137 : vector<1x32xf32> to vector<32xf32>
    %139 = vector.shape_cast %138 : vector<32xf32> to vector<1x1x32xf32>
    %140 = vector.broadcast %139 : vector<1x1x32xf32> to vector<8x16x32xf32>
    %141 = arith.mulf %136, %140 : vector<8x16x32xf32>
    %142 = arith.addf %132, %141 : vector<8x16x32xf32>
    %c2_i32 = arith.constant 2 : i32
    %143 = arith.addi %1, %c2_i32 : i32
    %c0_68 = arith.constant 0 : index
    %144 = arith.index_cast %143 : i32 to index
    %c0_69 = arith.constant 0 : index
    %c0_70 = arith.constant 0 : index
    %145 = vector.load %arg2[%c0_68, %144, %c0_69, %c0_70] : memref<1x22x22x32xf32, #tpu.memory_space<vmem>>, vector<1x8x16x32xf32>
    %146 = vector.shape_cast %145 : vector<1x8x16x32xf32> to vector<8x16x32xf32>
    %c14 = arith.constant 14 : index
    %c0_71 = arith.constant 0 : index
    %147 = vector.load %arg3[%c14, %c0_71] : memref<49x32xf32, #tpu.memory_space<vmem>>, vector<1x32xf32>
    %148 = vector.shape_cast %147 : vector<1x32xf32> to vector<32xf32>
    %149 = vector.shape_cast %148 : vector<32xf32> to vector<1x1x32xf32>
    %150 = vector.broadcast %149 : vector<1x1x32xf32> to vector<8x16x32xf32>
    %151 = arith.mulf %146, %150 : vector<8x16x32xf32>
    %152 = arith.addf %142, %151 : vector<8x16x32xf32>
    %c2_i32_72 = arith.constant 2 : i32
    %153 = arith.addi %1, %c2_i32_72 : i32
    %c0_73 = arith.constant 0 : index
    %154 = arith.index_cast %153 : i32 to index
    %c1_74 = arith.constant 1 : index
    %c0_75 = arith.constant 0 : index
    %155 = vector.load %arg2[%c0_73, %154, %c1_74, %c0_75] : memref<1x22x22x32xf32, #tpu.memory_space<vmem>>, vector<1x8x16x32xf32>
    %156 = vector.shape_cast %155 : vector<1x8x16x32xf32> to vector<8x16x32xf32>
    %c15 = arith.constant 15 : index
    %c0_76 = arith.constant 0 : index
    %157 = vector.load %arg3[%c15, %c0_76] : memref<49x32xf32, #tpu.memory_space<vmem>>, vector<1x32xf32>
    %158 = vector.shape_cast %157 : vector<1x32xf32> to vector<32xf32>
    %159 = vector.shape_cast %158 : vector<32xf32> to vector<1x1x32xf32>
    %160 = vector.broadcast %159 : vector<1x1x32xf32> to vector<8x16x32xf32>
    %161 = arith.mulf %156, %160 : vector<8x16x32xf32>
    %162 = arith.addf %152, %161 : vector<8x16x32xf32>
    %c2_i32_77 = arith.constant 2 : i32
    %163 = arith.addi %1, %c2_i32_77 : i32
    %c0_78 = arith.constant 0 : index
    %164 = arith.index_cast %163 : i32 to index
    %c2_79 = arith.constant 2 : index
    %c0_80 = arith.constant 0 : index
    %165 = vector.load %arg2[%c0_78, %164, %c2_79, %c0_80] : memref<1x22x22x32xf32, #tpu.memory_space<vmem>>, vector<1x8x16x32xf32>
    %166 = vector.shape_cast %165 : vector<1x8x16x32xf32> to vector<8x16x32xf32>
    %c16 = arith.constant 16 : index
    %c0_81 = arith.constant 0 : index
    %167 = vector.load %arg3[%c16, %c0_81] : memref<49x32xf32, #tpu.memory_space<vmem>>, vector<1x32xf32>
    %168 = vector.shape_cast %167 : vector<1x32xf32> to vector<32xf32>
    %169 = vector.shape_cast %168 : vector<32xf32> to vector<1x1x32xf32>
    %170 = vector.broadcast %169 : vector<1x1x32xf32> to vector<8x16x32xf32>
    %171 = arith.mulf %166, %170 : vector<8x16x32xf32>
    %172 = arith.addf %162, %171 : vector<8x16x32xf32>
    %c2_i32_82 = arith.constant 2 : i32
    %173 = arith.addi %1, %c2_i32_82 : i32
    %c0_83 = arith.constant 0 : index
    %174 = arith.index_cast %173 : i32 to index
    %c3_84 = arith.constant 3 : index
    %c0_85 = arith.constant 0 : index
    %175 = vector.load %arg2[%c0_83, %174, %c3_84, %c0_85] : memref<1x22x22x32xf32, #tpu.memory_space<vmem>>, vector<1x8x16x32xf32>
    %176 = vector.shape_cast %175 : vector<1x8x16x32xf32> to vector<8x16x32xf32>
    %c17 = arith.constant 17 : index
    %c0_86 = arith.constant 0 : index
    %177 = vector.load %arg3[%c17, %c0_86] : memref<49x32xf32, #tpu.memory_space<vmem>>, vector<1x32xf32>
    %178 = vector.shape_cast %177 : vector<1x32xf32> to vector<32xf32>
    %179 = vector.shape_cast %178 : vector<32xf32> to vector<1x1x32xf32>
    %180 = vector.broadcast %179 : vector<1x1x32xf32> to vector<8x16x32xf32>
    %181 = arith.mulf %176, %180 : vector<8x16x32xf32>
    %182 = arith.addf %172, %181 : vector<8x16x32xf32>
    %c2_i32_87 = arith.constant 2 : i32
    %183 = arith.addi %1, %c2_i32_87 : i32
    %c0_88 = arith.constant 0 : index
    %184 = arith.index_cast %183 : i32 to index
    %c4_89 = arith.constant 4 : index
    %c0_90 = arith.constant 0 : index
    %185 = vector.load %arg2[%c0_88, %184, %c4_89, %c0_90] : memref<1x22x22x32xf32, #tpu.memory_space<vmem>>, vector<1x8x16x32xf32>
    %186 = vector.shape_cast %185 : vector<1x8x16x32xf32> to vector<8x16x32xf32>
    %c18 = arith.constant 18 : index
    %c0_91 = arith.constant 0 : index
    %187 = vector.load %arg3[%c18, %c0_91] : memref<49x32xf32, #tpu.memory_space<vmem>>, vector<1x32xf32>
    %188 = vector.shape_cast %187 : vector<1x32xf32> to vector<32xf32>
    %189 = vector.shape_cast %188 : vector<32xf32> to vector<1x1x32xf32>
    %190 = vector.broadcast %189 : vector<1x1x32xf32> to vector<8x16x32xf32>
    %191 = arith.mulf %186, %190 : vector<8x16x32xf32>
    %192 = arith.addf %182, %191 : vector<8x16x32xf32>
    %c2_i32_92 = arith.constant 2 : i32
    %193 = arith.addi %1, %c2_i32_92 : i32
    %c0_93 = arith.constant 0 : index
    %194 = arith.index_cast %193 : i32 to index
    %c5_94 = arith.constant 5 : index
    %c0_95 = arith.constant 0 : index
    %195 = vector.load %arg2[%c0_93, %194, %c5_94, %c0_95] : memref<1x22x22x32xf32, #tpu.memory_space<vmem>>, vector<1x8x16x32xf32>
    %196 = vector.shape_cast %195 : vector<1x8x16x32xf32> to vector<8x16x32xf32>
    %c19 = arith.constant 19 : index
    %c0_96 = arith.constant 0 : index
    %197 = vector.load %arg3[%c19, %c0_96] : memref<49x32xf32, #tpu.memory_space<vmem>>, vector<1x32xf32>
    %198 = vector.shape_cast %197 : vector<1x32xf32> to vector<32xf32>
    %199 = vector.shape_cast %198 : vector<32xf32> to vector<1x1x32xf32>
    %200 = vector.broadcast %199 : vector<1x1x32xf32> to vector<8x16x32xf32>
    %201 = arith.mulf %196, %200 : vector<8x16x32xf32>
    %202 = arith.addf %192, %201 : vector<8x16x32xf32>
    %c2_i32_97 = arith.constant 2 : i32
    %203 = arith.addi %1, %c2_i32_97 : i32
    %c0_98 = arith.constant 0 : index
    %204 = arith.index_cast %203 : i32 to index
    %c6_99 = arith.constant 6 : index
    %c0_100 = arith.constant 0 : index
    %205 = vector.load %arg2[%c0_98, %204, %c6_99, %c0_100] : memref<1x22x22x32xf32, #tpu.memory_space<vmem>>, vector<1x8x16x32xf32>
    %206 = vector.shape_cast %205 : vector<1x8x16x32xf32> to vector<8x16x32xf32>
    %c20 = arith.constant 20 : index
    %c0_101 = arith.constant 0 : index
    %207 = vector.load %arg3[%c20, %c0_101] : memref<49x32xf32, #tpu.memory_space<vmem>>, vector<1x32xf32>
    %208 = vector.shape_cast %207 : vector<1x32xf32> to vector<32xf32>
    %209 = vector.shape_cast %208 : vector<32xf32> to vector<1x1x32xf32>
    %210 = vector.broadcast %209 : vector<1x1x32xf32> to vector<8x16x32xf32>
    %211 = arith.mulf %206, %210 : vector<8x16x32xf32>
    %212 = arith.addf %202, %211 : vector<8x16x32xf32>
    %c3_i32 = arith.constant 3 : i32
    %213 = arith.addi %1, %c3_i32 : i32
    %c0_102 = arith.constant 0 : index
    %214 = arith.index_cast %213 : i32 to index
    %c0_103 = arith.constant 0 : index
    %c0_104 = arith.constant 0 : index
    %215 = vector.load %arg2[%c0_102, %214, %c0_103, %c0_104] : memref<1x22x22x32xf32, #tpu.memory_space<vmem>>, vector<1x8x16x32xf32>
    %216 = vector.shape_cast %215 : vector<1x8x16x32xf32> to vector<8x16x32xf32>
    %c21 = arith.constant 21 : index
    %c0_105 = arith.constant 0 : index
    %217 = vector.load %arg3[%c21, %c0_105] : memref<49x32xf32, #tpu.memory_space<vmem>>, vector<1x32xf32>
    %218 = vector.shape_cast %217 : vector<1x32xf32> to vector<32xf32>
    %219 = vector.shape_cast %218 : vector<32xf32> to vector<1x1x32xf32>
    %220 = vector.broadcast %219 : vector<1x1x32xf32> to vector<8x16x32xf32>
    %221 = arith.mulf %216, %220 : vector<8x16x32xf32>
    %222 = arith.addf %212, %221 : vector<8x16x32xf32>
    %c3_i32_106 = arith.constant 3 : i32
    %223 = arith.addi %1, %c3_i32_106 : i32
    %c0_107 = arith.constant 0 : index
    %224 = arith.index_cast %223 : i32 to index
    %c1_108 = arith.constant 1 : index
    %c0_109 = arith.constant 0 : index
    %225 = vector.load %arg2[%c0_107, %224, %c1_108, %c0_109] : memref<1x22x22x32xf32, #tpu.memory_space<vmem>>, vector<1x8x16x32xf32>
    %226 = vector.shape_cast %225 : vector<1x8x16x32xf32> to vector<8x16x32xf32>
    %c22 = arith.constant 22 : index
    %c0_110 = arith.constant 0 : index
    %227 = vector.load %arg3[%c22, %c0_110] : memref<49x32xf32, #tpu.memory_space<vmem>>, vector<1x32xf32>
    %228 = vector.shape_cast %227 : vector<1x32xf32> to vector<32xf32>
    %229 = vector.shape_cast %228 : vector<32xf32> to vector<1x1x32xf32>
    %230 = vector.broadcast %229 : vector<1x1x32xf32> to vector<8x16x32xf32>
    %231 = arith.mulf %226, %230 : vector<8x16x32xf32>
    %232 = arith.addf %222, %231 : vector<8x16x32xf32>
    %c3_i32_111 = arith.constant 3 : i32
    %233 = arith.addi %1, %c3_i32_111 : i32
    %c0_112 = arith.constant 0 : index
    %234 = arith.index_cast %233 : i32 to index
    %c2_113 = arith.constant 2 : index
    %c0_114 = arith.constant 0 : index
    %235 = vector.load %arg2[%c0_112, %234, %c2_113, %c0_114] : memref<1x22x22x32xf32, #tpu.memory_space<vmem>>, vector<1x8x16x32xf32>
    %236 = vector.shape_cast %235 : vector<1x8x16x32xf32> to vector<8x16x32xf32>
    %c23 = arith.constant 23 : index
    %c0_115 = arith.constant 0 : index
    %237 = vector.load %arg3[%c23, %c0_115] : memref<49x32xf32, #tpu.memory_space<vmem>>, vector<1x32xf32>
    %238 = vector.shape_cast %237 : vector<1x32xf32> to vector<32xf32>
    %239 = vector.shape_cast %238 : vector<32xf32> to vector<1x1x32xf32>
    %240 = vector.broadcast %239 : vector<1x1x32xf32> to vector<8x16x32xf32>
    %241 = arith.mulf %236, %240 : vector<8x16x32xf32>
    %242 = arith.addf %232, %241 : vector<8x16x32xf32>
    %c3_i32_116 = arith.constant 3 : i32
    %243 = arith.addi %1, %c3_i32_116 : i32
    %c0_117 = arith.constant 0 : index
    %244 = arith.index_cast %243 : i32 to index
    %c3_118 = arith.constant 3 : index
    %c0_119 = arith.constant 0 : index
    %245 = vector.load %arg2[%c0_117, %244, %c3_118, %c0_119] : memref<1x22x22x32xf32, #tpu.memory_space<vmem>>, vector<1x8x16x32xf32>
    %246 = vector.shape_cast %245 : vector<1x8x16x32xf32> to vector<8x16x32xf32>
    %c24 = arith.constant 24 : index
    %c0_120 = arith.constant 0 : index
    %247 = vector.load %arg3[%c24, %c0_120] : memref<49x32xf32, #tpu.memory_space<vmem>>, vector<1x32xf32>
    %248 = vector.shape_cast %247 : vector<1x32xf32> to vector<32xf32>
    %249 = vector.shape_cast %248 : vector<32xf32> to vector<1x1x32xf32>
    %250 = vector.broadcast %249 : vector<1x1x32xf32> to vector<8x16x32xf32>
    %251 = arith.mulf %246, %250 : vector<8x16x32xf32>
    %252 = arith.addf %242, %251 : vector<8x16x32xf32>
    %c3_i32_121 = arith.constant 3 : i32
    %253 = arith.addi %1, %c3_i32_121 : i32
    %c0_122 = arith.constant 0 : index
    %254 = arith.index_cast %253 : i32 to index
    %c4_123 = arith.constant 4 : index
    %c0_124 = arith.constant 0 : index
    %255 = vector.load %arg2[%c0_122, %254, %c4_123, %c0_124] : memref<1x22x22x32xf32, #tpu.memory_space<vmem>>, vector<1x8x16x32xf32>
    %256 = vector.shape_cast %255 : vector<1x8x16x32xf32> to vector<8x16x32xf32>
    %c25 = arith.constant 25 : index
    %c0_125 = arith.constant 0 : index
    %257 = vector.load %arg3[%c25, %c0_125] : memref<49x32xf32, #tpu.memory_space<vmem>>, vector<1x32xf32>
    %258 = vector.shape_cast %257 : vector<1x32xf32> to vector<32xf32>
    %259 = vector.shape_cast %258 : vector<32xf32> to vector<1x1x32xf32>
    %260 = vector.broadcast %259 : vector<1x1x32xf32> to vector<8x16x32xf32>
    %261 = arith.mulf %256, %260 : vector<8x16x32xf32>
    %262 = arith.addf %252, %261 : vector<8x16x32xf32>
    %c3_i32_126 = arith.constant 3 : i32
    %263 = arith.addi %1, %c3_i32_126 : i32
    %c0_127 = arith.constant 0 : index
    %264 = arith.index_cast %263 : i32 to index
    %c5_128 = arith.constant 5 : index
    %c0_129 = arith.constant 0 : index
    %265 = vector.load %arg2[%c0_127, %264, %c5_128, %c0_129] : memref<1x22x22x32xf32, #tpu.memory_space<vmem>>, vector<1x8x16x32xf32>
    %266 = vector.shape_cast %265 : vector<1x8x16x32xf32> to vector<8x16x32xf32>
    %c26 = arith.constant 26 : index
    %c0_130 = arith.constant 0 : index
    %267 = vector.load %arg3[%c26, %c0_130] : memref<49x32xf32, #tpu.memory_space<vmem>>, vector<1x32xf32>
    %268 = vector.shape_cast %267 : vector<1x32xf32> to vector<32xf32>
    %269 = vector.shape_cast %268 : vector<32xf32> to vector<1x1x32xf32>
    %270 = vector.broadcast %269 : vector<1x1x32xf32> to vector<8x16x32xf32>
    %271 = arith.mulf %266, %270 : vector<8x16x32xf32>
    %272 = arith.addf %262, %271 : vector<8x16x32xf32>
    %c3_i32_131 = arith.constant 3 : i32
    %273 = arith.addi %1, %c3_i32_131 : i32
    %c0_132 = arith.constant 0 : index
    %274 = arith.index_cast %273 : i32 to index
    %c6_133 = arith.constant 6 : index
    %c0_134 = arith.constant 0 : index
    %275 = vector.load %arg2[%c0_132, %274, %c6_133, %c0_134] : memref<1x22x22x32xf32, #tpu.memory_space<vmem>>, vector<1x8x16x32xf32>
    %276 = vector.shape_cast %275 : vector<1x8x16x32xf32> to vector<8x16x32xf32>
    %c27 = arith.constant 27 : index
    %c0_135 = arith.constant 0 : index
    %277 = vector.load %arg3[%c27, %c0_135] : memref<49x32xf32, #tpu.memory_space<vmem>>, vector<1x32xf32>
    %278 = vector.shape_cast %277 : vector<1x32xf32> to vector<32xf32>
    %279 = vector.shape_cast %278 : vector<32xf32> to vector<1x1x32xf32>
    %280 = vector.broadcast %279 : vector<1x1x32xf32> to vector<8x16x32xf32>
    %281 = arith.mulf %276, %280 : vector<8x16x32xf32>
    %282 = arith.addf %272, %281 : vector<8x16x32xf32>
    %c4_i32 = arith.constant 4 : i32
    %283 = arith.addi %1, %c4_i32 : i32
    %c0_136 = arith.constant 0 : index
    %284 = arith.index_cast %283 : i32 to index
    %c0_137 = arith.constant 0 : index
    %c0_138 = arith.constant 0 : index
    %285 = vector.load %arg2[%c0_136, %284, %c0_137, %c0_138] : memref<1x22x22x32xf32, #tpu.memory_space<vmem>>, vector<1x8x16x32xf32>
    %286 = vector.shape_cast %285 : vector<1x8x16x32xf32> to vector<8x16x32xf32>
    %c28 = arith.constant 28 : index
    %c0_139 = arith.constant 0 : index
    %287 = vector.load %arg3[%c28, %c0_139] : memref<49x32xf32, #tpu.memory_space<vmem>>, vector<1x32xf32>
    %288 = vector.shape_cast %287 : vector<1x32xf32> to vector<32xf32>
    %289 = vector.shape_cast %288 : vector<32xf32> to vector<1x1x32xf32>
    %290 = vector.broadcast %289 : vector<1x1x32xf32> to vector<8x16x32xf32>
    %291 = arith.mulf %286, %290 : vector<8x16x32xf32>
    %292 = arith.addf %282, %291 : vector<8x16x32xf32>
    %c4_i32_140 = arith.constant 4 : i32
    %293 = arith.addi %1, %c4_i32_140 : i32
    %c0_141 = arith.constant 0 : index
    %294 = arith.index_cast %293 : i32 to index
    %c1_142 = arith.constant 1 : index
    %c0_143 = arith.constant 0 : index
    %295 = vector.load %arg2[%c0_141, %294, %c1_142, %c0_143] : memref<1x22x22x32xf32, #tpu.memory_space<vmem>>, vector<1x8x16x32xf32>
    %296 = vector.shape_cast %295 : vector<1x8x16x32xf32> to vector<8x16x32xf32>
    %c29 = arith.constant 29 : index
    %c0_144 = arith.constant 0 : index
    %297 = vector.load %arg3[%c29, %c0_144] : memref<49x32xf32, #tpu.memory_space<vmem>>, vector<1x32xf32>
    %298 = vector.shape_cast %297 : vector<1x32xf32> to vector<32xf32>
    %299 = vector.shape_cast %298 : vector<32xf32> to vector<1x1x32xf32>
    %300 = vector.broadcast %299 : vector<1x1x32xf32> to vector<8x16x32xf32>
    %301 = arith.mulf %296, %300 : vector<8x16x32xf32>
    %302 = arith.addf %292, %301 : vector<8x16x32xf32>
    %c4_i32_145 = arith.constant 4 : i32
    %303 = arith.addi %1, %c4_i32_145 : i32
    %c0_146 = arith.constant 0 : index
    %304 = arith.index_cast %303 : i32 to index
    %c2_147 = arith.constant 2 : index
    %c0_148 = arith.constant 0 : index
    %305 = vector.load %arg2[%c0_146, %304, %c2_147, %c0_148] : memref<1x22x22x32xf32, #tpu.memory_space<vmem>>, vector<1x8x16x32xf32>
    %306 = vector.shape_cast %305 : vector<1x8x16x32xf32> to vector<8x16x32xf32>
    %c30 = arith.constant 30 : index
    %c0_149 = arith.constant 0 : index
    %307 = vector.load %arg3[%c30, %c0_149] : memref<49x32xf32, #tpu.memory_space<vmem>>, vector<1x32xf32>
    %308 = vector.shape_cast %307 : vector<1x32xf32> to vector<32xf32>
    %309 = vector.shape_cast %308 : vector<32xf32> to vector<1x1x32xf32>
    %310 = vector.broadcast %309 : vector<1x1x32xf32> to vector<8x16x32xf32>
    %311 = arith.mulf %306, %310 : vector<8x16x32xf32>
    %312 = arith.addf %302, %311 : vector<8x16x32xf32>
    %c4_i32_150 = arith.constant 4 : i32
    %313 = arith.addi %1, %c4_i32_150 : i32
    %c0_151 = arith.constant 0 : index
    %314 = arith.index_cast %313 : i32 to index
    %c3_152 = arith.constant 3 : index
    %c0_153 = arith.constant 0 : index
    %315 = vector.load %arg2[%c0_151, %314, %c3_152, %c0_153] : memref<1x22x22x32xf32, #tpu.memory_space<vmem>>, vector<1x8x16x32xf32>
    %316 = vector.shape_cast %315 : vector<1x8x16x32xf32> to vector<8x16x32xf32>
    %c31 = arith.constant 31 : index
    %c0_154 = arith.constant 0 : index
    %317 = vector.load %arg3[%c31, %c0_154] : memref<49x32xf32, #tpu.memory_space<vmem>>, vector<1x32xf32>
    %318 = vector.shape_cast %317 : vector<1x32xf32> to vector<32xf32>
    %319 = vector.shape_cast %318 : vector<32xf32> to vector<1x1x32xf32>
    %320 = vector.broadcast %319 : vector<1x1x32xf32> to vector<8x16x32xf32>
    %321 = arith.mulf %316, %320 : vector<8x16x32xf32>
    %322 = arith.addf %312, %321 : vector<8x16x32xf32>
    %c4_i32_155 = arith.constant 4 : i32
    %323 = arith.addi %1, %c4_i32_155 : i32
    %c0_156 = arith.constant 0 : index
    %324 = arith.index_cast %323 : i32 to index
    %c4_157 = arith.constant 4 : index
    %c0_158 = arith.constant 0 : index
    %325 = vector.load %arg2[%c0_156, %324, %c4_157, %c0_158] : memref<1x22x22x32xf32, #tpu.memory_space<vmem>>, vector<1x8x16x32xf32>
    %326 = vector.shape_cast %325 : vector<1x8x16x32xf32> to vector<8x16x32xf32>
    %c32 = arith.constant 32 : index
    %c0_159 = arith.constant 0 : index
    %327 = vector.load %arg3[%c32, %c0_159] : memref<49x32xf32, #tpu.memory_space<vmem>>, vector<1x32xf32>
    %328 = vector.shape_cast %327 : vector<1x32xf32> to vector<32xf32>
    %329 = vector.shape_cast %328 : vector<32xf32> to vector<1x1x32xf32>
    %330 = vector.broadcast %329 : vector<1x1x32xf32> to vector<8x16x32xf32>
    %331 = arith.mulf %326, %330 : vector<8x16x32xf32>
    %332 = arith.addf %322, %331 : vector<8x16x32xf32>
    %c4_i32_160 = arith.constant 4 : i32
    %333 = arith.addi %1, %c4_i32_160 : i32
    %c0_161 = arith.constant 0 : index
    %334 = arith.index_cast %333 : i32 to index
    %c5_162 = arith.constant 5 : index
    %c0_163 = arith.constant 0 : index
    %335 = vector.load %arg2[%c0_161, %334, %c5_162, %c0_163] : memref<1x22x22x32xf32, #tpu.memory_space<vmem>>, vector<1x8x16x32xf32>
    %336 = vector.shape_cast %335 : vector<1x8x16x32xf32> to vector<8x16x32xf32>
    %c33 = arith.constant 33 : index
    %c0_164 = arith.constant 0 : index
    %337 = vector.load %arg3[%c33, %c0_164] : memref<49x32xf32, #tpu.memory_space<vmem>>, vector<1x32xf32>
    %338 = vector.shape_cast %337 : vector<1x32xf32> to vector<32xf32>
    %339 = vector.shape_cast %338 : vector<32xf32> to vector<1x1x32xf32>
    %340 = vector.broadcast %339 : vector<1x1x32xf32> to vector<8x16x32xf32>
    %341 = arith.mulf %336, %340 : vector<8x16x32xf32>
    %342 = arith.addf %332, %341 : vector<8x16x32xf32>
    %c4_i32_165 = arith.constant 4 : i32
    %343 = arith.addi %1, %c4_i32_165 : i32
    %c0_166 = arith.constant 0 : index
    %344 = arith.index_cast %343 : i32 to index
    %c6_167 = arith.constant 6 : index
    %c0_168 = arith.constant 0 : index
    %345 = vector.load %arg2[%c0_166, %344, %c6_167, %c0_168] : memref<1x22x22x32xf32, #tpu.memory_space<vmem>>, vector<1x8x16x32xf32>
    %346 = vector.shape_cast %345 : vector<1x8x16x32xf32> to vector<8x16x32xf32>
    %c34 = arith.constant 34 : index
    %c0_169 = arith.constant 0 : index
    %347 = vector.load %arg3[%c34, %c0_169] : memref<49x32xf32, #tpu.memory_space<vmem>>, vector<1x32xf32>
    %348 = vector.shape_cast %347 : vector<1x32xf32> to vector<32xf32>
    %349 = vector.shape_cast %348 : vector<32xf32> to vector<1x1x32xf32>
    %350 = vector.broadcast %349 : vector<1x1x32xf32> to vector<8x16x32xf32>
    %351 = arith.mulf %346, %350 : vector<8x16x32xf32>
    %352 = arith.addf %342, %351 : vector<8x16x32xf32>
    %c5_i32 = arith.constant 5 : i32
    %353 = arith.addi %1, %c5_i32 : i32
    %c0_170 = arith.constant 0 : index
    %354 = arith.index_cast %353 : i32 to index
    %c0_171 = arith.constant 0 : index
    %c0_172 = arith.constant 0 : index
    %355 = vector.load %arg2[%c0_170, %354, %c0_171, %c0_172] : memref<1x22x22x32xf32, #tpu.memory_space<vmem>>, vector<1x8x16x32xf32>
    %356 = vector.shape_cast %355 : vector<1x8x16x32xf32> to vector<8x16x32xf32>
    %c35 = arith.constant 35 : index
    %c0_173 = arith.constant 0 : index
    %357 = vector.load %arg3[%c35, %c0_173] : memref<49x32xf32, #tpu.memory_space<vmem>>, vector<1x32xf32>
    %358 = vector.shape_cast %357 : vector<1x32xf32> to vector<32xf32>
    %359 = vector.shape_cast %358 : vector<32xf32> to vector<1x1x32xf32>
    %360 = vector.broadcast %359 : vector<1x1x32xf32> to vector<8x16x32xf32>
    %361 = arith.mulf %356, %360 : vector<8x16x32xf32>
    %362 = arith.addf %352, %361 : vector<8x16x32xf32>
    %c5_i32_174 = arith.constant 5 : i32
    %363 = arith.addi %1, %c5_i32_174 : i32
    %c0_175 = arith.constant 0 : index
    %364 = arith.index_cast %363 : i32 to index
    %c1_176 = arith.constant 1 : index
    %c0_177 = arith.constant 0 : index
    %365 = vector.load %arg2[%c0_175, %364, %c1_176, %c0_177] : memref<1x22x22x32xf32, #tpu.memory_space<vmem>>, vector<1x8x16x32xf32>
    %366 = vector.shape_cast %365 : vector<1x8x16x32xf32> to vector<8x16x32xf32>
    %c36 = arith.constant 36 : index
    %c0_178 = arith.constant 0 : index
    %367 = vector.load %arg3[%c36, %c0_178] : memref<49x32xf32, #tpu.memory_space<vmem>>, vector<1x32xf32>
    %368 = vector.shape_cast %367 : vector<1x32xf32> to vector<32xf32>
    %369 = vector.shape_cast %368 : vector<32xf32> to vector<1x1x32xf32>
    %370 = vector.broadcast %369 : vector<1x1x32xf32> to vector<8x16x32xf32>
    %371 = arith.mulf %366, %370 : vector<8x16x32xf32>
    %372 = arith.addf %362, %371 : vector<8x16x32xf32>
    %c5_i32_179 = arith.constant 5 : i32
    %373 = arith.addi %1, %c5_i32_179 : i32
    %c0_180 = arith.constant 0 : index
    %374 = arith.index_cast %373 : i32 to index
    %c2_181 = arith.constant 2 : index
    %c0_182 = arith.constant 0 : index
    %375 = vector.load %arg2[%c0_180, %374, %c2_181, %c0_182] : memref<1x22x22x32xf32, #tpu.memory_space<vmem>>, vector<1x8x16x32xf32>
    %376 = vector.shape_cast %375 : vector<1x8x16x32xf32> to vector<8x16x32xf32>
    %c37 = arith.constant 37 : index
    %c0_183 = arith.constant 0 : index
    %377 = vector.load %arg3[%c37, %c0_183] : memref<49x32xf32, #tpu.memory_space<vmem>>, vector<1x32xf32>
    %378 = vector.shape_cast %377 : vector<1x32xf32> to vector<32xf32>
    %379 = vector.shape_cast %378 : vector<32xf32> to vector<1x1x32xf32>
    %380 = vector.broadcast %379 : vector<1x1x32xf32> to vector<8x16x32xf32>
    %381 = arith.mulf %376, %380 : vector<8x16x32xf32>
    %382 = arith.addf %372, %381 : vector<8x16x32xf32>
    %c5_i32_184 = arith.constant 5 : i32
    %383 = arith.addi %1, %c5_i32_184 : i32
    %c0_185 = arith.constant 0 : index
    %384 = arith.index_cast %383 : i32 to index
    %c3_186 = arith.constant 3 : index
    %c0_187 = arith.constant 0 : index
    %385 = vector.load %arg2[%c0_185, %384, %c3_186, %c0_187] : memref<1x22x22x32xf32, #tpu.memory_space<vmem>>, vector<1x8x16x32xf32>
    %386 = vector.shape_cast %385 : vector<1x8x16x32xf32> to vector<8x16x32xf32>
    %c38 = arith.constant 38 : index
    %c0_188 = arith.constant 0 : index
    %387 = vector.load %arg3[%c38, %c0_188] : memref<49x32xf32, #tpu.memory_space<vmem>>, vector<1x32xf32>
    %388 = vector.shape_cast %387 : vector<1x32xf32> to vector<32xf32>
    %389 = vector.shape_cast %388 : vector<32xf32> to vector<1x1x32xf32>
    %390 = vector.broadcast %389 : vector<1x1x32xf32> to vector<8x16x32xf32>
    %391 = arith.mulf %386, %390 : vector<8x16x32xf32>
    %392 = arith.addf %382, %391 : vector<8x16x32xf32>
    %c5_i32_189 = arith.constant 5 : i32
    %393 = arith.addi %1, %c5_i32_189 : i32
    %c0_190 = arith.constant 0 : index
    %394 = arith.index_cast %393 : i32 to index
    %c4_191 = arith.constant 4 : index
    %c0_192 = arith.constant 0 : index
    %395 = vector.load %arg2[%c0_190, %394, %c4_191, %c0_192] : memref<1x22x22x32xf32, #tpu.memory_space<vmem>>, vector<1x8x16x32xf32>
    %396 = vector.shape_cast %395 : vector<1x8x16x32xf32> to vector<8x16x32xf32>
    %c39 = arith.constant 39 : index
    %c0_193 = arith.constant 0 : index
    %397 = vector.load %arg3[%c39, %c0_193] : memref<49x32xf32, #tpu.memory_space<vmem>>, vector<1x32xf32>
    %398 = vector.shape_cast %397 : vector<1x32xf32> to vector<32xf32>
    %399 = vector.shape_cast %398 : vector<32xf32> to vector<1x1x32xf32>
    %400 = vector.broadcast %399 : vector<1x1x32xf32> to vector<8x16x32xf32>
    %401 = arith.mulf %396, %400 : vector<8x16x32xf32>
    %402 = arith.addf %392, %401 : vector<8x16x32xf32>
    %c5_i32_194 = arith.constant 5 : i32
    %403 = arith.addi %1, %c5_i32_194 : i32
    %c0_195 = arith.constant 0 : index
    %404 = arith.index_cast %403 : i32 to index
    %c5_196 = arith.constant 5 : index
    %c0_197 = arith.constant 0 : index
    %405 = vector.load %arg2[%c0_195, %404, %c5_196, %c0_197] : memref<1x22x22x32xf32, #tpu.memory_space<vmem>>, vector<1x8x16x32xf32>
    %406 = vector.shape_cast %405 : vector<1x8x16x32xf32> to vector<8x16x32xf32>
    %c40 = arith.constant 40 : index
    %c0_198 = arith.constant 0 : index
    %407 = vector.load %arg3[%c40, %c0_198] : memref<49x32xf32, #tpu.memory_space<vmem>>, vector<1x32xf32>
    %408 = vector.shape_cast %407 : vector<1x32xf32> to vector<32xf32>
    %409 = vector.shape_cast %408 : vector<32xf32> to vector<1x1x32xf32>
    %410 = vector.broadcast %409 : vector<1x1x32xf32> to vector<8x16x32xf32>
    %411 = arith.mulf %406, %410 : vector<8x16x32xf32>
    %412 = arith.addf %402, %411 : vector<8x16x32xf32>
    %c5_i32_199 = arith.constant 5 : i32
    %413 = arith.addi %1, %c5_i32_199 : i32
    %c0_200 = arith.constant 0 : index
    %414 = arith.index_cast %413 : i32 to index
    %c6_201 = arith.constant 6 : index
    %c0_202 = arith.constant 0 : index
    %415 = vector.load %arg2[%c0_200, %414, %c6_201, %c0_202] : memref<1x22x22x32xf32, #tpu.memory_space<vmem>>, vector<1x8x16x32xf32>
    %416 = vector.shape_cast %415 : vector<1x8x16x32xf32> to vector<8x16x32xf32>
    %c41 = arith.constant 41 : index
    %c0_203 = arith.constant 0 : index
    %417 = vector.load %arg3[%c41, %c0_203] : memref<49x32xf32, #tpu.memory_space<vmem>>, vector<1x32xf32>
    %418 = vector.shape_cast %417 : vector<1x32xf32> to vector<32xf32>
    %419 = vector.shape_cast %418 : vector<32xf32> to vector<1x1x32xf32>
    %420 = vector.broadcast %419 : vector<1x1x32xf32> to vector<8x16x32xf32>
    %421 = arith.mulf %416, %420 : vector<8x16x32xf32>
    %422 = arith.addf %412, %421 : vector<8x16x32xf32>
    %c6_i32 = arith.constant 6 : i32
    %423 = arith.addi %1, %c6_i32 : i32
    %c0_204 = arith.constant 0 : index
    %424 = arith.index_cast %423 : i32 to index
    %c0_205 = arith.constant 0 : index
    %c0_206 = arith.constant 0 : index
    %425 = vector.load %arg2[%c0_204, %424, %c0_205, %c0_206] : memref<1x22x22x32xf32, #tpu.memory_space<vmem>>, vector<1x8x16x32xf32>
    %426 = vector.shape_cast %425 : vector<1x8x16x32xf32> to vector<8x16x32xf32>
    %c42 = arith.constant 42 : index
    %c0_207 = arith.constant 0 : index
    %427 = vector.load %arg3[%c42, %c0_207] : memref<49x32xf32, #tpu.memory_space<vmem>>, vector<1x32xf32>
    %428 = vector.shape_cast %427 : vector<1x32xf32> to vector<32xf32>
    %429 = vector.shape_cast %428 : vector<32xf32> to vector<1x1x32xf32>
    %430 = vector.broadcast %429 : vector<1x1x32xf32> to vector<8x16x32xf32>
    %431 = arith.mulf %426, %430 : vector<8x16x32xf32>
    %432 = arith.addf %422, %431 : vector<8x16x32xf32>
    %c6_i32_208 = arith.constant 6 : i32
    %433 = arith.addi %1, %c6_i32_208 : i32
    %c0_209 = arith.constant 0 : index
    %434 = arith.index_cast %433 : i32 to index
    %c1_210 = arith.constant 1 : index
    %c0_211 = arith.constant 0 : index
    %435 = vector.load %arg2[%c0_209, %434, %c1_210, %c0_211] : memref<1x22x22x32xf32, #tpu.memory_space<vmem>>, vector<1x8x16x32xf32>
    %436 = vector.shape_cast %435 : vector<1x8x16x32xf32> to vector<8x16x32xf32>
    %c43 = arith.constant 43 : index
    %c0_212 = arith.constant 0 : index
    %437 = vector.load %arg3[%c43, %c0_212] : memref<49x32xf32, #tpu.memory_space<vmem>>, vector<1x32xf32>
    %438 = vector.shape_cast %437 : vector<1x32xf32> to vector<32xf32>
    %439 = vector.shape_cast %438 : vector<32xf32> to vector<1x1x32xf32>
    %440 = vector.broadcast %439 : vector<1x1x32xf32> to vector<8x16x32xf32>
    %441 = arith.mulf %436, %440 : vector<8x16x32xf32>
    %442 = arith.addf %432, %441 : vector<8x16x32xf32>
    %c6_i32_213 = arith.constant 6 : i32
    %443 = arith.addi %1, %c6_i32_213 : i32
    %c0_214 = arith.constant 0 : index
    %444 = arith.index_cast %443 : i32 to index
    %c2_215 = arith.constant 2 : index
    %c0_216 = arith.constant 0 : index
    %445 = vector.load %arg2[%c0_214, %444, %c2_215, %c0_216] : memref<1x22x22x32xf32, #tpu.memory_space<vmem>>, vector<1x8x16x32xf32>
    %446 = vector.shape_cast %445 : vector<1x8x16x32xf32> to vector<8x16x32xf32>
    %c44 = arith.constant 44 : index
    %c0_217 = arith.constant 0 : index
    %447 = vector.load %arg3[%c44, %c0_217] : memref<49x32xf32, #tpu.memory_space<vmem>>, vector<1x32xf32>
    %448 = vector.shape_cast %447 : vector<1x32xf32> to vector<32xf32>
    %449 = vector.shape_cast %448 : vector<32xf32> to vector<1x1x32xf32>
    %450 = vector.broadcast %449 : vector<1x1x32xf32> to vector<8x16x32xf32>
    %451 = arith.mulf %446, %450 : vector<8x16x32xf32>
    %452 = arith.addf %442, %451 : vector<8x16x32xf32>
    %c6_i32_218 = arith.constant 6 : i32
    %453 = arith.addi %1, %c6_i32_218 : i32
    %c0_219 = arith.constant 0 : index
    %454 = arith.index_cast %453 : i32 to index
    %c3_220 = arith.constant 3 : index
    %c0_221 = arith.constant 0 : index
    %455 = vector.load %arg2[%c0_219, %454, %c3_220, %c0_221] : memref<1x22x22x32xf32, #tpu.memory_space<vmem>>, vector<1x8x16x32xf32>
    %456 = vector.shape_cast %455 : vector<1x8x16x32xf32> to vector<8x16x32xf32>
    %c45 = arith.constant 45 : index
    %c0_222 = arith.constant 0 : index
    %457 = vector.load %arg3[%c45, %c0_222] : memref<49x32xf32, #tpu.memory_space<vmem>>, vector<1x32xf32>
    %458 = vector.shape_cast %457 : vector<1x32xf32> to vector<32xf32>
    %459 = vector.shape_cast %458 : vector<32xf32> to vector<1x1x32xf32>
    %460 = vector.broadcast %459 : vector<1x1x32xf32> to vector<8x16x32xf32>
    %461 = arith.mulf %456, %460 : vector<8x16x32xf32>
    %462 = arith.addf %452, %461 : vector<8x16x32xf32>
    %c6_i32_223 = arith.constant 6 : i32
    %463 = arith.addi %1, %c6_i32_223 : i32
    %c0_224 = arith.constant 0 : index
    %464 = arith.index_cast %463 : i32 to index
    %c4_225 = arith.constant 4 : index
    %c0_226 = arith.constant 0 : index
    %465 = vector.load %arg2[%c0_224, %464, %c4_225, %c0_226] : memref<1x22x22x32xf32, #tpu.memory_space<vmem>>, vector<1x8x16x32xf32>
    %466 = vector.shape_cast %465 : vector<1x8x16x32xf32> to vector<8x16x32xf32>
    %c46 = arith.constant 46 : index
    %c0_227 = arith.constant 0 : index
    %467 = vector.load %arg3[%c46, %c0_227] : memref<49x32xf32, #tpu.memory_space<vmem>>, vector<1x32xf32>
    %468 = vector.shape_cast %467 : vector<1x32xf32> to vector<32xf32>
    %469 = vector.shape_cast %468 : vector<32xf32> to vector<1x1x32xf32>
    %470 = vector.broadcast %469 : vector<1x1x32xf32> to vector<8x16x32xf32>
    %471 = arith.mulf %466, %470 : vector<8x16x32xf32>
    %472 = arith.addf %462, %471 : vector<8x16x32xf32>
    %c6_i32_228 = arith.constant 6 : i32
    %473 = arith.addi %1, %c6_i32_228 : i32
    %c0_229 = arith.constant 0 : index
    %474 = arith.index_cast %473 : i32 to index
    %c5_230 = arith.constant 5 : index
    %c0_231 = arith.constant 0 : index
    %475 = vector.load %arg2[%c0_229, %474, %c5_230, %c0_231] : memref<1x22x22x32xf32, #tpu.memory_space<vmem>>, vector<1x8x16x32xf32>
    %476 = vector.shape_cast %475 : vector<1x8x16x32xf32> to vector<8x16x32xf32>
    %c47 = arith.constant 47 : index
    %c0_232 = arith.constant 0 : index
    %477 = vector.load %arg3[%c47, %c0_232] : memref<49x32xf32, #tpu.memory_space<vmem>>, vector<1x32xf32>
    %478 = vector.shape_cast %477 : vector<1x32xf32> to vector<32xf32>
    %479 = vector.shape_cast %478 : vector<32xf32> to vector<1x1x32xf32>
    %480 = vector.broadcast %479 : vector<1x1x32xf32> to vector<8x16x32xf32>
    %481 = arith.mulf %476, %480 : vector<8x16x32xf32>
    %482 = arith.addf %472, %481 : vector<8x16x32xf32>
    %c6_i32_233 = arith.constant 6 : i32
    %483 = arith.addi %1, %c6_i32_233 : i32
    %c0_234 = arith.constant 0 : index
    %484 = arith.index_cast %483 : i32 to index
    %c6_235 = arith.constant 6 : index
    %c0_236 = arith.constant 0 : index
    %485 = vector.load %arg2[%c0_234, %484, %c6_235, %c0_236] : memref<1x22x22x32xf32, #tpu.memory_space<vmem>>, vector<1x8x16x32xf32>
    %486 = vector.shape_cast %485 : vector<1x8x16x32xf32> to vector<8x16x32xf32>
    %c48 = arith.constant 48 : index
    %c0_237 = arith.constant 0 : index
    %487 = vector.load %arg3[%c48, %c0_237] : memref<49x32xf32, #tpu.memory_space<vmem>>, vector<1x32xf32>
    %488 = vector.shape_cast %487 : vector<1x32xf32> to vector<32xf32>
    %489 = vector.shape_cast %488 : vector<32xf32> to vector<1x1x32xf32>
    %490 = vector.broadcast %489 : vector<1x1x32xf32> to vector<8x16x32xf32>
    %491 = arith.mulf %486, %490 : vector<8x16x32xf32>
    %492 = arith.addf %482, %491 : vector<8x16x32xf32>
    %c0_238 = arith.constant 0 : index
    %c0_239 = arith.constant 0 : index
    %493 = vector.load %arg4[%c0_238, %c0_239] : memref<1x32xf32, #tpu.memory_space<vmem>>, vector<1x32xf32>
    %494 = vector.shape_cast %493 : vector<1x32xf32> to vector<32xf32>
    %495 = vector.shape_cast %494 : vector<32xf32> to vector<1x1x32xf32>
    %496 = vector.broadcast %495 : vector<1x1x32xf32> to vector<8x16x32xf32>
    %497 = arith.addf %492, %496 : vector<8x16x32xf32>
    %cst_240 = arith.constant dense<0.000000e+00> : vector<8x16xf32>
    %498 = vector.multi_reduction <add>, %497, %cst_240 [2] : vector<8x16x32xf32> to vector<8x16xf32>
    %499 = vector.shape_cast %498 : vector<8x16xf32> to vector<8x16x1xf32>
    %cst_241 = arith.constant 3.200000e+01 : f32
    %500 = vector.broadcast %cst_241 : f32 to vector<8x16x1xf32>
    %501 = arith.divf %499, %500 : vector<8x16x1xf32>
    %502 = vector.broadcast %501 : vector<8x16x1xf32> to vector<8x16x32xf32>
    %503 = arith.subf %497, %502 : vector<8x16x32xf32>
    %504 = arith.mulf %503, %503 : vector<8x16x32xf32>
    %cst_242 = arith.constant dense<0.000000e+00> : vector<8x16xf32>
    %505 = vector.multi_reduction <add>, %504, %cst_242 [2] : vector<8x16x32xf32> to vector<8x16xf32>
    %506 = vector.shape_cast %505 : vector<8x16xf32> to vector<8x16x1xf32>
    %cst_243 = arith.constant 3.200000e+01 : f32
    %507 = vector.broadcast %cst_243 : f32 to vector<8x16x1xf32>
    %508 = arith.divf %506, %507 : vector<8x16x1xf32>
    %cst_244 = arith.constant 9.99999997E-7 : f32
    %509 = vector.broadcast %cst_244 : f32 to vector<8x16x1xf32>
    %510 = arith.addf %508, %509 : vector<8x16x1xf32>
    %511 = math.rsqrt %510 : vector<8x16x1xf32>
    %512 = vector.broadcast %511 : vector<8x16x1xf32> to vector<8x16x32xf32>
    %513 = arith.mulf %503, %512 : vector<8x16x32xf32>
    %c0_245 = arith.constant 0 : index
    %c0_246 = arith.constant 0 : index
    %514 = vector.load %arg5[%c0_245, %c0_246] : memref<1x32xf32, #tpu.memory_space<vmem>>, vector<1x32xf32>
    %515 = vector.shape_cast %514 : vector<1x32xf32> to vector<32xf32>
    %516 = vector.shape_cast %515 : vector<32xf32> to vector<1x1x32xf32>
    %517 = vector.broadcast %516 : vector<1x1x32xf32> to vector<8x16x32xf32>
    %518 = arith.mulf %513, %517 : vector<8x16x32xf32>
    %c0_247 = arith.constant 0 : index
    %c0_248 = arith.constant 0 : index
    %519 = vector.load %arg6[%c0_247, %c0_248] : memref<1x32xf32, #tpu.memory_space<vmem>>, vector<1x32xf32>
    %520 = vector.shape_cast %519 : vector<1x32xf32> to vector<32xf32>
    %521 = vector.shape_cast %520 : vector<32xf32> to vector<1x1x32xf32>
    %522 = vector.broadcast %521 : vector<1x1x32xf32> to vector<8x16x32xf32>
    %523 = arith.addf %518, %522 : vector<8x16x32xf32>
    %524 = vector.shape_cast %523 : vector<8x16x32xf32> to vector<128x32xf32>
    %525 = arith.truncf %524 : vector<128x32xf32> to vector<128x32xbf16>
    %c0_249 = arith.constant 0 : index
    %c0_250 = arith.constant 0 : index
    %526 = vector.load %arg7[%c0_249, %c0_250] : memref<32x128xbf16, #tpu.memory_space<vmem>>, vector<32x128xbf16>
    %cst_251 = arith.constant dense<0.000000e+00> : vector<128x128xf32>
    %527 = tpu.matmul %525, %526, %cst_251 {dimension_numbers = #tpu.dot_dimension_numbers<[1], [0], [0], [1], [0, 0, 1, 1], [], []>} : vector<128x32xbf16>, vector<32x128xbf16>, vector<128x128xf32> -> vector<128x128xf32>
    %c0_252 = arith.constant 0 : index
    %c0_253 = arith.constant 0 : index
    %528 = vector.load %arg8[%c0_252, %c0_253] : memref<1x128xf32, #tpu.memory_space<vmem>>, vector<1x128xf32>
    %529 = vector.shape_cast %528 : vector<1x128xf32> to vector<128xf32>
    %530 = vector.shape_cast %529 : vector<128xf32> to vector<1x128xf32>
    %531 = vector.broadcast %530 : vector<1x128xf32> to vector<128x128xf32>
    %532 = arith.addf %527, %531 : vector<128x128xf32>
    %cst_254 = arith.constant 5.000000e-01 : f32
    %533 = vector.broadcast %cst_254 : f32 to vector<128x128xf32>
    %534 = arith.mulf %533, %532 : vector<128x128xf32>
    %cst_255 = arith.constant 0.707106769 : f32
    %535 = vector.broadcast %cst_255 : f32 to vector<128x128xf32>
    %536 = arith.mulf %532, %535 : vector<128x128xf32>
    %537 = math.erf %536 : vector<128x128xf32>
    %cst_256 = arith.constant 1.000000e+00 : f32
    %538 = vector.broadcast %cst_256 : f32 to vector<128x128xf32>
    %539 = arith.addf %538, %537 : vector<128x128xf32>
    %540 = arith.mulf %534, %539 : vector<128x128xf32>
    %541 = arith.truncf %540 : vector<128x128xf32> to vector<128x128xbf16>
    %c0_257 = arith.constant 0 : index
    %c0_258 = arith.constant 0 : index
    %542 = vector.load %arg9[%c0_257, %c0_258] : memref<128x32xbf16, #tpu.memory_space<vmem>>, vector<128x32xbf16>
    %cst_259 = arith.constant dense<0.000000e+00> : vector<128x32xf32>
    %543 = tpu.matmul %541, %542, %cst_259 {dimension_numbers = #tpu.dot_dimension_numbers<[1], [0], [0], [1], [0, 0, 1, 1], [], []>} : vector<128x128xbf16>, vector<128x32xbf16>, vector<128x32xf32> -> vector<128x32xf32>
    %c0_260 = arith.constant 0 : index
    %c0_261 = arith.constant 0 : index
    %544 = vector.load %arg10[%c0_260, %c0_261] : memref<1x32xf32, #tpu.memory_space<vmem>>, vector<1x32xf32>
    %545 = vector.shape_cast %544 : vector<1x32xf32> to vector<32xf32>
    %546 = vector.shape_cast %545 : vector<32xf32> to vector<1x32xf32>
    %547 = vector.broadcast %546 : vector<1x32xf32> to vector<128x32xf32>
    %548 = arith.addf %543, %547 : vector<128x32xf32>
    %c0_262 = arith.constant 0 : index
    %c0_263 = arith.constant 0 : index
    %549 = vector.load %arg11[%c0_262, %c0_263] : memref<1x32xf32, #tpu.memory_space<vmem>>, vector<1x32xf32>
    %550 = vector.shape_cast %549 : vector<1x32xf32> to vector<32xf32>
    %551 = vector.shape_cast %550 : vector<32xf32> to vector<1x32xf32>
    %552 = vector.broadcast %551 : vector<1x32xf32> to vector<128x32xf32>
    %553 = arith.mulf %548, %552 : vector<128x32xf32>
    %c3_i32_264 = arith.constant 3 : i32
    %554 = arith.addi %1, %c3_i32_264 : i32
    %c0_265 = arith.constant 0 : index
    %555 = arith.index_cast %554 : i32 to index
    %c3_266 = arith.constant 3 : index
    %c0_267 = arith.constant 0 : index
    %556 = vector.load %arg2[%c0_265, %555, %c3_266, %c0_267] : memref<1x22x22x32xf32, #tpu.memory_space<vmem>>, vector<1x8x16x32xf32>
    %557 = vector.shape_cast %556 : vector<1x8x16x32xf32> to vector<8x16x32xf32>
    %558 = vector.shape_cast %553 : vector<128x32xf32> to vector<8x16x32xf32>
    %559 = arith.addf %557, %558 : vector<8x16x32xf32>
    %c0_268 = arith.constant 0 : index
    %c0_269 = arith.constant 0 : index
    %c0_270 = arith.constant 0 : index
    %c0_271 = arith.constant 0 : index
    %560 = vector.load %arg12[%c0_268, %c0_269, %c0_270, %c0_271] : memref<1x8x16x32xf32, #tpu.memory_space<vmem>>, vector<1x8x16x32xf32>
    %561 = vector.shape_cast %560 : vector<1x8x16x32xf32> to vector<8x16x32xf32>
    %562 = vector.shape_cast %559 : vector<8x16x32xf32> to vector<1x8x16x32xf32>
    tpu.vector_store %arg12[%c0_268, %c0_269, %c0_270, %c0_271], %562 {strides = array<i32>} : memref<1x8x16x32xf32, #tpu.memory_space<vmem>>, vector<1x8x16x32xf32>,
    return
  }
  func.func @transform_0(%arg0: i32, %arg1: i32) -> (i32, i32, i32, i32) {
    %c0_i32 = arith.constant 0 : i32
    %c0_i32_0 = arith.constant 0 : i32
    %c0_i32_1 = arith.constant 0 : i32
    %c0_i32_2 = arith.constant 0 : i32
    return %arg0, %c0_i32, %c0_i32_0, %c0_i32_1 : i32, i32, i32, i32
  }
  func.func @transform_1(%arg0: i32, %arg1: i32) -> (i32, i32) {
    %c0_i32 = arith.constant 0 : i32
    %c0_i32_0 = arith.constant 0 : i32
    %c0_i32_1 = arith.constant 0 : i32
    return %c0_i32, %c0_i32_0 : i32, i32
  }
  func.func @transform_2(%arg0: i32, %arg1: i32) -> (i32, i32) {
    %c0_i32 = arith.constant 0 : i32
    %c0_i32_0 = arith.constant 0 : i32
    %c0_i32_1 = arith.constant 0 : i32
    return %c0_i32, %c0_i32_0 : i32, i32
  }
  func.func @transform_3(%arg0: i32, %arg1: i32) -> (i32, i32) {
    %c0_i32 = arith.constant 0 : i32
    %c0_i32_0 = arith.constant 0 : i32
    %c0_i32_1 = arith.constant 0 : i32
    return %c0_i32, %c0_i32_0 : i32, i32
  }
  func.func @transform_4(%arg0: i32, %arg1: i32) -> (i32, i32) {
    %c0_i32 = arith.constant 0 : i32
    %c0_i32_0 = arith.constant 0 : i32
    %c0_i32_1 = arith.constant 0 : i32
    return %c0_i32, %c0_i32_0 : i32, i32
  }
  func.func @transform_5(%arg0: i32, %arg1: i32) -> (i32, i32) {
    %c0_i32 = arith.constant 0 : i32
    %c0_i32_0 = arith.constant 0 : i32
    %c0_i32_1 = arith.constant 0 : i32
    return %c0_i32, %c0_i32_0 : i32, i32
  }
  func.func @transform_6(%arg0: i32, %arg1: i32) -> (i32, i32) {
    %c0_i32 = arith.constant 0 : i32
    %c0_i32_0 = arith.constant 0 : i32
    %c0_i32_1 = arith.constant 0 : i32
    return %c0_i32, %c0_i32_0 : i32, i32
  }
  func.func @transform_7(%arg0: i32, %arg1: i32) -> (i32, i32) {
    %c0_i32 = arith.constant 0 : i32
    %c0_i32_0 = arith.constant 0 : i32
    %c0_i32_1 = arith.constant 0 : i32
    return %c0_i32, %c0_i32_0 : i32, i32
  }
  func.func @transform_8(%arg0: i32, %arg1: i32) -> (i32, i32) {
    %c0_i32 = arith.constant 0 : i32
    %c0_i32_0 = arith.constant 0 : i32
    %c0_i32_1 = arith.constant 0 : i32
    return %c0_i32, %c0_i32_0 : i32, i32
  }
  func.func @transform_9(%arg0: i32, %arg1: i32) -> (i32, i32) {
    %c0_i32 = arith.constant 0 : i32
    %c0_i32_0 = arith.constant 0 : i32
    %c0_i32_1 = arith.constant 0 : i32
    return %c0_i32, %c0_i32_0 : i32, i32
  }
  func.func @transform_10(%arg0: i32, %arg1: i32) -> (i32, i32, i32, i32) {
    %c0_i32 = arith.constant 0 : i32
    %c0_i32_0 = arith.constant 0 : i32
    %c0_i32_1 = arith.constant 0 : i32
    return %arg0, %arg1, %c0_i32, %c0_i32_0 : i32, i32, i32, i32
  }
}

</mosaic_0001>

<llo_original>
// kernel: tpu_custom_call.1
$region0: #{tpu_custom_call.1}
  #allocation0 [shape = 'u32[]', space=smem, size = 0x4, offset = 0x4, fixed_abs, tag = 'smem constant byte address 0x4 - core index']
  #allocation1 [shape = 'u32[144,128]{1,0:T(1,128)}', space=vmem, size = 0x12000, scoped, tag = 'internal scratch']
  %s0 = inlined_call_operand.vmem [shape: f32[2,22,22,32], index: 0, kind: input, shape index: {}]
  %s1 = inlined_call_operand.vmem [shape: f32[49,32], index: 1, kind: input, shape index: {}]
  %s2 = inlined_call_operand.vmem [shape: f32[1,32], index: 2, kind: input, shape index: {}]
  %s3 = inlined_call_operand.vmem [shape: f32[1,32], index: 3, kind: input, shape index: {}]
  %s4 = inlined_call_operand.vmem [shape: f32[1,32], index: 4, kind: input, shape index: {}]
  %s5 = inlined_call_operand.vmem [shape: bf16[32,128], index: 5, kind: input, shape index: {}]
  %s6 = inlined_call_operand.vmem [shape: f32[1,128], index: 6, kind: input, shape index: {}]
  %s7 = inlined_call_operand.vmem [shape: bf16[128,32], index: 7, kind: input, shape index: {}]
  %s8 = inlined_call_operand.vmem [shape: f32[1,32], index: 8, kind: input, shape index: {}]
  %s9 = inlined_call_operand.vmem [shape: f32[1,32], index: 9, kind: input, shape index: {}]
  %s10 = inlined_call_operand.hbm [shape: f32[2,16,16,32], index: 10, kind: output, shape index: {}]
  %s11 = sld [smem:[#allocation0]]
  $region73: #{tpu_custom_call.1} parent=0
    _
  %s13 = ssub.s32 1, %s11
  %s14 = scalar_select 0, %s13, %s11
  $region1: #{tpu_custom_call.1} parent=0
    #allocation2 [shape = 'u8[131072]{0}', space=vmem, size = 0x20000, scoped, tag = 'output window, operand 0']
    #allocation3 [shape = 's32[2]{0}', space=sflag, size = 0x8, scoped, tag = 'scoped memory for tpu_custom_call.1']
    %15 = vsyncpa [#allocation3], 0
    %s16 = scalar_lea.sflag [#allocation3], 1
    %17 = vsyncpa %s16, 0
    loop: start=0, step=1, limit=6
    $region2: #{tpu_custom_call.1} parent=1 // loop_pre_header
      _
    $region3: #{tpu_custom_call.1} parent=1 // loop_header
      %s19 = sphi 0, %s23
      %p20 = scmp.ge.s32.totalorder %s19, 6
      %s26 = sphi 0, %s38
      %s27 = sphi 0, %s34
      %s28 = sphi 0, %s26
      %s29 = sphi 0, %s27
      %s30 = sphi 0, %s28
      %s31 = sphi 0, %s29
      %s41 = sphi 0, %s43
      %s44 = sphi 0, %s41
      %s45 = sphi 0, %s44
      %s61 = sphi 0, %s45
      %s65 = sphi 0, %s65
      %s67 = sphi 0, %s65
      %s68 = sphi 0, %s67
      %s82 = sphi 0, %s68
      %s86 = sphi 0, %s86
      %s88 = sphi 0, %s86
      %s89 = sphi 0, %s88
      %s103 = sphi 0, %s89
      %s107 = sphi 0, %s107
      %s109 = sphi 0, %s107
      %s110 = sphi 0, %s109
      %s124 = sphi 0, %s110
      %s128 = sphi 0, %s128
      %s130 = sphi 0, %s128
      %s131 = sphi 0, %s130
      %s145 = sphi 0, %s131
      %s149 = sphi 0, %s149
      %s151 = sphi 0, %s149
      %s152 = sphi 0, %s151
      %s166 = sphi 0, %s152
      %s170 = sphi 0, %s170
      %s172 = sphi 0, %s170
      %s173 = sphi 0, %s172
      %s187 = sphi 0, %s173
      %s191 = sphi 0, %s191
      %s193 = sphi 0, %s191
      %s194 = sphi 0, %s193
      %s208 = sphi 0, %s194
      %s212 = sphi 0, %s212
      %s214 = sphi 0, %s212
      %s215 = sphi 0, %s214
      %s229 = sphi 0, %s215
      %s233 = sphi 0, %s233
      %s235 = sphi 0, %s233
      %s236 = sphi 0, %s235
      %s250 = sphi 0, %s236
      %s258 = sphi 0, %s260
      %s261 = sphi 0, %s258
      %s262 = sphi 0, %s261
      %s278 = sphi 0, %s262
    $region4: #{tpu_custom_call.1} parent=1 // loop_header_branch
      %22 = sbr.rel (%p20) target = $region8
    $region5: #{tpu_custom_call.1} parent=1 // loop_body
      %s24 = ssub.s32 %s19, 1
      %s25 = ssub.s32 %s19, 2
      %s32 = sadd.s32 1, %s27
      %p33 = scmp.ge.s32.totalorder %s32, 2
      %s34 = scalar_select %p33, 0, %s32
      %s35 = sadd.s32 1, %s26
      %s36 = scalar_select %p33, %s35, %s26
      %p37 = scmp.ge.s32.totalorder %s36, 2
      %s38 = scalar_select %p37, 0, %s36
      %s39 = ssub.s32 %s26, %s38
      %p40 = scmp.eq.s32.totalorder %s39, 0
      %s42 = sadd.s32 %s41, 1
      %s43 = scalar_select %p40, %s41, %s42
      %p46 = pneg %p40
      %p47 = scmp.eq.s32.totalorder %s19, 3
      %p48 = por %p46, %p47
      %p49 = scmp.ne.s32.totalorder %s41, %s44
      %p50 = scmp.eq.s32.totalorder %s19, 0
      %p51 = por %p49, %p50
      %p52 = scmp.ne.s32.totalorder %s41, %s44
      %p53 = scmp.eq.s32.totalorder %s24, 3
      %p54 = por %p52, %p53
      %p55 = scmp.ne.s32.totalorder %s44, %s45
      %p56 = scmp.eq.s32.totalorder %s24, 0
      %p57 = por %p55, %p56
      %p58 = scmp.ne.s32.totalorder %s44, %s45
      %p59 = scmp.eq.s32.totalorder %s25, 3
      %p60 = por %p58, %p59
      %p62 = scmp.ne.s32.totalorder %s45, %s61
      %p63 = scmp.eq.s32.totalorder %s25, 0
      %p64 = por %p62, %p63
      %s66 = sadd.s32 %s65, 1
      %p69 = scmp.eq.s32.totalorder %s19, 3
      %p70 = scmp.ne.s32.totalorder %s65, %s67
      %p71 = scmp.eq.s32.totalorder %s19, 0
      %p72 = por %p70, %p71
      %p73 = scmp.ne.s32.totalorder %s65, %s67
      %p74 = scmp.eq.s32.totalorder %s24, 3
      %p75 = por %p73, %p74
      %p76 = scmp.ne.s32.totalorder %s67, %s68
      %p77 = scmp.eq.s32.totalorder %s24, 0
      %p78 = por %p76, %p77
      %p79 = scmp.ne.s32.totalorder %s67, %s68
      %p80 = scmp.eq.s32.totalorder %s25, 3
      %p81 = por %p79, %p80
      %p83 = scmp.ne.s32.totalorder %s68, %s82
      %p84 = scmp.eq.s32.totalorder %s25, 0
      %p85 = por %p83, %p84
      %s87 = sadd.s32 %s86, 1
      %p90 = scmp.eq.s32.totalorder %s19, 3
      %p91 = scmp.ne.s32.totalorder %s86, %s88
      %p92 = scmp.eq.s32.totalorder %s19, 0
      %p93 = por %p91, %p92
      %p94 = scmp.ne.s32.totalorder %s86, %s88
      %p95 = scmp.eq.s32.totalorder %s24, 3
      %p96 = por %p94, %p95
      %p97 = scmp.ne.s32.totalorder %s88, %s89
      %p98 = scmp.eq.s32.totalorder %s24, 0
      %p99 = por %p97, %p98
      %p100 = scmp.ne.s32.totalorder %s88, %s89
      %p101 = scmp.eq.s32.totalorder %s25, 3
      %p102 = por %p100, %p101
      %p104 = scmp.ne.s32.totalorder %s89, %s103
      %p105 = scmp.eq.s32.totalorder %s25, 0
      %p106 = por %p104, %p105
      %s108 = sadd.s32 %s107, 1
      %p111 = scmp.eq.s32.totalorder %s19, 3
      %p112 = scmp.ne.s32.totalorder %s107, %s109
      %p113 = scmp.eq.s32.totalorder %s19, 0
      %p114 = por %p112, %p113
      %p115 = scmp.ne.s32.totalorder %s107, %s109
      %p116 = scmp.eq.s32.totalorder %s24, 3
      %p117 = por %p115, %p116
      %p118 = scmp.ne.s32.totalorder %s109, %s110
      %p119 = scmp.eq.s32.totalorder %s24, 0
      %p120 = por %p118, %p119
      %p121 = scmp.ne.s32.totalorder %s109, %s110
      %p122 = scmp.eq.s32.totalorder %s25, 3
      %p123 = por %p121, %p122
      %p125 = scmp.ne.s32.totalorder %s110, %s124
      %p126 = scmp.eq.s32.totalorder %s25, 0
      %p127 = por %p125, %p126
      %s129 = sadd.s32 %s128, 1
      %p132 = scmp.eq.s32.totalorder %s19, 3
      %p133 = scmp.ne.s32.totalorder %s128, %s130
      %p134 = scmp.eq.s32.totalorder %s19, 0
      %p135 = por %p133, %p134
      %p136 = scmp.ne.s32.totalorder %s128, %s130
      %p137 = scmp.eq.s32.totalorder %s24, 3
      %p138 = por %p136, %p137
      %p139 = scmp.ne.s32.totalorder %s130, %s131
      %p140 = scmp.eq.s32.totalorder %s24, 0
      %p141 = por %p139, %p140
      %p142 = scmp.ne.s32.totalorder %s130, %s131
      %p143 = scmp.eq.s32.totalorder %s25, 3
      %p144 = por %p142, %p143
      %p146 = scmp.ne.s32.totalorder %s131, %s145
      %p147 = scmp.eq.s32.totalorder %s25, 0
      %p148 = por %p146, %p147
      %s150 = sadd.s32 %s149, 1
      %p153 = scmp.eq.s32.totalorder %s19, 3
      %p154 = scmp.ne.s32.totalorder %s149, %s151
      %p155 = scmp.eq.s32.totalorder %s19, 0
      %p156 = por %p154, %p155
      %p157 = scmp.ne.s32.totalorder %s149, %s151
      %p158 = scmp.eq.s32.totalorder %s24, 3
      %p159 = por %p157, %p158
      %p160 = scmp.ne.s32.totalorder %s151, %s152
      %p161 = scmp.eq.s32.totalorder %s24, 0
      %p162 = por %p160, %p161
      %p163 = scmp.ne.s32.totalorder %s151, %s152
      %p164 = scmp.eq.s32.totalorder %s25, 3
      %p165 = por %p163, %p164
      %p167 = scmp.ne.s32.totalorder %s152, %s166
      %p168 = scmp.eq.s32.totalorder %s25, 0
      %p169 = por %p167, %p168
      %s171 = sadd.s32 %s170, 1
      %p174 = scmp.eq.s32.totalorder %s19, 3
      %p175 = scmp.ne.s32.totalorder %s170, %s172
      %p176 = scmp.eq.s32.totalorder %s19, 0
      %p177 = por %p175, %p176
      %p178 = scmp.ne.s32.totalorder %s170, %s172
      %p179 = scmp.eq.s32.totalorder %s24, 3
      %p180 = por %p178, %p179
      %p181 = scmp.ne.s32.totalorder %s172, %s173
      %p182 = scmp.eq.s32.totalorder %s24, 0
      %p183 = por %p181, %p182
      %p184 = scmp.ne.s32.totalorder %s172, %s173
      %p185 = scmp.eq.s32.totalorder %s25, 3
      %p186 = por %p184, %p185
      %p188 = scmp.ne.s32.totalorder %s173, %s187
      %p189 = scmp.eq.s32.totalorder %s25, 0
      %p190 = por %p188, %p189
      %s192 = sadd.s32 %s191, 1
      %p195 = scmp.eq.s32.totalorder %s19, 3
      %p196 = scmp.ne.s32.totalorder %s191, %s193
      %p197 = scmp.eq.s32.totalorder %s19, 0
      %p198 = por %p196, %p197
      %p199 = scmp.ne.s32.totalorder %s191, %s193
      %p200 = scmp.eq.s32.totalorder %s24, 3
      %p201 = por %p199, %p200
      %p202 = scmp.ne.s32.totalorder %s193, %s194
      %p203 = scmp.eq.s32.totalorder %s24, 0
      %p204 = por %p202, %p203
      %p205 = scmp.ne.s32.totalorder %s193, %s194
      %p206 = scmp.eq.s32.totalorder %s25, 3
      %p207 = por %p205, %p206
      %p209 = scmp.ne.s32.totalorder %s194, %s208
      %p210 = scmp.eq.s32.totalorder %s25, 0
      %p211 = por %p209, %p210
      %s213 = sadd.s32 %s212, 1
      %p216 = scmp.eq.s32.totalorder %s19, 3
      %p217 = scmp.ne.s32.totalorder %s212, %s214
      %p218 = scmp.eq.s32.totalorder %s19, 0
      %p219 = por %p217, %p218
      %p220 = scmp.ne.s32.totalorder %s212, %s214
      %p221 = scmp.eq.s32.totalorder %s24, 3
      %p222 = por %p220, %p221
      %p223 = scmp.ne.s32.totalorder %s214, %s215
      %p224 = scmp.eq.s32.totalorder %s24, 0
      %p225 = por %p223, %p224
      %p226 = scmp.ne.s32.totalorder %s214, %s215
      %p227 = scmp.eq.s32.totalorder %s25, 3
      %p228 = por %p226, %p227
      %p230 = scmp.ne.s32.totalorder %s215, %s229
      %p231 = scmp.eq.s32.totalorder %s25, 0
      %p232 = por %p230, %p231
      %s234 = sadd.s32 %s233, 1
      %p237 = scmp.eq.s32.totalorder %s19, 3
      %p238 = scmp.ne.s32.totalorder %s233, %s235
      %p239 = scmp.eq.s32.totalorder %s19, 0
      %p240 = por %p238, %p239
      %p241 = scmp.ne.s32.totalorder %s233, %s235
      %p242 = scmp.eq.s32.totalorder %s24, 3
      %p243 = por %p241, %p242
      %p244 = scmp.ne.s32.totalorder %s235, %s236
      %p245 = scmp.eq.s32.totalorder %s24, 0
      %p246 = por %p244, %p245
      %p247 = scmp.ne.s32.totalorder %s235, %s236
      %p248 = scmp.eq.s32.totalorder %s25, 3
      %p249 = por %p247, %p248
      %p251 = scmp.ne.s32.totalorder %s236, %s250
      %p252 = scmp.eq.s32.totalorder %s25, 0
      %p253 = por %p251, %p252
      %s254 = ssub.s32 %s26, %s38
      %s255 = ssub.s32 %s27, %s34
      %s256 = sor.u32 %s254, %s255
      %p257 = scmp.eq.s32.totalorder %s256, 0
      %s259 = sadd.s32 %s258, 1
      %s260 = scalar_select %p257, %s258, %s259
      %p263 = pneg %p257
      %p264 = scmp.eq.s32.totalorder %s19, 3
      %p265 = por %p263, %p264
      %p266 = scmp.ne.s32.totalorder %s258, %s261
      %p267 = scmp.eq.s32.totalorder %s19, 0
      %p268 = por %p266, %p267
      %p269 = scmp.ne.s32.totalorder %s258, %s261
      %p270 = scmp.eq.s32.totalorder %s24, 3
      %p271 = por %p269, %p270
      %p272 = scmp.ne.s32.totalorder %s261, %s262
      %p273 = scmp.eq.s32.totalorder %s24, 0
      %p274 = por %p272, %p273
      %p275 = scmp.ne.s32.totalorder %s261, %s262
      %p276 = scmp.eq.s32.totalorder %s25, 3
      %p277 = por %p275, %p276
      %p279 = scmp.ne.s32.totalorder %s262, %s278
      %p280 = scmp.eq.s32.totalorder %s25, 0
      %p281 = por %p279, %p280
      %p282 = scmp.le.s32.totalorder 1, %s19
      %p283 = scmp.lt.s32.totalorder %s19, 5
      %p284 = pnand %p282, %p283
      %p285 = pneg %p284
      // Predicated region
      $region9: #{tpu_custom_call.1} parent=5 // pred_check
        _
      $region10: #{tpu_custom_call.1} parent=5 // pred_check_branch
        %287 = sbr.rel (%p284) target = $region12
      $region11: #{tpu_custom_call.1} parent=5 // pred_region
        %s288 = ssub.s32 %s19, 1
        // Predicated region
        $region13: #{tpu_custom_call.1} parent=11 // pred_check
          %p289 = pneg %p78
        $region14: #{tpu_custom_call.1} parent=11 // pred_check_branch
          %291 = sbr.rel (%p289) target = $region16
        $region15: #{tpu_custom_call.1} parent=11 // pred_region
          _
        $region16: #{tpu_custom_call.1} parent=11 // pred_fallthru
          _
        // Predicated region
        $region17: #{tpu_custom_call.1} parent=11 // pred_check
          %p292 = pneg %p99
        $region18: #{tpu_custom_call.1} parent=11 // pred_check_branch
          %294 = sbr.rel (%p292) target = $region20
        $region19: #{tpu_custom_call.1} parent=11 // pred_region
          _
        $region20: #{tpu_custom_call.1} parent=11 // pred_fallthru
          _
        // Predicated region
        $region21: #{tpu_custom_call.1} parent=11 // pred_check
          %p295 = pneg %p120
        $region22: #{tpu_custom_call.1} parent=11 // pred_check_branch
          %297 = sbr.rel (%p295) target = $region24
        $region23: #{tpu_custom_call.1} parent=11 // pred_region
          _
        $region24: #{tpu_custom_call.1} parent=11 // pred_fallthru
          _
        // Predicated region
        $region25: #{tpu_custom_call.1} parent=11 // pred_check
          %p298 = pneg %p141
        $region26: #{tpu_custom_call.1} parent=11 // pred_check_branch
          %300 = sbr.rel (%p298) target = $region28
        $region27: #{tpu_custom_call.1} parent=11 // pred_region
          _
        $region28: #{tpu_custom_call.1} parent=11 // pred_fallthru
          _
        // Predicated region
        $region29: #{tpu_custom_call.1} parent=11 // pred_check
          %p301 = pneg %p162
        $region30: #{tpu_custom_call.1} parent=11 // pred_check_branch
          %303 = sbr.rel (%p301) target = $region32
        $region31: #{tpu_custom_call.1} parent=11 // pred_region
          _
        $region32: #{tpu_custom_call.1} parent=11 // pred_fallthru
          _
        // Predicated region
        $region33: #{tpu_custom_call.1} parent=11 // pred_check
          %p304 = pneg %p183
        $region34: #{tpu_custom_call.1} parent=11 // pred_check_branch
          %306 = sbr.rel (%p304) target = $region36
        $region35: #{tpu_custom_call.1} parent=11 // pred_region
          _
        $region36: #{tpu_custom_call.1} parent=11 // pred_fallthru
          _
        // Predicated region
        $region37: #{tpu_custom_call.1} parent=11 // pred_check
          %p307 = pneg %p204
        $region38: #{tpu_custom_call.1} parent=11 // pred_check_branch
          %309 = sbr.rel (%p307) target = $region40
        $region39: #{tpu_custom_call.1} parent=11 // pred_region
          _
        $region40: #{tpu_custom_call.1} parent=11 // pred_fallthru
          _
        // Predicated region
        $region41: #{tpu_custom_call.1} parent=11 // pred_check
          %p310 = pneg %p225
        $region42: #{tpu_custom_call.1} parent=11 // pred_check_branch
          %312 = sbr.rel (%p310) target = $region44
        $region43: #{tpu_custom_call.1} parent=11 // pred_region
          _
        $region44: #{tpu_custom_call.1} parent=11 // pred_fallthru
          _
        // Predicated region
        $region45: #{tpu_custom_call.1} parent=11 // pred_check
          %p313 = pneg %p246
        $region46: #{tpu_custom_call.1} parent=11 // pred_check_branch
          %315 = sbr.rel (%p313) target = $region48
        $region47: #{tpu_custom_call.1} parent=11 // pred_region
          _
        $region48: #{tpu_custom_call.1} parent=11 // pred_fallthru
          _
      $region12: #{tpu_custom_call.1} parent=5 // pred_fallthru
        _
      %p316 = scmp.lt.s32.totalorder %s19, 4
      // Predicated region
      $region49: #{tpu_custom_call.1} parent=5 // pred_check
        %p317 = pneg %p316
      $region50: #{tpu_custom_call.1} parent=5 // pred_check_branch
        %319 = sbr.rel (%p317) target = $region52
      $region51: #{tpu_custom_call.1} parent=5 // pred_region
        // Predicated region
        $region53: #{tpu_custom_call.1} parent=51 // pred_check
          %p320 = pneg %p51
        $region54: #{tpu_custom_call.1} parent=51 // pred_check_branch
          %322 = sbr.rel (%p320) target = $region56
        $region55: #{tpu_custom_call.1} parent=51 // pred_region
          %p323 = scmp.lt.s32.totalorder %s26, 1
          %s324 = scalar_select %p323, %s26, 1
          %s325 = smul.addr %s324, 66
          %s326 = smul.addr %s325, 8
          %s327 = scalar_lea.vmem %s0, %s326
        $region56: #{tpu_custom_call.1} parent=51 // pred_fallthru
          _
      $region52: #{tpu_custom_call.1} parent=5 // pred_fallthru
        _
      %p328 = scmp.le.s32.totalorder 1, %s19
      %p329 = scmp.lt.s32.totalorder %s19, 5
      %p330 = pnand %p328, %p329
      %p331 = pneg %p330
      // Predicated region
      $region57: #{tpu_custom_call.1} parent=5 // pred_check
        _
      $region58: #{tpu_custom_call.1} parent=5 // pred_check_branch
        %333 = sbr.rel (%p330) target = $region60
      $region59: #{tpu_custom_call.1} parent=5 // pred_region
        %s334 = ssub.s32 %s19, 1
        %p335 = scmp.lt.s32.totalorder %s28, 1
        %s336 = scalar_select %p335, %s28, 1
        %s337 = smul.addr %s336, 66
        %s338 = smul.addr %s337, 8
        %s339 = scalar_lea.vmem %s0, %s338
        %p340 = pneg %p57
        %p341 = pneg %p54
        %p342 = pneg %p78
        %p343 = pneg %p75
        %p344 = pneg %p99
        %p345 = pneg %p96
        %p346 = pneg %p120
        %p347 = pneg %p117
        %p348 = pneg %p141
        %p349 = pneg %p138
        %p350 = pneg %p162
        %p351 = pneg %p159
        %p352 = pneg %p183
        %p353 = pneg %p180
        %p354 = pneg %p204
        %p355 = pneg %p201
        %p356 = pneg %p225
        %p357 = pneg %p222
        %p358 = pneg %p246
        %p359 = pneg %p243
        %p360 = pneg %p274
        %p361 = pneg %p271
        %s362 = sand.u32 %s261, 1
        %s363 = scalar_lea.sflag [#allocation3], %s362
        %s364 = sand.u32 %s261, 1
        %s365 = smul.addr %s364, 128
        %s366 = scalar_lea.vmem [#allocation2], %s365
        %p367 = scmp.lt.s32.totalorder %s28, 1
        %s368 = scalar_select %p367, %s28, 1
        %s369 = smul.addr %s368, 66
        %s370 = smul.addr %s369, 8
        %s371 = scalar_lea.vmem %s0, %s370
        %s372 = smul.u32 8, %s29
        %s374 = smul.u32 %s29, 8
        %s375 = smul.u32 %s374, 24
        %s376 = scalar_lea.vmem %s371, %s375
        %v377 = vld [vmem:[%s376] sm:$0xff]
        %v378 = vld [vmem:[%s376 + $0x8] sm:$0xff]
        %v379 = vld [vmem:[%s376 + $0x18] sm:$0xff]
        %v380 = vld [vmem:[%s376 + $0x20] sm:$0xff]
        %v381 = vld [vmem:[%s376 + $0x30] sm:$0xff]
        %v382 = vld [vmem:[%s376 + $0x38] sm:$0xff]
        %v383 = vld [vmem:[%s376 + $0x48] sm:$0xff]
        %v384 = vld [vmem:[%s376 + $0x50] sm:$0xff]
        %v385 = vld [vmem:[%s376 + $0x60] sm:$0xff]
        %v386 = vld [vmem:[%s376 + $0x68] sm:$0xff]
        %v387 = vld [vmem:[%s376 + $0x78] sm:$0xff]
        %v388 = vld [vmem:[%s376 + $0x80] sm:$0xff]
        %v389 = vld [vmem:[%s376 + $0x90] sm:$0xff]
        %v390 = vld [vmem:[%s376 + $0x98] sm:$0xff]
        %v391 = vld [vmem:[%s376 + $0xa8] sm:$0xff]
        %v392 = vld [vmem:[%s376 + $0xb0] sm:$0xff]
        %v393 = vld [vmem:[%s1] sm:$0x1]
        %v394 = vlaneseq
        %v395 = vshrl.u32 %v394, 7
        %v396 = vsub.s32 0, %v395
        %v397 = vrot.slane %v393, %v396
        %v398 = vmul.f32 %v377, %v397
        %v399 = vmul.f32 %v378, %v397
        %v400 = vmul.f32 %v379, %v397
        %v401 = vmul.f32 %v380, %v397
        %v402 = vmul.f32 %v381, %v397
        %v403 = vmul.f32 %v382, %v397
        %v404 = vmul.f32 %v383, %v397
        %v405 = vmul.f32 %v384, %v397
        %v406 = vmul.f32 %v385, %v397
        %v407 = vmul.f32 %v386, %v397
        %v408 = vmul.f32 %v387, %v397
        %v409 = vmul.f32 %v388, %v397
        %v410 = vmul.f32 %v389, %v397
        %v411 = vmul.f32 %v390, %v397
        %v412 = vmul.f32 %v391, %v397
        %v413 = vmul.f32 %v392, %v397
        %v414 = vadd.f32 %v398, 0.0
        %v415 = vadd.f32 %v399, 0.0
        %v416 = vadd.f32 %v400, 0.0
        %v417 = vadd.f32 %v401, 0.0
        %v418 = vadd.f32 %v402, 0.0
        %v419 = vadd.f32 %v403, 0.0
        %v420 = vadd.f32 %v404, 0.0
        %v421 = vadd.f32 %v405, 0.0
        %v422 = vadd.f32 %v406, 0.0
        %v423 = vadd.f32 %v407, 0.0
        %v424 = vadd.f32 %v408, 0.0
        %v425 = vadd.f32 %v409, 0.0
        %v426 = vadd.f32 %v410, 0.0
        %v427 = vadd.f32 %v411, 0.0
        %v428 = vadd.f32 %v412, 0.0
        %v429 = vadd.f32 %v413, 0.0
        %v430 = vld [vmem:[%s376 + $0x1] sm:$0xff]
        %v431 = vld [vmem:[%s376 + $0x9] sm:$0xff]
        %v432 = vld [vmem:[%s376 + $0x19] sm:$0xff]
        %v433 = vld [vmem:[%s376 + $0x21] sm:$0xff]
        %v434 = vld [vmem:[%s376 + $0x31] sm:$0xff]
        %v435 = vld [vmem:[%s376 + $0x39] sm:$0xff]
        %v436 = vld [vmem:[%s376 + $0x49] sm:$0xff]
        %v437 = vld [vmem:[%s376 + $0x51] sm:$0xff]
        %v438 = vld [vmem:[%s376 + $0x61] sm:$0xff]
        %v439 = vld [vmem:[%s376 + $0x69] sm:$0xff]
        %v440 = vld [vmem:[%s376 + $0x79] sm:$0xff]
        %v441 = vld [vmem:[%s376 + $0x81] sm:$0xff]
        %v442 = vld [vmem:[%s376 + $0x91] sm:$0xff]
        %v443 = vld [vmem:[%s376 + $0x99] sm:$0xff]
        %v444 = vld [vmem:[%s376 + $0xa9] sm:$0xff]
        %v445 = vld [vmem:[%s376 + $0xb1] sm:$0xff]
        %v446 = vld [vmem:[%s1 + $0x1] sm:$0x1]
        %v447 = vlaneseq
        %v448 = vshrl.u32 %v447, 7
        %v449 = vsub.s32 0, %v448
        %v450 = vrot.slane %v446, %v449
        %v451 = vmul.f32 %v430, %v450
        %v452 = vmul.f32 %v431, %v450
        %v453 = vmul.f32 %v432, %v450
        %v454 = vmul.f32 %v433, %v450
        %v455 = vmul.f32 %v434, %v450
        %v456 = vmul.f32 %v435, %v450
        %v457 = vmul.f32 %v436, %v450
        %v458 = vmul.f32 %v437, %v450
        %v459 = vmul.f32 %v438, %v450
        %v460 = vmul.f32 %v439, %v450
        %v461 = vmul.f32 %v440, %v450
        %v462 = vmul.f32 %v441, %v450
        %v463 = vmul.f32 %v442, %v450
        %v464 = vmul.f32 %v443, %v450
        %v465 = vmul.f32 %v444, %v450
        %v466 = vmul.f32 %v445, %v450
        %v467 = vadd.f32 %v414, %v451
        %v468 = vadd.f32 %v415, %v452
        %v469 = vadd.f32 %v416, %v453
        %v470 = vadd.f32 %v417, %v454
        %v471 = vadd.f32 %v418, %v455
        %v472 = vadd.f32 %v419, %v456
        %v473 = vadd.f32 %v420, %v457
        %v474 = vadd.f32 %v421, %v458
        %v475 = vadd.f32 %v422, %v459
        %v476 = vadd.f32 %v423, %v460
        %v477 = vadd.f32 %v424, %v461
        %v478 = vadd.f32 %v425, %v462
        %v479 = vadd.f32 %v426, %v463
        %v480 = vadd.f32 %v427, %v464
        %v481 = vadd.f32 %v428, %v465
        %v482 = vadd.f32 %v429, %v466
        %v483 = vld [vmem:[%s376 + $0x2] sm:$0xff]
        %v484 = vld [vmem:[%s376 + $0xa] sm:$0xff]
        %v485 = vld [vmem:[%s376 + $0x1a] sm:$0xff]
        %v486 = vld [vmem:[%s376 + $0x22] sm:$0xff]
        %v487 = vld [vmem:[%s376 + $0x32] sm:$0xff]
        %v488 = vld [vmem:[%s376 + $0x3a] sm:$0xff]
        %v489 = vld [vmem:[%s376 + $0x4a] sm:$0xff]
        %v490 = vld [vmem:[%s376 + $0x52] sm:$0xff]
        %v491 = vld [vmem:[%s376 + $0x62] sm:$0xff]
        %v492 = vld [vmem:[%s376 + $0x6a] sm:$0xff]
        %v493 = vld [vmem:[%s376 + $0x7a] sm:$0xff]
        %v494 = vld [vmem:[%s376 + $0x82] sm:$0xff]
        %v495 = vld [vmem:[%s376 + $0x92] sm:$0xff]
        %v496 = vld [vmem:[%s376 + $0x9a] sm:$0xff]
        %v497 = vld [vmem:[%s376 + $0xaa] sm:$0xff]
        %v498 = vld [vmem:[%s376 + $0xb2] sm:$0xff]
        %v499 = vld [vmem:[%s1 + $0x2] sm:$0x1]
        %v500 = vlaneseq
        %v501 = vshrl.u32 %v500, 7
        %v502 = vsub.s32 0, %v501
        %v503 = vrot.slane %v499, %v502
        %v504 = vmul.f32 %v483, %v503
        %v505 = vmul.f32 %v484, %v503
        %v506 = vmul.f32 %v485, %v503
        %v507 = vmul.f32 %v486, %v503
        %v508 = vmul.f32 %v487, %v503
        %v509 = vmul.f32 %v488, %v503
        %v510 = vmul.f32 %v489, %v503
        %v511 = vmul.f32 %v490, %v503
        %v512 = vmul.f32 %v491, %v503
        %v513 = vmul.f32 %v492, %v503
        %v514 = vmul.f32 %v493, %v503
        %v515 = vmul.f32 %v494, %v503
        %v516 = vmul.f32 %v495, %v503
        %v517 = vmul.f32 %v496, %v503
        %v518 = vmul.f32 %v497, %v503
        %v519 = vmul.f32 %v498, %v503
        %v520 = vadd.f32 %v467, %v504
        %v521 = vadd.f32 %v468, %v505
        %v522 = vadd.f32 %v469, %v506
        %v523 = vadd.f32 %v470, %v507
        %v524 = vadd.f32 %v471, %v508
        %v525 = vadd.f32 %v472, %v509
        %v526 = vadd.f32 %v473, %v510
        %v527 = vadd.f32 %v474, %v511
        %v528 = vadd.f32 %v475, %v512
        %v529 = vadd.f32 %v476, %v513
        %v530 = vadd.f32 %v477, %v514
        %v531 = vadd.f32 %v478, %v515
        %v532 = vadd.f32 %v479, %v516
        %v533 = vadd.f32 %v480, %v517
        %v534 = vadd.f32 %v481, %v518
        %v535 = vadd.f32 %v482, %v519
        %v536 = vld [vmem:[%s376 + $0x3] sm:$0xff]
        %v537 = vld [vmem:[%s376 + $0xb] sm:$0xff]
        %v538 = vld [vmem:[%s376 + $0x1b] sm:$0xff]
        %v539 = vld [vmem:[%s376 + $0x23] sm:$0xff]
        %v540 = vld [vmem:[%s376 + $0x33] sm:$0xff]
        %v541 = vld [vmem:[%s376 + $0x3b] sm:$0xff]
        %v542 = vld [vmem:[%s376 + $0x4b] sm:$0xff]
        %v543 = vld [vmem:[%s376 + $0x53] sm:$0xff]
        %v544 = vld [vmem:[%s376 + $0x63] sm:$0xff]
        %v545 = vld [vmem:[%s376 + $0x6b] sm:$0xff]
        %v546 = vld [vmem:[%s376 + $0x7b] sm:$0xff]
        %v547 = vld [vmem:[%s376 + $0x83] sm:$0xff]
        %v548 = vld [vmem:[%s376 + $0x93] sm:$0xff]
        %v549 = vld [vmem:[%s376 + $0x9b] sm:$0xff]
        %v550 = vld [vmem:[%s376 + $0xab] sm:$0xff]
        %v551 = vld [vmem:[%s376 + $0xb3] sm:$0xff]
        %v552 = vld [vmem:[%s1 + $0x3] sm:$0x1]
        %v553 = vlaneseq
        %v554 = vshrl.u32 %v553, 7
        %v555 = vsub.s32 0, %v554
        %v556 = vrot.slane %v552, %v555
        %v557 = vmul.f32 %v536, %v556
        %v558 = vmul.f32 %v537, %v556
        %v559 = vmul.f32 %v538, %v556
        %v560 = vmul.f32 %v539, %v556
        %v561 = vmul.f32 %v540, %v556
        %v562 = vmul.f32 %v541, %v556
        %v563 = vmul.f32 %v542, %v556
        %v564 = vmul.f32 %v543, %v556
        %v565 = vmul.f32 %v544, %v556
        %v566 = vmul.f32 %v545, %v556
        %v567 = vmul.f32 %v546, %v556
        %v568 = vmul.f32 %v547, %v556
        %v569 = vmul.f32 %v548, %v556
        %v570 = vmul.f32 %v549, %v556
        %v571 = vmul.f32 %v550, %v556
        %v572 = vmul.f32 %v551, %v556
        %v573 = vadd.f32 %v520, %v557
        %v574 = vadd.f32 %v521, %v558
        %v575 = vadd.f32 %v522, %v559
        %v576 = vadd.f32 %v523, %v560
        %v577 = vadd.f32 %v524, %v561
        %v578 = vadd.f32 %v525, %v562
        %v579 = vadd.f32 %v526, %v563
        %v580 = vadd.f32 %v527, %v564
        %v581 = vadd.f32 %v528, %v565
        %v582 = vadd.f32 %v529, %v566
        %v583 = vadd.f32 %v530, %v567
        %v584 = vadd.f32 %v531, %v568
        %v585 = vadd.f32 %v532, %v569
        %v586 = vadd.f32 %v533, %v570
        %v587 = vadd.f32 %v534, %v571
        %v588 = vadd.f32 %v535, %v572
        %v589 = vld [vmem:[%s376 + $0x4] sm:$0xff]
        %v590 = vld [vmem:[%s376 + $0xc] sm:$0xff]
        %v591 = vld [vmem:[%s376 + $0x1c] sm:$0xff]
        %v592 = vld [vmem:[%s376 + $0x24] sm:$0xff]
        %v593 = vld [vmem:[%s376 + $0x34] sm:$0xff]
        %v594 = vld [vmem:[%s376 + $0x3c] sm:$0xff]
        %v595 = vld [vmem:[%s376 + $0x4c] sm:$0xff]
        %v596 = vld [vmem:[%s376 + $0x54] sm:$0xff]
        %v597 = vld [vmem:[%s376 + $0x64] sm:$0xff]
        %v598 = vld [vmem:[%s376 + $0x6c] sm:$0xff]
        %v599 = vld [vmem:[%s376 + $0x7c] sm:$0xff]
        %v600 = vld [vmem:[%s376 + $0x84] sm:$0xff]
        %v601 = vld [vmem:[%s376 + $0x94] sm:$0xff]
        %v602 = vld [vmem:[%s376 + $0x9c] sm:$0xff]
        %v603 = vld [vmem:[%s376 + $0xac] sm:$0xff]
        %v604 = vld [vmem:[%s376 + $0xb4] sm:$0xff]
        %v605 = vld [vmem:[%s1 + $0x4] sm:$0x1]
        %v606 = vlaneseq
        %v607 = vshrl.u32 %v606, 7
        %v608 = vsub.s32 0, %v607
        %v609 = vrot.slane %v605, %v608
        %v610 = vmul.f32 %v589, %v609
        %v611 = vmul.f32 %v590, %v609
        %v612 = vmul.f32 %v591, %v609
        %v613 = vmul.f32 %v592, %v609
        %v614 = vmul.f32 %v593, %v609
        %v615 = vmul.f32 %v594, %v609
        %v616 = vmul.f32 %v595, %v609
        %v617 = vmul.f32 %v596, %v609
        %v618 = vmul.f32 %v597, %v609
        %v619 = vmul.f32 %v598, %v609
        %v620 = vmul.f32 %v599, %v609
        %v621 = vmul.f32 %v600, %v609
        %v622 = vmul.f32 %v601, %v609
        %v623 = vmul.f32 %v602, %v609
        %v624 = vmul.f32 %v603, %v609
        %v625 = vmul.f32 %v604, %v609
        %v626 = vadd.f32 %v573, %v610
        %v627 = vadd.f32 %v574, %v611
        %v628 = vadd.f32 %v575, %v612
        %v629 = vadd.f32 %v576, %v613
        %v630 = vadd.f32 %v577, %v614
        %v631 = vadd.f32 %v578, %v615
        %v632 = vadd.f32 %v579, %v616
        %v633 = vadd.f32 %v580, %v617
        %v634 = vadd.f32 %v581, %v618
        %v635 = vadd.f32 %v582, %v619
        %v636 = vadd.f32 %v583, %v620
        %v637 = vadd.f32 %v584, %v621
        %v638 = vadd.f32 %v585, %v622
        %v639 = vadd.f32 %v586, %v623
        %v640 = vadd.f32 %v587, %v624
        %v641 = vadd.f32 %v588, %v625
        %v642 = vld [vmem:[%s376 + $0x5] sm:$0xff]
        %v643 = vld [vmem:[%s376 + $0xd] sm:$0xff]
        %v644 = vld [vmem:[%s376 + $0x1d] sm:$0xff]
        %v645 = vld [vmem:[%s376 + $0x25] sm:$0xff]
        %v646 = vld [vmem:[%s376 + $0x35] sm:$0xff]
        %v647 = vld [vmem:[%s376 + $0x3d] sm:$0xff]
        %v648 = vld [vmem:[%s376 + $0x4d] sm:$0xff]
        %v649 = vld [vmem:[%s376 + $0x55] sm:$0xff]
        %v650 = vld [vmem:[%s376 + $0x65] sm:$0xff]
        %v651 = vld [vmem:[%s376 + $0x6d] sm:$0xff]
        %v652 = vld [vmem:[%s376 + $0x7d] sm:$0xff]
        %v653 = vld [vmem:[%s376 + $0x85] sm:$0xff]
        %v654 = vld [vmem:[%s376 + $0x95] sm:$0xff]
        %v655 = vld [vmem:[%s376 + $0x9d] sm:$0xff]
        %v656 = vld [vmem:[%s376 + $0xad] sm:$0xff]
        %v657 = vld [vmem:[%s376 + $0xb5] sm:$0xff]
        %v658 = vld [vmem:[%s1 + $0x5] sm:$0x1]
        %v659 = vlaneseq
        %v660 = vshrl.u32 %v659, 7
        %v661 = vsub.s32 0, %v660
        %v662 = vrot.slane %v658, %v661
        %v663 = vmul.f32 %v642, %v662
        %v664 = vmul.f32 %v643, %v662
        %v665 = vmul.f32 %v644, %v662
        %v666 = vmul.f32 %v645, %v662
        %v667 = vmul.f32 %v646, %v662
        %v668 = vmul.f32 %v647, %v662
        %v669 = vmul.f32 %v648, %v662
        %v670 = vmul.f32 %v649, %v662
        %v671 = vmul.f32 %v650, %v662
        %v672 = vmul.f32 %v651, %v662
        %v673 = vmul.f32 %v652, %v662
        %v674 = vmul.f32 %v653, %v662
        %v675 = vmul.f32 %v654, %v662
        %v676 = vmul.f32 %v655, %v662
        %v677 = vmul.f32 %v656, %v662
        %v678 = vmul.f32 %v657, %v662
        %v679 = vadd.f32 %v626, %v663
        %v680 = vadd.f32 %v627, %v664
        %v681 = vadd.f32 %v628, %v665
        %v682 = vadd.f32 %v629, %v666
        %v683 = vadd.f32 %v630, %v667
        %v684 = vadd.f32 %v631, %v668
        %v685 = vadd.f32 %v632, %v669
        %v686 = vadd.f32 %v633, %v670
        %v687 = vadd.f32 %v634, %v671
        %v688 = vadd.f32 %v635, %v672
        %v689 = vadd.f32 %v636, %v673
        %v690 = vadd.f32 %v637, %v674
        %v691 = vadd.f32 %v638, %v675
        %v692 = vadd.f32 %v639, %v676
        %v693 = vadd.f32 %v640, %v677
        %v694 = vadd.f32 %v641, %v678
        %v695 = vld [vmem:[%s376 + $0x6] sm:$0xff]
        %v696 = vld [vmem:[%s376 + $0xe] sm:$0xff]
        %v697 = vld [vmem:[%s376 + $0x1e] sm:$0xff]
        %v698 = vld [vmem:[%s376 + $0x26] sm:$0xff]
        %v699 = vld [vmem:[%s376 + $0x36] sm:$0xff]
        %v700 = vld [vmem:[%s376 + $0x3e] sm:$0xff]
        %v701 = vld [vmem:[%s376 + $0x4e] sm:$0xff]
        %v702 = vld [vmem:[%s376 + $0x56] sm:$0xff]
        %v703 = vld [vmem:[%s376 + $0x66] sm:$0xff]
        %v704 = vld [vmem:[%s376 + $0x6e] sm:$0xff]
        %v705 = vld [vmem:[%s376 + $0x7e] sm:$0xff]
        %v706 = vld [vmem:[%s376 + $0x86] sm:$0xff]
        %v707 = vld [vmem:[%s376 + $0x96] sm:$0xff]
        %v708 = vld [vmem:[%s376 + $0x9e] sm:$0xff]
        %v709 = vld [vmem:[%s376 + $0xae] sm:$0xff]
        %v710 = vld [vmem:[%s376 + $0xb6] sm:$0xff]
        %v711 = vld [vmem:[%s1 + $0x6] sm:$0x1]
        %v712 = vlaneseq
        %v713 = vshrl.u32 %v712, 7
        %v714 = vsub.s32 0, %v713
        %v715 = vrot.slane %v711, %v714
        %v716 = vmul.f32 %v695, %v715
        %v717 = vmul.f32 %v696, %v715
        %v718 = vmul.f32 %v697, %v715
        %v719 = vmul.f32 %v698, %v715
        %v720 = vmul.f32 %v699, %v715
        %v721 = vmul.f32 %v700, %v715
        %v722 = vmul.f32 %v701, %v715
        %v723 = vmul.f32 %v702, %v715
        %v724 = vmul.f32 %v703, %v715
        %v725 = vmul.f32 %v704, %v715
        %v726 = vmul.f32 %v705, %v715
        %v727 = vmul.f32 %v706, %v715
        %v728 = vmul.f32 %v707, %v715
        %v729 = vmul.f32 %v708, %v715
        %v730 = vmul.f32 %v709, %v715
        %v731 = vmul.f32 %v710, %v715
        %v732 = vadd.f32 %v679, %v716
        %v733 = vadd.f32 %v680, %v717
        %v734 = vadd.f32 %v681, %v718
        %v735 = vadd.f32 %v682, %v719
        %v736 = vadd.f32 %v683, %v720
        %v737 = vadd.f32 %v684, %v721
        %v738 = vadd.f32 %v685, %v722
        %v739 = vadd.f32 %v686, %v723
        %v740 = vadd.f32 %v687, %v724
        %v741 = vadd.f32 %v688, %v725
        %v742 = vadd.f32 %v689, %v726
        %v743 = vadd.f32 %v690, %v727
        %v744 = vadd.f32 %v691, %v728
        %v745 = vadd.f32 %v692, %v729
        %v746 = vadd.f32 %v693, %v730
        %v747 = vadd.f32 %v694, %v731
        %s748 = sadd.s32 %s374, 1
        %s749 = smul.u32 %s748, 24
        %s750 = scalar_lea.vmem %s371, %s749
        %v751 = vld [vmem:[%s750] sm:$0xff]
        %v752 = vld [vmem:[%s750 + $0x8] sm:$0xff]
        %v753 = vld [vmem:[%s750 + $0x18] sm:$0xff]
        %v754 = vld [vmem:[%s750 + $0x20] sm:$0xff]
        %v755 = vld [vmem:[%s750 + $0x30] sm:$0xff]
        %v756 = vld [vmem:[%s750 + $0x38] sm:$0xff]
        %v757 = vld [vmem:[%s750 + $0x48] sm:$0xff]
        %v758 = vld [vmem:[%s750 + $0x50] sm:$0xff]
        %v759 = vld [vmem:[%s750 + $0x60] sm:$0xff]
        %v760 = vld [vmem:[%s750 + $0x68] sm:$0xff]
        %v761 = vld [vmem:[%s750 + $0x78] sm:$0xff]
        %v762 = vld [vmem:[%s750 + $0x80] sm:$0xff]
        %v763 = vld [vmem:[%s750 + $0x90] sm:$0xff]
        %v764 = vld [vmem:[%s750 + $0x98] sm:$0xff]
        %v765 = vld [vmem:[%s750 + $0xa8] sm:$0xff]
        %v766 = vld [vmem:[%s750 + $0xb0] sm:$0xff]
        %v767 = vld [vmem:[%s1 + $0x7] sm:$0x1]
        %v768 = vlaneseq
        %v769 = vshrl.u32 %v768, 7
        %v770 = vsub.s32 0, %v769
        %v771 = vrot.slane %v767, %v770
        %v772 = vmul.f32 %v751, %v771
        %v773 = vmul.f32 %v752, %v771
        %v774 = vmul.f32 %v753, %v771
        %v775 = vmul.f32 %v754, %v771
        %v776 = vmul.f32 %v755, %v771
        %v777 = vmul.f32 %v756, %v771
        %v778 = vmul.f32 %v757, %v771
        %v779 = vmul.f32 %v758, %v771
        %v780 = vmul.f32 %v759, %v771
        %v781 = vmul.f32 %v760, %v771
        %v782 = vmul.f32 %v761, %v771
        %v783 = vmul.f32 %v762, %v771
        %v784 = vmul.f32 %v763, %v771
        %v785 = vmul.f32 %v764, %v771
        %v786 = vmul.f32 %v765, %v771
        %v787 = vmul.f32 %v766, %v771
        %v788 = vadd.f32 %v732, %v772
        %v789 = vadd.f32 %v733, %v773
        %v790 = vadd.f32 %v734, %v774
        %v791 = vadd.f32 %v735, %v775
        %v792 = vadd.f32 %v736, %v776
        %v793 = vadd.f32 %v737, %v777
        %v794 = vadd.f32 %v738, %v778
        %v795 = vadd.f32 %v739, %v779
        %v796 = vadd.f32 %v740, %v780
        %v797 = vadd.f32 %v741, %v781
        %v798 = vadd.f32 %v742, %v782
        %v799 = vadd.f32 %v743, %v783
        %v800 = vadd.f32 %v744, %v784
        %v801 = vadd.f32 %v745, %v785
        %v802 = vadd.f32 %v746, %v786
        %v803 = vadd.f32 %v747, %v787
        %v804 = vld [vmem:[%s750 + $0x1] sm:$0xff]
        %v805 = vld [vmem:[%s750 + $0x9] sm:$0xff]
        %v806 = vld [vmem:[%s750 + $0x19] sm:$0xff]
        %v807 = vld [vmem:[%s750 + $0x21] sm:$0xff]
        %v808 = vld [vmem:[%s750 + $0x31] sm:$0xff]
        %v809 = vld [vmem:[%s750 + $0x39] sm:$0xff]
        %v810 = vld [vmem:[%s750 + $0x49] sm:$0xff]
        %v811 = vld [vmem:[%s750 + $0x51] sm:$0xff]
        %v812 = vld [vmem:[%s750 + $0x61] sm:$0xff]
        %v813 = vld [vmem:[%s750 + $0x69] sm:$0xff]
        %v814 = vld [vmem:[%s750 + $0x79] sm:$0xff]
        %v815 = vld [vmem:[%s750 + $0x81] sm:$0xff]
        %v816 = vld [vmem:[%s750 + $0x91] sm:$0xff]
        %v817 = vld [vmem:[%s750 + $0x99] sm:$0xff]
        %v818 = vld [vmem:[%s750 + $0xa9] sm:$0xff]
        %v819 = vld [vmem:[%s750 + $0xb1] sm:$0xff]
        %v820 = vld [vmem:[%s1 + $0x8] sm:$0x1]
        %v821 = vlaneseq
        %v822 = vshrl.u32 %v821, 7
        %v823 = vsub.s32 0, %v822
        %v824 = vrot.slane %v820, %v823
        %v825 = vmul.f32 %v804, %v824
        %v826 = vmul.f32 %v805, %v824
        %v827 = vmul.f32 %v806, %v824
        %v828 = vmul.f32 %v807, %v824
        %v829 = vmul.f32 %v808, %v824
        %v830 = vmul.f32 %v809, %v824
        %v831 = vmul.f32 %v810, %v824
        %v832 = vmul.f32 %v811, %v824
        %v833 = vmul.f32 %v812, %v824
        %v834 = vmul.f32 %v813, %v824
        %v835 = vmul.f32 %v814, %v824
        %v836 = vmul.f32 %v815, %v824
        %v837 = vmul.f32 %v816, %v824
        %v838 = vmul.f32 %v817, %v824
        %v839 = vmul.f32 %v818, %v824
        %v840 = vmul.f32 %v819, %v824
        %v841 = vadd.f32 %v788, %v825
        %v842 = vadd.f32 %v789, %v826
        %v843 = vadd.f32 %v790, %v827
        %v844 = vadd.f32 %v791, %v828
        %v845 = vadd.f32 %v792, %v829
        %v846 = vadd.f32 %v793, %v830
        %v847 = vadd.f32 %v794, %v831
        %v848 = vadd.f32 %v795, %v832
        %v849 = vadd.f32 %v796, %v833
        %v850 = vadd.f32 %v797, %v834
        %v851 = vadd.f32 %v798, %v835
        %v852 = vadd.f32 %v799, %v836
        %v853 = vadd.f32 %v800, %v837
        %v854 = vadd.f32 %v801, %v838
        %v855 = vadd.f32 %v802, %v839
        %v856 = vadd.f32 %v803, %v840
        %v857 = vld [vmem:[%s750 + $0x2] sm:$0xff]
        %v858 = vld [vmem:[%s750 + $0xa] sm:$0xff]
        %v859 = vld [vmem:[%s750 + $0x1a] sm:$0xff]
        %v860 = vld [vmem:[%s750 + $0x22] sm:$0xff]
        %v861 = vld [vmem:[%s750 + $0x32] sm:$0xff]
        %v862 = vld [vmem:[%s750 + $0x3a] sm:$0xff]
        %v863 = vld [vmem:[%s750 + $0x4a] sm:$0xff]
        %v864 = vld [vmem:[%s750 + $0x52] sm:$0xff]
        %v865 = vld [vmem:[%s750 + $0x62] sm:$0xff]
        %v866 = vld [vmem:[%s750 + $0x6a] sm:$0xff]
        %v867 = vld [vmem:[%s750 + $0x7a] sm:$0xff]
        %v868 = vld [vmem:[%s750 + $0x82] sm:$0xff]
        %v869 = vld [vmem:[%s750 + $0x92] sm:$0xff]
        %v870 = vld [vmem:[%s750 + $0x9a] sm:$0xff]
        %v871 = vld [vmem:[%s750 + $0xaa] sm:$0xff]
        %v872 = vld [vmem:[%s750 + $0xb2] sm:$0xff]
        %v873 = vld [vmem:[%s1 + $0x9] sm:$0x1]
        %v874 = vlaneseq
        %v875 = vshrl.u32 %v874, 7
        %v876 = vsub.s32 0, %v875
        %v877 = vrot.slane %v873, %v876
        %v878 = vmul.f32 %v857, %v877
        %v879 = vmul.f32 %v858, %v877
        %v880 = vmul.f32 %v859, %v877
        %v881 = vmul.f32 %v860, %v877
        %v882 = vmul.f32 %v861, %v877
        %v883 = vmul.f32 %v862, %v877
        %v884 = vmul.f32 %v863, %v877
        %v885 = vmul.f32 %v864, %v877
        %v886 = vmul.f32 %v865, %v877
        %v887 = vmul.f32 %v866, %v877
        %v888 = vmul.f32 %v867, %v877
        %v889 = vmul.f32 %v868, %v877
        %v890 = vmul.f32 %v869, %v877
        %v891 = vmul.f32 %v870, %v877
        %v892 = vmul.f32 %v871, %v877
        %v893 = vmul.f32 %v872, %v877
        %v894 = vadd.f32 %v841, %v878
        %v895 = vadd.f32 %v842, %v879
        %v896 = vadd.f32 %v843, %v880
        %v897 = vadd.f32 %v844, %v881
        %v898 = vadd.f32 %v845, %v882
        %v899 = vadd.f32 %v846, %v883
        %v900 = vadd.f32 %v847, %v884
        %v901 = vadd.f32 %v848, %v885
        %v902 = vadd.f32 %v849, %v886
        %v903 = vadd.f32 %v850, %v887
        %v904 = vadd.f32 %v851, %v888
        %v905 = vadd.f32 %v852, %v889
        %v906 = vadd.f32 %v853, %v890
        %v907 = vadd.f32 %v854, %v891
        %v908 = vadd.f32 %v855, %v892
        %v909 = vadd.f32 %v856, %v893
        %v910 = vld [vmem:[%s750 + $0x3] sm:$0xff]
        %v911 = vld [vmem:[%s750 + $0xb] sm:$0xff]
        %v912 = vld [vmem:[%s750 + $0x1b] sm:$0xff]
        %v913 = vld [vmem:[%s750 + $0x23] sm:$0xff]
        %v914 = vld [vmem:[%s750 + $0x33] sm:$0xff]
        %v915 = vld [vmem:[%s750 + $0x3b] sm:$0xff]
        %v916 = vld [vmem:[%s750 + $0x4b] sm:$0xff]
        %v917 = vld [vmem:[%s750 + $0x53] sm:$0xff]
        %v918 = vld [vmem:[%s750 + $0x63] sm:$0xff]
        %v919 = vld [vmem:[%s750 + $0x6b] sm:$0xff]
        %v920 = vld [vmem:[%s750 + $0x7b] sm:$0xff]
        %v921 = vld [vmem:[%s750 + $0x83] sm:$0xff]
        %v922 = vld [vmem:[%s750 + $0x93] sm:$0xff]
        %v923 = vld [vmem:[%s750 + $0x9b] sm:$0xff]
        %v924 = vld [vmem:[%s750 + $0xab] sm:$0xff]
        %v925 = vld [vmem:[%s750 + $0xb3] sm:$0xff]
        %v926 = vld [vmem:[%s1 + $0xa] sm:$0x1]
        %v927 = vlaneseq
        %v928 = vshrl.u32 %v927, 7
        %v929 = vsub.s32 0, %v928
        %v930 = vrot.slane %v926, %v929
        %v931 = vmul.f32 %v910, %v930
        %v932 = vmul.f32 %v911, %v930
        %v933 = vmul.f32 %v912, %v930
        %v934 = vmul.f32 %v913, %v930
        %v935 = vmul.f32 %v914, %v930
        %v936 = vmul.f32 %v915, %v930
        %v937 = vmul.f32 %v916, %v930
        %v938 = vmul.f32 %v917, %v930
        %v939 = vmul.f32 %v918, %v930
        %v940 = vmul.f32 %v919, %v930
        %v941 = vmul.f32 %v920, %v930
        %v942 = vmul.f32 %v921, %v930
        %v943 = vmul.f32 %v922, %v930
        %v944 = vmul.f32 %v923, %v930
        %v945 = vmul.f32 %v924, %v930
        %v946 = vmul.f32 %v925, %v930
        %v947 = vadd.f32 %v894, %v931
        %v948 = vadd.f32 %v895, %v932
        %v949 = vadd.f32 %v896, %v933
        %v950 = vadd.f32 %v897, %v934
        %v951 = vadd.f32 %v898, %v935
        %v952 = vadd.f32 %v899, %v936
        %v953 = vadd.f32 %v900, %v937
        %v954 = vadd.f32 %v901, %v938
        %v955 = vadd.f32 %v902, %v939
        %v956 = vadd.f32 %v903, %v940
        %v957 = vadd.f32 %v904, %v941
        %v958 = vadd.f32 %v905, %v942
        %v959 = vadd.f32 %v906, %v943
        %v960 = vadd.f32 %v907, %v944
        %v961 = vadd.f32 %v908, %v945
        %v962 = vadd.f32 %v909, %v946
        %v963 = vld [vmem:[%s750 + $0x4] sm:$0xff]
        %v964 = vld [vmem:[%s750 + $0xc] sm:$0xff]
        %v965 = vld [vmem:[%s750 + $0x1c] sm:$0xff]
        %v966 = vld [vmem:[%s750 + $0x24] sm:$0xff]
        %v967 = vld [vmem:[%s750 + $0x34] sm:$0xff]
        %v968 = vld [vmem:[%s750 + $0x3c] sm:$0xff]
        %v969 = vld [vmem:[%s750 + $0x4c] sm:$0xff]
        %v970 = vld [vmem:[%s750 + $0x54] sm:$0xff]
        %v971 = vld [vmem:[%s750 + $0x64] sm:$0xff]
        %v972 = vld [vmem:[%s750 + $0x6c] sm:$0xff]
        %v973 = vld [vmem:[%s750 + $0x7c] sm:$0xff]
        %v974 = vld [vmem:[%s750 + $0x84] sm:$0xff]
        %v975 = vld [vmem:[%s750 + $0x94] sm:$0xff]
        %v976 = vld [vmem:[%s750 + $0x9c] sm:$0xff]
        %v977 = vld [vmem:[%s750 + $0xac] sm:$0xff]
        %v978 = vld [vmem:[%s750 + $0xb4] sm:$0xff]
        %v979 = vld [vmem:[%s1 + $0xb] sm:$0x1]
        %v980 = vlaneseq
        %v981 = vshrl.u32 %v980, 7
        %v982 = vsub.s32 0, %v981
        %v983 = vrot.slane %v979, %v982
        %v984 = vmul.f32 %v963, %v983
        %v985 = vmul.f32 %v964, %v983
        %v986 = vmul.f32 %v965, %v983
        %v987 = vmul.f32 %v966, %v983
        %v988 = vmul.f32 %v967, %v983
        %v989 = vmul.f32 %v968, %v983
        %v990 = vmul.f32 %v969, %v983
        %v991 = vmul.f32 %v970, %v983
        %v992 = vmul.f32 %v971, %v983
        %v993 = vmul.f32 %v972, %v983
        %v994 = vmul.f32 %v973, %v983
        %v995 = vmul.f32 %v974, %v983
        %v996 = vmul.f32 %v975, %v983
        %v997 = vmul.f32 %v976, %v983
        %v998 = vmul.f32 %v977, %v983
        %v999 = vmul.f32 %v978, %v983
        %v1000 = vadd.f32 %v947, %v984
        %v1001 = vadd.f32 %v948, %v985
        %v1002 = vadd.f32 %v949, %v986
        %v1003 = vadd.f32 %v950, %v987
        %v1004 = vadd.f32 %v951, %v988
        %v1005 = vadd.f32 %v952, %v989
        %v1006 = vadd.f32 %v953, %v990
        %v1007 = vadd.f32 %v954, %v991
        %v1008 = vadd.f32 %v955, %v992
        %v1009 = vadd.f32 %v956, %v993
        %v1010 = vadd.f32 %v957, %v994
        %v1011 = vadd.f32 %v958, %v995
        %v1012 = vadd.f32 %v959, %v996
        %v1013 = vadd.f32 %v960, %v997
        %v1014 = vadd.f32 %v961, %v998
        %v1015 = vadd.f32 %v962, %v999
        %v1016 = vld [vmem:[%s750 + $0x5] sm:$0xff]
        %v1017 = vld [vmem:[%s750 + $0xd] sm:$0xff]
        %v1018 = vld [vmem:[%s750 + $0x1d] sm:$0xff]
        %v1019 = vld [vmem:[%s750 + $0x25] sm:$0xff]
        %v1020 = vld [vmem:[%s750 + $0x35] sm:$0xff]
        %v1021 = vld [vmem:[%s750 + $0x3d] sm:$0xff]
        %v1022 = vld [vmem:[%s750 + $0x4d] sm:$0xff]
        %v1023 = vld [vmem:[%s750 + $0x55] sm:$0xff]
        %v1024 = vld [vmem:[%s750 + $0x65] sm:$0xff]
        %v1025 = vld [vmem:[%s750 + $0x6d] sm:$0xff]
        %v1026 = vld [vmem:[%s750 + $0x7d] sm:$0xff]
        %v1027 = vld [vmem:[%s750 + $0x85] sm:$0xff]
        %v1028 = vld [vmem:[%s750 + $0x95] sm:$0xff]
        %v1029 = vld [vmem:[%s750 + $0x9d] sm:$0xff]
        %v1030 = vld [vmem:[%s750 + $0xad] sm:$0xff]
        %v1031 = vld [vmem:[%s750 + $0xb5] sm:$0xff]
        %v1032 = vld [vmem:[%s1 + $0xc] sm:$0x1]
        %v1033 = vlaneseq
        %v1034 = vshrl.u32 %v1033, 7
        %v1035 = vsub.s32 0, %v1034
        %v1036 = vrot.slane %v1032, %v1035
        %v1037 = vmul.f32 %v1016, %v1036
        %v1038 = vmul.f32 %v1017, %v1036
        %v1039 = vmul.f32 %v1018, %v1036
        %v1040 = vmul.f32 %v1019, %v1036
        %v1041 = vmul.f32 %v1020, %v1036
        %v1042 = vmul.f32 %v1021, %v1036
        %v1043 = vmul.f32 %v1022, %v1036
        %v1044 = vmul.f32 %v1023, %v1036
        %v1045 = vmul.f32 %v1024, %v1036
        %v1046 = vmul.f32 %v1025, %v1036
        %v1047 = vmul.f32 %v1026, %v1036
        %v1048 = vmul.f32 %v1027, %v1036
        %v1049 = vmul.f32 %v1028, %v1036
        %v1050 = vmul.f32 %v1029, %v1036
        %v1051 = vmul.f32 %v1030, %v1036
        %v1052 = vmul.f32 %v1031, %v1036
        %v1053 = vadd.f32 %v1000, %v1037
        %v1054 = vadd.f32 %v1001, %v1038
        %v1055 = vadd.f32 %v1002, %v1039
        %v1056 = vadd.f32 %v1003, %v1040
        %v1057 = vadd.f32 %v1004, %v1041
        %v1058 = vadd.f32 %v1005, %v1042
        %v1059 = vadd.f32 %v1006, %v1043
        %v1060 = vadd.f32 %v1007, %v1044
        %v1061 = vadd.f32 %v1008, %v1045
        %v1062 = vadd.f32 %v1009, %v1046
        %v1063 = vadd.f32 %v1010, %v1047
        %v1064 = vadd.f32 %v1011, %v1048
        %v1065 = vadd.f32 %v1012, %v1049
        %v1066 = vadd.f32 %v1013, %v1050
        %v1067 = vadd.f32 %v1014, %v1051
        %v1068 = vadd.f32 %v1015, %v1052
        %v1069 = vld [vmem:[%s750 + $0x6] sm:$0xff]
        %v1070 = vld [vmem:[%s750 + $0xe] sm:$0xff]
        %v1071 = vld [vmem:[%s750 + $0x1e] sm:$0xff]
        %v1072 = vld [vmem:[%s750 + $0x26] sm:$0xff]
        %v1073 = vld [vmem:[%s750 + $0x36] sm:$0xff]
        %v1074 = vld [vmem:[%s750 + $0x3e] sm:$0xff]
        %v1075 = vld [vmem:[%s750 + $0x4e] sm:$0xff]
        %v1076 = vld [vmem:[%s750 + $0x56] sm:$0xff]
        %v1077 = vld [vmem:[%s750 + $0x66] sm:$0xff]
        %v1078 = vld [vmem:[%s750 + $0x6e] sm:$0xff]
        %v1079 = vld [vmem:[%s750 + $0x7e] sm:$0xff]
        %v1080 = vld [vmem:[%s750 + $0x86] sm:$0xff]
        %v1081 = vld [vmem:[%s750 + $0x96] sm:$0xff]
        %v1082 = vld [vmem:[%s750 + $0x9e] sm:$0xff]
        %v1083 = vld [vmem:[%s750 + $0xae] sm:$0xff]
        %v1084 = vld [vmem:[%s750 + $0xb6] sm:$0xff]
        %v1085 = vld [vmem:[%s1 + $0xd] sm:$0x1]
        %v1086 = vlaneseq
        %v1087 = vshrl.u32 %v1086, 7
        %v1088 = vsub.s32 0, %v1087
        %v1089 = vrot.slane %v1085, %v1088
        %v1090 = vmul.f32 %v1069, %v1089
        %v1091 = vmul.f32 %v1070, %v1089
        %v1092 = vmul.f32 %v1071, %v1089
        %v1093 = vmul.f32 %v1072, %v1089
        %v1094 = vmul.f32 %v1073, %v1089
        %v1095 = vmul.f32 %v1074, %v1089
        %v1096 = vmul.f32 %v1075, %v1089
        %v1097 = vmul.f32 %v1076, %v1089
        %v1098 = vmul.f32 %v1077, %v1089
        %v1099 = vmul.f32 %v1078, %v1089
        %v1100 = vmul.f32 %v1079, %v1089
        %v1101 = vmul.f32 %v1080, %v1089
        %v1102 = vmul.f32 %v1081, %v1089
        %v1103 = vmul.f32 %v1082, %v1089
        %v1104 = vmul.f32 %v1083, %v1089
        %v1105 = vmul.f32 %v1084, %v1089
        %v1106 = vadd.f32 %v1053, %v1090
        %v1107 = vadd.f32 %v1054, %v1091
        %v1108 = vadd.f32 %v1055, %v1092
        %v1109 = vadd.f32 %v1056, %v1093
        %v1110 = vadd.f32 %v1057, %v1094
        %v1111 = vadd.f32 %v1058, %v1095
        %v1112 = vadd.f32 %v1059, %v1096
        %v1113 = vadd.f32 %v1060, %v1097
        %v1114 = vadd.f32 %v1061, %v1098
        %v1115 = vadd.f32 %v1062, %v1099
        %v1116 = vadd.f32 %v1063, %v1100
        %v1117 = vadd.f32 %v1064, %v1101
        %v1118 = vadd.f32 %v1065, %v1102
        %v1119 = vadd.f32 %v1066, %v1103
        %v1120 = vadd.f32 %v1067, %v1104
        %v1121 = vadd.f32 %v1068, %v1105
        %s1122 = sadd.s32 %s374, 2
        %s1123 = smul.u32 %s1122, 24
        %s1124 = scalar_lea.vmem %s371, %s1123
        %v1125 = vld [vmem:[%s1124] sm:$0xff]
        %v1126 = vld [vmem:[%s1124 + $0x8] sm:$0xff]
        %v1127 = vld [vmem:[%s1124 + $0x18] sm:$0xff]
        %v1128 = vld [vmem:[%s1124 + $0x20] sm:$0xff]
        %v1129 = vld [vmem:[%s1124 + $0x30] sm:$0xff]
        %v1130 = vld [vmem:[%s1124 + $0x38] sm:$0xff]
        %v1131 = vld [vmem:[%s1124 + $0x48] sm:$0xff]
        %v1132 = vld [vmem:[%s1124 + $0x50] sm:$0xff]
        %v1133 = vld [vmem:[%s1124 + $0x60] sm:$0xff]
        %v1134 = vld [vmem:[%s1124 + $0x68] sm:$0xff]
        %v1135 = vld [vmem:[%s1124 + $0x78] sm:$0xff]
        %v1136 = vld [vmem:[%s1124 + $0x80] sm:$0xff]
        %v1137 = vld [vmem:[%s1124 + $0x90] sm:$0xff]
        %v1138 = vld [vmem:[%s1124 + $0x98] sm:$0xff]
        %v1139 = vld [vmem:[%s1124 + $0xa8] sm:$0xff]
        %v1140 = vld [vmem:[%s1124 + $0xb0] sm:$0xff]
        %v1141 = vld [vmem:[%s1 + $0xe] sm:$0x1]
        %v1142 = vlaneseq
        %v1143 = vshrl.u32 %v1142, 7
        %v1144 = vsub.s32 0, %v1143
        %v1145 = vrot.slane %v1141, %v1144
        %v1146 = vmul.f32 %v1125, %v1145
        %v1147 = vmul.f32 %v1126, %v1145
        %v1148 = vmul.f32 %v1127, %v1145
        %v1149 = vmul.f32 %v1128, %v1145
        %v1150 = vmul.f32 %v1129, %v1145
        %v1151 = vmul.f32 %v1130, %v1145
        %v1152 = vmul.f32 %v1131, %v1145
        %v1153 = vmul.f32 %v1132, %v1145
        %v1154 = vmul.f32 %v1133, %v1145
        %v1155 = vmul.f32 %v1134, %v1145
        %v1156 = vmul.f32 %v1135, %v1145
        %v1157 = vmul.f32 %v1136, %v1145
        %v1158 = vmul.f32 %v1137, %v1145
        %v1159 = vmul.f32 %v1138, %v1145
        %v1160 = vmul.f32 %v1139, %v1145
        %v1161 = vmul.f32 %v1140, %v1145
        %v1162 = vadd.f32 %v1106, %v1146
        %v1163 = vadd.f32 %v1107, %v1147
        %v1164 = vadd.f32 %v1108, %v1148
        %v1165 = vadd.f32 %v1109, %v1149
        %v1166 = vadd.f32 %v1110, %v1150
        %v1167 = vadd.f32 %v1111, %v1151
        %v1168 = vadd.f32 %v1112, %v1152
        %v1169 = vadd.f32 %v1113, %v1153
        %v1170 = vadd.f32 %v1114, %v1154
        %v1171 = vadd.f32 %v1115, %v1155
        %v1172 = vadd.f32 %v1116, %v1156
        %v1173 = vadd.f32 %v1117, %v1157
        %v1174 = vadd.f32 %v1118, %v1158
        %v1175 = vadd.f32 %v1119, %v1159
        %v1176 = vadd.f32 %v1120, %v1160
        %v1177 = vadd.f32 %v1121, %v1161
        %v1178 = vld [vmem:[%s1124 + $0x1] sm:$0xff]
        %v1179 = vld [vmem:[%s1124 + $0x9] sm:$0xff]
        %v1180 = vld [vmem:[%s1124 + $0x19] sm:$0xff]
        %v1181 = vld [vmem:[%s1124 + $0x21] sm:$0xff]
        %v1182 = vld [vmem:[%s1124 + $0x31] sm:$0xff]
        %v1183 = vld [vmem:[%s1124 + $0x39] sm:$0xff]
        %v1184 = vld [vmem:[%s1124 + $0x49] sm:$0xff]
        %v1185 = vld [vmem:[%s1124 + $0x51] sm:$0xff]
        %v1186 = vld [vmem:[%s1124 + $0x61] sm:$0xff]
        %v1187 = vld [vmem:[%s1124 + $0x69] sm:$0xff]
        %v1188 = vld [vmem:[%s1124 + $0x79] sm:$0xff]
        %v1189 = vld [vmem:[%s1124 + $0x81] sm:$0xff]
        %v1190 = vld [vmem:[%s1124 + $0x91] sm:$0xff]
        %v1191 = vld [vmem:[%s1124 + $0x99] sm:$0xff]
        %v1192 = vld [vmem:[%s1124 + $0xa9] sm:$0xff]
        %v1193 = vld [vmem:[%s1124 + $0xb1] sm:$0xff]
        %v1194 = vld [vmem:[%s1 + $0xf] sm:$0x1]
        %v1195 = vlaneseq
        %v1196 = vshrl.u32 %v1195, 7
        %v1197 = vsub.s32 0, %v1196
        %v1198 = vrot.slane %v1194, %v1197
        %v1199 = vmul.f32 %v1178, %v1198
        %v1200 = vmul.f32 %v1179, %v1198
        %v1201 = vmul.f32 %v1180, %v1198
        %v1202 = vmul.f32 %v1181, %v1198
        %v1203 = vmul.f32 %v1182, %v1198
        %v1204 = vmul.f32 %v1183, %v1198
        %v1205 = vmul.f32 %v1184, %v1198
        %v1206 = vmul.f32 %v1185, %v1198
        %v1207 = vmul.f32 %v1186, %v1198
        %v1208 = vmul.f32 %v1187, %v1198
        %v1209 = vmul.f32 %v1188, %v1198
        %v1210 = vmul.f32 %v1189, %v1198
        %v1211 = vmul.f32 %v1190, %v1198
        %v1212 = vmul.f32 %v1191, %v1198
        %v1213 = vmul.f32 %v1192, %v1198
        %v1214 = vmul.f32 %v1193, %v1198
        %v1215 = vadd.f32 %v1162, %v1199
        %v1216 = vadd.f32 %v1163, %v1200
        %v1217 = vadd.f32 %v1164, %v1201
        %v1218 = vadd.f32 %v1165, %v1202
        %v1219 = vadd.f32 %v1166, %v1203
        %v1220 = vadd.f32 %v1167, %v1204
        %v1221 = vadd.f32 %v1168, %v1205
        %v1222 = vadd.f32 %v1169, %v1206
        %v1223 = vadd.f32 %v1170, %v1207
        %v1224 = vadd.f32 %v1171, %v1208
        %v1225 = vadd.f32 %v1172, %v1209
        %v1226 = vadd.f32 %v1173, %v1210
        %v1227 = vadd.f32 %v1174, %v1211
        %v1228 = vadd.f32 %v1175, %v1212
        %v1229 = vadd.f32 %v1176, %v1213
        %v1230 = vadd.f32 %v1177, %v1214
        %v1231 = vld [vmem:[%s1124 + $0x2] sm:$0xff]
        %v1232 = vld [vmem:[%s1124 + $0xa] sm:$0xff]
        %v1233 = vld [vmem:[%s1124 + $0x1a] sm:$0xff]
        %v1234 = vld [vmem:[%s1124 + $0x22] sm:$0xff]
        %v1235 = vld [vmem:[%s1124 + $0x32] sm:$0xff]
        %v1236 = vld [vmem:[%s1124 + $0x3a] sm:$0xff]
        %v1237 = vld [vmem:[%s1124 + $0x4a] sm:$0xff]
        %v1238 = vld [vmem:[%s1124 + $0x52] sm:$0xff]
        %v1239 = vld [vmem:[%s1124 + $0x62] sm:$0xff]
        %v1240 = vld [vmem:[%s1124 + $0x6a] sm:$0xff]
        %v1241 = vld [vmem:[%s1124 + $0x7a] sm:$0xff]
        %v1242 = vld [vmem:[%s1124 + $0x82] sm:$0xff]
        %v1243 = vld [vmem:[%s1124 + $0x92] sm:$0xff]
        %v1244 = vld [vmem:[%s1124 + $0x9a] sm:$0xff]
        %v1245 = vld [vmem:[%s1124 + $0xaa] sm:$0xff]
        %v1246 = vld [vmem:[%s1124 + $0xb2] sm:$0xff]
        %v1247 = vld [vmem:[%s1 + $0x10] sm:$0x1]
        %v1248 = vlaneseq
        %v1249 = vshrl.u32 %v1248, 7
        %v1250 = vsub.s32 0, %v1249
        %v1251 = vrot.slane %v1247, %v1250
        %v1252 = vmul.f32 %v1231, %v1251
        %v1253 = vmul.f32 %v1232, %v1251
        %v1254 = vmul.f32 %v1233, %v1251
        %v1255 = vmul.f32 %v1234, %v1251
        %v1256 = vmul.f32 %v1235, %v1251
        %v1257 = vmul.f32 %v1236, %v1251
        %v1258 = vmul.f32 %v1237, %v1251
        %v1259 = vmul.f32 %v1238, %v1251
        %v1260 = vmul.f32 %v1239, %v1251
        %v1261 = vmul.f32 %v1240, %v1251
        %v1262 = vmul.f32 %v1241, %v1251
        %v1263 = vmul.f32 %v1242, %v1251
        %v1264 = vmul.f32 %v1243, %v1251
        %v1265 = vmul.f32 %v1244, %v1251
        %v1266 = vmul.f32 %v1245, %v1251
        %v1267 = vmul.f32 %v1246, %v1251
        %v1268 = vadd.f32 %v1215, %v1252
        %v1269 = vadd.f32 %v1216, %v1253
        %v1270 = vadd.f32 %v1217, %v1254
        %v1271 = vadd.f32 %v1218, %v1255
        %v1272 = vadd.f32 %v1219, %v1256
        %v1273 = vadd.f32 %v1220, %v1257
        %v1274 = vadd.f32 %v1221, %v1258
        %v1275 = vadd.f32 %v1222, %v1259
        %v1276 = vadd.f32 %v1223, %v1260
        %v1277 = vadd.f32 %v1224, %v1261
        %v1278 = vadd.f32 %v1225, %v1262
        %v1279 = vadd.f32 %v1226, %v1263
        %v1280 = vadd.f32 %v1227, %v1264
        %v1281 = vadd.f32 %v1228, %v1265
        %v1282 = vadd.f32 %v1229, %v1266
        %v1283 = vadd.f32 %v1230, %v1267
        %v1284 = vld [vmem:[%s1124 + $0x3] sm:$0xff]
        %v1285 = vld [vmem:[%s1124 + $0xb] sm:$0xff]
        %v1286 = vld [vmem:[%s1124 + $0x1b] sm:$0xff]
        %v1287 = vld [vmem:[%s1124 + $0x23] sm:$0xff]
        %v1288 = vld [vmem:[%s1124 + $0x33] sm:$0xff]
        %v1289 = vld [vmem:[%s1124 + $0x3b] sm:$0xff]
        %v1290 = vld [vmem:[%s1124 + $0x4b] sm:$0xff]
        %v1291 = vld [vmem:[%s1124 + $0x53] sm:$0xff]
        %v1292 = vld [vmem:[%s1124 + $0x63] sm:$0xff]
        %v1293 = vld [vmem:[%s1124 + $0x6b] sm:$0xff]
        %v1294 = vld [vmem:[%s1124 + $0x7b] sm:$0xff]
        %v1295 = vld [vmem:[%s1124 + $0x83] sm:$0xff]
        %v1296 = vld [vmem:[%s1124 + $0x93] sm:$0xff]
        %v1297 = vld [vmem:[%s1124 + $0x9b] sm:$0xff]
        %v1298 = vld [vmem:[%s1124 + $0xab] sm:$0xff]
        %v1299 = vld [vmem:[%s1124 + $0xb3] sm:$0xff]
        %v1300 = vld [vmem:[%s1 + $0x11] sm:$0x1]
        %v1301 = vlaneseq
        %v1302 = vshrl.u32 %v1301, 7
        %v1303 = vsub.s32 0, %v1302
        %v1304 = vrot.slane %v1300, %v1303
        %v1305 = vmul.f32 %v1284, %v1304
        %v1306 = vmul.f32 %v1285, %v1304
        %v1307 = vmul.f32 %v1286, %v1304
        %v1308 = vmul.f32 %v1287, %v1304
        %v1309 = vmul.f32 %v1288, %v1304
        %v1310 = vmul.f32 %v1289, %v1304
        %v1311 = vmul.f32 %v1290, %v1304
        %v1312 = vmul.f32 %v1291, %v1304
        %v1313 = vmul.f32 %v1292, %v1304
        %v1314 = vmul.f32 %v1293, %v1304
        %v1315 = vmul.f32 %v1294, %v1304
        %v1316 = vmul.f32 %v1295, %v1304
        %v1317 = vmul.f32 %v1296, %v1304
        %v1318 = vmul.f32 %v1297, %v1304
        %v1319 = vmul.f32 %v1298, %v1304
        %v1320 = vmul.f32 %v1299, %v1304
        %v1321 = vadd.f32 %v1268, %v1305
        %v1322 = vadd.f32 %v1269, %v1306
        %v1323 = vadd.f32 %v1270, %v1307
        %v1324 = vadd.f32 %v1271, %v1308
        %v1325 = vadd.f32 %v1272, %v1309
        %v1326 = vadd.f32 %v1273, %v1310
        %v1327 = vadd.f32 %v1274, %v1311
        %v1328 = vadd.f32 %v1275, %v1312
        %v1329 = vadd.f32 %v1276, %v1313
        %v1330 = vadd.f32 %v1277, %v1314
        %v1331 = vadd.f32 %v1278, %v1315
        %v1332 = vadd.f32 %v1279, %v1316
        %v1333 = vadd.f32 %v1280, %v1317
        %v1334 = vadd.f32 %v1281, %v1318
        %v1335 = vadd.f32 %v1282, %v1319
        %v1336 = vadd.f32 %v1283, %v1320
        %v1337 = vld [vmem:[%s1124 + $0x4] sm:$0xff]
        %v1338 = vld [vmem:[%s1124 + $0xc] sm:$0xff]
        %v1339 = vld [vmem:[%s1124 + $0x1c] sm:$0xff]
        %v1340 = vld [vmem:[%s1124 + $0x24] sm:$0xff]
        %v1341 = vld [vmem:[%s1124 + $0x34] sm:$0xff]
        %v1342 = vld [vmem:[%s1124 + $0x3c] sm:$0xff]
        %v1343 = vld [vmem:[%s1124 + $0x4c] sm:$0xff]
        %v1344 = vld [vmem:[%s1124 + $0x54] sm:$0xff]
        %v1345 = vld [vmem:[%s1124 + $0x64] sm:$0xff]
        %v1346 = vld [vmem:[%s1124 + $0x6c] sm:$0xff]
        %v1347 = vld [vmem:[%s1124 + $0x7c] sm:$0xff]
        %v1348 = vld [vmem:[%s1124 + $0x84] sm:$0xff]
        %v1349 = vld [vmem:[%s1124 + $0x94] sm:$0xff]
        %v1350 = vld [vmem:[%s1124 + $0x9c] sm:$0xff]
        %v1351 = vld [vmem:[%s1124 + $0xac] sm:$0xff]
        %v1352 = vld [vmem:[%s1124 + $0xb4] sm:$0xff]
        %v1353 = vld [vmem:[%s1 + $0x12] sm:$0x1]
        %v1354 = vlaneseq
        %v1355 = vshrl.u32 %v1354, 7
        %v1356 = vsub.s32 0, %v1355
        %v1357 = vrot.slane %v1353, %v1356
        %v1358 = vmul.f32 %v1337, %v1357
        %v1359 = vmul.f32 %v1338, %v1357
        %v1360 = vmul.f32 %v1339, %v1357
        %v1361 = vmul.f32 %v1340, %v1357
        %v1362 = vmul.f32 %v1341, %v1357
        %v1363 = vmul.f32 %v1342, %v1357
        %v1364 = vmul.f32 %v1343, %v1357
        %v1365 = vmul.f32 %v1344, %v1357
        %v1366 = vmul.f32 %v1345, %v1357
        %v1367 = vmul.f32 %v1346, %v1357
        %v1368 = vmul.f32 %v1347, %v1357
        %v1369 = vmul.f32 %v1348, %v1357
        %v1370 = vmul.f32 %v1349, %v1357
        %v1371 = vmul.f32 %v1350, %v1357
        %v1372 = vmul.f32 %v1351, %v1357
        %v1373 = vmul.f32 %v1352, %v1357
        %v1374 = vadd.f32 %v1321, %v1358
        %v1375 = vadd.f32 %v1322, %v1359
        %v1376 = vadd.f32 %v1323, %v1360
        %v1377 = vadd.f32 %v1324, %v1361
        %v1378 = vadd.f32 %v1325, %v1362
        %v1379 = vadd.f32 %v1326, %v1363
        %v1380 = vadd.f32 %v1327, %v1364
        %v1381 = vadd.f32 %v1328, %v1365
        %v1382 = vadd.f32 %v1329, %v1366
        %v1383 = vadd.f32 %v1330, %v1367
        %v1384 = vadd.f32 %v1331, %v1368
        %v1385 = vadd.f32 %v1332, %v1369
        %v1386 = vadd.f32 %v1333, %v1370
        %v1387 = vadd.f32 %v1334, %v1371
        %v1388 = vadd.f32 %v1335, %v1372
        %v1389 = vadd.f32 %v1336, %v1373
        %v1390 = vld [vmem:[%s1124 + $0x5] sm:$0xff]
        %v1391 = vld [vmem:[%s1124 + $0xd] sm:$0xff]
        %v1392 = vld [vmem:[%s1124 + $0x1d] sm:$0xff]
        %v1393 = vld [vmem:[%s1124 + $0x25] sm:$0xff]
        %v1394 = vld [vmem:[%s1124 + $0x35] sm:$0xff]
        %v1395 = vld [vmem:[%s1124 + $0x3d] sm:$0xff]
        %v1396 = vld [vmem:[%s1124 + $0x4d] sm:$0xff]
        %v1397 = vld [vmem:[%s1124 + $0x55] sm:$0xff]
        %v1398 = vld [vmem:[%s1124 + $0x65] sm:$0xff]
        %v1399 = vld [vmem:[%s1124 + $0x6d] sm:$0xff]
        %v1400 = vld [vmem:[%s1124 + $0x7d] sm:$0xff]
        %v1401 = vld [vmem:[%s1124 + $0x85] sm:$0xff]
        %v1402 = vld [vmem:[%s1124 + $0x95] sm:$0xff]
        %v1403 = vld [vmem:[%s1124 + $0x9d] sm:$0xff]
        %v1404 = vld [vmem:[%s1124 + $0xad] sm:$0xff]
        %v1405 = vld [vmem:[%s1124 + $0xb5] sm:$0xff]
        %v1406 = vld [vmem:[%s1 + $0x13] sm:$0x1]
        %v1407 = vlaneseq
        %v1408 = vshrl.u32 %v1407, 7
        %v1409 = vsub.s32 0, %v1408
        %v1410 = vrot.slane %v1406, %v1409
        %v1411 = vmul.f32 %v1390, %v1410
        %v1412 = vmul.f32 %v1391, %v1410
        %v1413 = vmul.f32 %v1392, %v1410
        %v1414 = vmul.f32 %v1393, %v1410
        %v1415 = vmul.f32 %v1394, %v1410
        %v1416 = vmul.f32 %v1395, %v1410
        %v1417 = vmul.f32 %v1396, %v1410
        %v1418 = vmul.f32 %v1397, %v1410
        %v1419 = vmul.f32 %v1398, %v1410
        %v1420 = vmul.f32 %v1399, %v1410
        %v1421 = vmul.f32 %v1400, %v1410
        %v1422 = vmul.f32 %v1401, %v1410
        %v1423 = vmul.f32 %v1402, %v1410
        %v1424 = vmul.f32 %v1403, %v1410
        %v1425 = vmul.f32 %v1404, %v1410
        %v1426 = vmul.f32 %v1405, %v1410
        %v1427 = vadd.f32 %v1374, %v1411
        %v1428 = vadd.f32 %v1375, %v1412
        %v1429 = vadd.f32 %v1376, %v1413
        %v1430 = vadd.f32 %v1377, %v1414
        %v1431 = vadd.f32 %v1378, %v1415
        %v1432 = vadd.f32 %v1379, %v1416
        %v1433 = vadd.f32 %v1380, %v1417
        %v1434 = vadd.f32 %v1381, %v1418
        %v1435 = vadd.f32 %v1382, %v1419
        %v1436 = vadd.f32 %v1383, %v1420
        %v1437 = vadd.f32 %v1384, %v1421
        %v1438 = vadd.f32 %v1385, %v1422
        %v1439 = vadd.f32 %v1386, %v1423
        %v1440 = vadd.f32 %v1387, %v1424
        %v1441 = vadd.f32 %v1388, %v1425
        %v1442 = vadd.f32 %v1389, %v1426
        %v1443 = vld [vmem:[%s1124 + $0x6] sm:$0xff]
        %v1444 = vld [vmem:[%s1124 + $0xe] sm:$0xff]
        %v1445 = vld [vmem:[%s1124 + $0x1e] sm:$0xff]
        %v1446 = vld [vmem:[%s1124 + $0x26] sm:$0xff]
        %v1447 = vld [vmem:[%s1124 + $0x36] sm:$0xff]
        %v1448 = vld [vmem:[%s1124 + $0x3e] sm:$0xff]
        %v1449 = vld [vmem:[%s1124 + $0x4e] sm:$0xff]
        %v1450 = vld [vmem:[%s1124 + $0x56] sm:$0xff]
        %v1451 = vld [vmem:[%s1124 + $0x66] sm:$0xff]
        %v1452 = vld [vmem:[%s1124 + $0x6e] sm:$0xff]
        %v1453 = vld [vmem:[%s1124 + $0x7e] sm:$0xff]
        %v1454 = vld [vmem:[%s1124 + $0x86] sm:$0xff]
        %v1455 = vld [vmem:[%s1124 + $0x96] sm:$0xff]
        %v1456 = vld [vmem:[%s1124 + $0x9e] sm:$0xff]
        %v1457 = vld [vmem:[%s1124 + $0xae] sm:$0xff]
        %v1458 = vld [vmem:[%s1124 + $0xb6] sm:$0xff]
        %v1459 = vld [vmem:[%s1 + $0x14] sm:$0x1]
        %v1460 = vlaneseq
        %v1461 = vshrl.u32 %v1460, 7
        %v1462 = vsub.s32 0, %v1461
        %v1463 = vrot.slane %v1459, %v1462
        %v1464 = vmul.f32 %v1443, %v1463
        %v1465 = vmul.f32 %v1444, %v1463
        %v1466 = vmul.f32 %v1445, %v1463
        %v1467 = vmul.f32 %v1446, %v1463
        %v1468 = vmul.f32 %v1447, %v1463
        %v1469 = vmul.f32 %v1448, %v1463
        %v1470 = vmul.f32 %v1449, %v1463
        %v1471 = vmul.f32 %v1450, %v1463
        %v1472 = vmul.f32 %v1451, %v1463
        %v1473 = vmul.f32 %v1452, %v1463
        %v1474 = vmul.f32 %v1453, %v1463
        %v1475 = vmul.f32 %v1454, %v1463
        %v1476 = vmul.f32 %v1455, %v1463
        %v1477 = vmul.f32 %v1456, %v1463
        %v1478 = vmul.f32 %v1457, %v1463
        %v1479 = vmul.f32 %v1458, %v1463
        %v1480 = vadd.f32 %v1427, %v1464
        %v1481 = vadd.f32 %v1428, %v1465
        %v1482 = vadd.f32 %v1429, %v1466
        %v1483 = vadd.f32 %v1430, %v1467
        %v1484 = vadd.f32 %v1431, %v1468
        %v1485 = vadd.f32 %v1432, %v1469
        %v1486 = vadd.f32 %v1433, %v1470
        %v1487 = vadd.f32 %v1434, %v1471
        %v1488 = vadd.f32 %v1435, %v1472
        %v1489 = vadd.f32 %v1436, %v1473
        %v1490 = vadd.f32 %v1437, %v1474
        %v1491 = vadd.f32 %v1438, %v1475
        %v1492 = vadd.f32 %v1439, %v1476
        %v1493 = vadd.f32 %v1440, %v1477
        %v1494 = vadd.f32 %v1441, %v1478
        %v1495 = vadd.f32 %v1442, %v1479
        %s1496 = sadd.s32 %s374, 3
        %s1497 = smul.u32 %s1496, 24
        %s1498 = scalar_lea.vmem %s371, %s1497
        %v1499 = vld [vmem:[%s1498] sm:$0xff]
        %v1500 = vld [vmem:[%s1498 + $0x8] sm:$0xff]
        %v1501 = vld [vmem:[%s1498 + $0x18] sm:$0xff]
        %v1502 = vld [vmem:[%s1498 + $0x20] sm:$0xff]
        %v1503 = vld [vmem:[%s1498 + $0x30] sm:$0xff]
        %v1504 = vld [vmem:[%s1498 + $0x38] sm:$0xff]
        %v1505 = vld [vmem:[%s1498 + $0x48] sm:$0xff]
        %v1506 = vld [vmem:[%s1498 + $0x50] sm:$0xff]
        %v1507 = vld [vmem:[%s1498 + $0x60] sm:$0xff]
        %v1508 = vld [vmem:[%s1498 + $0x68] sm:$0xff]
        %v1509 = vld [vmem:[%s1498 + $0x78] sm:$0xff]
        %v1510 = vld [vmem:[%s1498 + $0x80] sm:$0xff]
        %v1511 = vld [vmem:[%s1498 + $0x90] sm:$0xff]
        %v1512 = vld [vmem:[%s1498 + $0x98] sm:$0xff]
        %v1513 = vld [vmem:[%s1498 + $0xa8] sm:$0xff]
        %v1514 = vld [vmem:[%s1498 + $0xb0] sm:$0xff]
        %v1515 = vld [vmem:[%s1 + $0x15] sm:$0x1]
        %v1516 = vlaneseq
        %v1517 = vshrl.u32 %v1516, 7
        %v1518 = vsub.s32 0, %v1517
        %v1519 = vrot.slane %v1515, %v1518
        %v1520 = vmul.f32 %v1499, %v1519
        %v1521 = vmul.f32 %v1500, %v1519
        %v1522 = vmul.f32 %v1501, %v1519
        %v1523 = vmul.f32 %v1502, %v1519
        %v1524 = vmul.f32 %v1503, %v1519
        %v1525 = vmul.f32 %v1504, %v1519
        %v1526 = vmul.f32 %v1505, %v1519
        %v1527 = vmul.f32 %v1506, %v1519
        %v1528 = vmul.f32 %v1507, %v1519
        %v1529 = vmul.f32 %v1508, %v1519
        %v1530 = vmul.f32 %v1509, %v1519
        %v1531 = vmul.f32 %v1510, %v1519
        %v1532 = vmul.f32 %v1511, %v1519
        %v1533 = vmul.f32 %v1512, %v1519
        %v1534 = vmul.f32 %v1513, %v1519
        %v1535 = vmul.f32 %v1514, %v1519
        %v1536 = vadd.f32 %v1480, %v1520
        %v1537 = vadd.f32 %v1481, %v1521
        %v1538 = vadd.f32 %v1482, %v1522
        %v1539 = vadd.f32 %v1483, %v1523
        %v1540 = vadd.f32 %v1484, %v1524
        %v1541 = vadd.f32 %v1485, %v1525
        %v1542 = vadd.f32 %v1486, %v1526
        %v1543 = vadd.f32 %v1487, %v1527
        %v1544 = vadd.f32 %v1488, %v1528
        %v1545 = vadd.f32 %v1489, %v1529
        %v1546 = vadd.f32 %v1490, %v1530
        %v1547 = vadd.f32 %v1491, %v1531
        %v1548 = vadd.f32 %v1492, %v1532
        %v1549 = vadd.f32 %v1493, %v1533
        %v1550 = vadd.f32 %v1494, %v1534
        %v1551 = vadd.f32 %v1495, %v1535
        %v1552 = vld [vmem:[%s1498 + $0x1] sm:$0xff]
        %v1553 = vld [vmem:[%s1498 + $0x9] sm:$0xff]
        %v1554 = vld [vmem:[%s1498 + $0x19] sm:$0xff]
        %v1555 = vld [vmem:[%s1498 + $0x21] sm:$0xff]
        %v1556 = vld [vmem:[%s1498 + $0x31] sm:$0xff]
        %v1557 = vld [vmem:[%s1498 + $0x39] sm:$0xff]
        %v1558 = vld [vmem:[%s1498 + $0x49] sm:$0xff]
        %v1559 = vld [vmem:[%s1498 + $0x51] sm:$0xff]
        %v1560 = vld [vmem:[%s1498 + $0x61] sm:$0xff]
        %v1561 = vld [vmem:[%s1498 + $0x69] sm:$0xff]
        %v1562 = vld [vmem:[%s1498 + $0x79] sm:$0xff]
        %v1563 = vld [vmem:[%s1498 + $0x81] sm:$0xff]
        %v1564 = vld [vmem:[%s1498 + $0x91] sm:$0xff]
        %v1565 = vld [vmem:[%s1498 + $0x99] sm:$0xff]
        %v1566 = vld [vmem:[%s1498 + $0xa9] sm:$0xff]
        %v1567 = vld [vmem:[%s1498 + $0xb1] sm:$0xff]
        %v1568 = vld [vmem:[%s1 + $0x16] sm:$0x1]
        %v1569 = vlaneseq
        %v1570 = vshrl.u32 %v1569, 7
        %v1571 = vsub.s32 0, %v1570
        %v1572 = vrot.slane %v1568, %v1571
        %v1573 = vmul.f32 %v1552, %v1572
        %v1574 = vmul.f32 %v1553, %v1572
        %v1575 = vmul.f32 %v1554, %v1572
        %v1576 = vmul.f32 %v1555, %v1572
        %v1577 = vmul.f32 %v1556, %v1572
        %v1578 = vmul.f32 %v1557, %v1572
        %v1579 = vmul.f32 %v1558, %v1572
        %v1580 = vmul.f32 %v1559, %v1572
        %v1581 = vmul.f32 %v1560, %v1572
        %v1582 = vmul.f32 %v1561, %v1572
        %v1583 = vmul.f32 %v1562, %v1572
        %v1584 = vmul.f32 %v1563, %v1572
        %v1585 = vmul.f32 %v1564, %v1572
        %v1586 = vmul.f32 %v1565, %v1572
        %v1587 = vmul.f32 %v1566, %v1572
        %v1588 = vmul.f32 %v1567, %v1572
        %v1589 = vadd.f32 %v1536, %v1573
        %v1590 = vadd.f32 %v1537, %v1574
        %v1591 = vadd.f32 %v1538, %v1575
        %v1592 = vadd.f32 %v1539, %v1576
        %v1593 = vadd.f32 %v1540, %v1577
        %v1594 = vadd.f32 %v1541, %v1578
        %v1595 = vadd.f32 %v1542, %v1579
        %v1596 = vadd.f32 %v1543, %v1580
        %v1597 = vadd.f32 %v1544, %v1581
        %v1598 = vadd.f32 %v1545, %v1582
        %v1599 = vadd.f32 %v1546, %v1583
        %v1600 = vadd.f32 %v1547, %v1584
        %v1601 = vadd.f32 %v1548, %v1585
        %v1602 = vadd.f32 %v1549, %v1586
        %v1603 = vadd.f32 %v1550, %v1587
        %v1604 = vadd.f32 %v1551, %v1588
        %v1605 = vld [vmem:[%s1498 + $0x2] sm:$0xff]
        %v1606 = vld [vmem:[%s1498 + $0xa] sm:$0xff]
        %v1607 = vld [vmem:[%s1498 + $0x1a] sm:$0xff]
        %v1608 = vld [vmem:[%s1498 + $0x22] sm:$0xff]
        %v1609 = vld [vmem:[%s1498 + $0x32] sm:$0xff]
        %v1610 = vld [vmem:[%s1498 + $0x3a] sm:$0xff]
        %v1611 = vld [vmem:[%s1498 + $0x4a] sm:$0xff]
        %v1612 = vld [vmem:[%s1498 + $0x52] sm:$0xff]
        %v1613 = vld [vmem:[%s1498 + $0x62] sm:$0xff]
        %v1614 = vld [vmem:[%s1498 + $0x6a] sm:$0xff]
        %v1615 = vld [vmem:[%s1498 + $0x7a] sm:$0xff]
        %v1616 = vld [vmem:[%s1498 + $0x82] sm:$0xff]
        %v1617 = vld [vmem:[%s1498 + $0x92] sm:$0xff]
        %v1618 = vld [vmem:[%s1498 + $0x9a] sm:$0xff]
        %v1619 = vld [vmem:[%s1498 + $0xaa] sm:$0xff]
        %v1620 = vld [vmem:[%s1498 + $0xb2] sm:$0xff]
        %v1621 = vld [vmem:[%s1 + $0x17] sm:$0x1]
        %v1622 = vlaneseq
        %v1623 = vshrl.u32 %v1622, 7
        %v1624 = vsub.s32 0, %v1623
        %v1625 = vrot.slane %v1621, %v1624
        %v1626 = vmul.f32 %v1605, %v1625
        %v1627 = vmul.f32 %v1606, %v1625
        %v1628 = vmul.f32 %v1607, %v1625
        %v1629 = vmul.f32 %v1608, %v1625
        %v1630 = vmul.f32 %v1609, %v1625
        %v1631 = vmul.f32 %v1610, %v1625
        %v1632 = vmul.f32 %v1611, %v1625
        %v1633 = vmul.f32 %v1612, %v1625
        %v1634 = vmul.f32 %v1613, %v1625
        %v1635 = vmul.f32 %v1614, %v1625
        %v1636 = vmul.f32 %v1615, %v1625
        %v1637 = vmul.f32 %v1616, %v1625
        %v1638 = vmul.f32 %v1617, %v1625
        %v1639 = vmul.f32 %v1618, %v1625
        %v1640 = vmul.f32 %v1619, %v1625
        %v1641 = vmul.f32 %v1620, %v1625
        %v1642 = vadd.f32 %v1589, %v1626
        %v1643 = vadd.f32 %v1590, %v1627
        %v1644 = vadd.f32 %v1591, %v1628
        %v1645 = vadd.f32 %v1592, %v1629
        %v1646 = vadd.f32 %v1593, %v1630
        %v1647 = vadd.f32 %v1594, %v1631
        %v1648 = vadd.f32 %v1595, %v1632
        %v1649 = vadd.f32 %v1596, %v1633
        %v1650 = vadd.f32 %v1597, %v1634
        %v1651 = vadd.f32 %v1598, %v1635
        %v1652 = vadd.f32 %v1599, %v1636
        %v1653 = vadd.f32 %v1600, %v1637
        %v1654 = vadd.f32 %v1601, %v1638
        %v1655 = vadd.f32 %v1602, %v1639
        %v1656 = vadd.f32 %v1603, %v1640
        %v1657 = vadd.f32 %v1604, %v1641
        %v1658 = vld [vmem:[%s1498 + $0x3] sm:$0xff]
        %v1659 = vld [vmem:[%s1498 + $0xb] sm:$0xff]
        %v1660 = vld [vmem:[%s1498 + $0x1b] sm:$0xff]
        %v1661 = vld [vmem:[%s1498 + $0x23] sm:$0xff]
        %v1662 = vld [vmem:[%s1498 + $0x33] sm:$0xff]
        %v1663 = vld [vmem:[%s1498 + $0x3b] sm:$0xff]
        %v1664 = vld [vmem:[%s1498 + $0x4b] sm:$0xff]
        %v1665 = vld [vmem:[%s1498 + $0x53] sm:$0xff]
        %v1666 = vld [vmem:[%s1498 + $0x63] sm:$0xff]
        %v1667 = vld [vmem:[%s1498 + $0x6b] sm:$0xff]
        %v1668 = vld [vmem:[%s1498 + $0x7b] sm:$0xff]
        %v1669 = vld [vmem:[%s1498 + $0x83] sm:$0xff]
        %v1670 = vld [vmem:[%s1498 + $0x93] sm:$0xff]
        %v1671 = vld [vmem:[%s1498 + $0x9b] sm:$0xff]
        %v1672 = vld [vmem:[%s1498 + $0xab] sm:$0xff]
        %v1673 = vld [vmem:[%s1498 + $0xb3] sm:$0xff]
        %v1674 = vld [vmem:[%s1 + $0x18] sm:$0x1]
        %v1675 = vlaneseq
        %v1676 = vshrl.u32 %v1675, 7
        %v1677 = vsub.s32 0, %v1676
        %v1678 = vrot.slane %v1674, %v1677
        %v1679 = vmul.f32 %v1658, %v1678
        %v1680 = vmul.f32 %v1659, %v1678
        %v1681 = vmul.f32 %v1660, %v1678
        %v1682 = vmul.f32 %v1661, %v1678
        %v1683 = vmul.f32 %v1662, %v1678
        %v1684 = vmul.f32 %v1663, %v1678
        %v1685 = vmul.f32 %v1664, %v1678
        %v1686 = vmul.f32 %v1665, %v1678
        %v1687 = vmul.f32 %v1666, %v1678
        %v1688 = vmul.f32 %v1667, %v1678
        %v1689 = vmul.f32 %v1668, %v1678
        %v1690 = vmul.f32 %v1669, %v1678
        %v1691 = vmul.f32 %v1670, %v1678
        %v1692 = vmul.f32 %v1671, %v1678
        %v1693 = vmul.f32 %v1672, %v1678
        %v1694 = vmul.f32 %v1673, %v1678
        %v1695 = vadd.f32 %v1642, %v1679
        %v1696 = vadd.f32 %v1643, %v1680
        %v1697 = vadd.f32 %v1644, %v1681
        %v1698 = vadd.f32 %v1645, %v1682
        %v1699 = vadd.f32 %v1646, %v1683
        %v1700 = vadd.f32 %v1647, %v1684
        %v1701 = vadd.f32 %v1648, %v1685
        %v1702 = vadd.f32 %v1649, %v1686
        %v1703 = vadd.f32 %v1650, %v1687
        %v1704 = vadd.f32 %v1651, %v1688
        %v1705 = vadd.f32 %v1652, %v1689
        %v1706 = vadd.f32 %v1653, %v1690
        %v1707 = vadd.f32 %v1654, %v1691
        %v1708 = vadd.f32 %v1655, %v1692
        %v1709 = vadd.f32 %v1656, %v1693
        %v1710 = vadd.f32 %v1657, %v1694
        %v1711 = vld [vmem:[%s1498 + $0x4] sm:$0xff]
        %v1712 = vld [vmem:[%s1498 + $0xc] sm:$0xff]
        %v1713 = vld [vmem:[%s1498 + $0x1c] sm:$0xff]
        %v1714 = vld [vmem:[%s1498 + $0x24] sm:$0xff]
        %v1715 = vld [vmem:[%s1498 + $0x34] sm:$0xff]
        %v1716 = vld [vmem:[%s1498 + $0x3c] sm:$0xff]
        %v1717 = vld [vmem:[%s1498 + $0x4c] sm:$0xff]
        %v1718 = vld [vmem:[%s1498 + $0x54] sm:$0xff]
        %v1719 = vld [vmem:[%s1498 + $0x64] sm:$0xff]
        %v1720 = vld [vmem:[%s1498 + $0x6c] sm:$0xff]
        %v1721 = vld [vmem:[%s1498 + $0x7c] sm:$0xff]
        %v1722 = vld [vmem:[%s1498 + $0x84] sm:$0xff]
        %v1723 = vld [vmem:[%s1498 + $0x94] sm:$0xff]
        %v1724 = vld [vmem:[%s1498 + $0x9c] sm:$0xff]
        %v1725 = vld [vmem:[%s1498 + $0xac] sm:$0xff]
        %v1726 = vld [vmem:[%s1498 + $0xb4] sm:$0xff]
        %v1727 = vld [vmem:[%s1 + $0x19] sm:$0x1]
        %v1728 = vlaneseq
        %v1729 = vshrl.u32 %v1728, 7
        %v1730 = vsub.s32 0, %v1729
        %v1731 = vrot.slane %v1727, %v1730
        %v1732 = vmul.f32 %v1711, %v1731
        %v1733 = vmul.f32 %v1712, %v1731
        %v1734 = vmul.f32 %v1713, %v1731
        %v1735 = vmul.f32 %v1714, %v1731
        %v1736 = vmul.f32 %v1715, %v1731
        %v1737 = vmul.f32 %v1716, %v1731
        %v1738 = vmul.f32 %v1717, %v1731
        %v1739 = vmul.f32 %v1718, %v1731
        %v1740 = vmul.f32 %v1719, %v1731
        %v1741 = vmul.f32 %v1720, %v1731
        %v1742 = vmul.f32 %v1721, %v1731
        %v1743 = vmul.f32 %v1722, %v1731
        %v1744 = vmul.f32 %v1723, %v1731
        %v1745 = vmul.f32 %v1724, %v1731
        %v1746 = vmul.f32 %v1725, %v1731
        %v1747 = vmul.f32 %v1726, %v1731
        %v1748 = vadd.f32 %v1695, %v1732
        %v1749 = vadd.f32 %v1696, %v1733
        %v1750 = vadd.f32 %v1697, %v1734
        %v1751 = vadd.f32 %v1698, %v1735
        %v1752 = vadd.f32 %v1699, %v1736
        %v1753 = vadd.f32 %v1700, %v1737
        %v1754 = vadd.f32 %v1701, %v1738
        %v1755 = vadd.f32 %v1702, %v1739
        %v1756 = vadd.f32 %v1703, %v1740
        %v1757 = vadd.f32 %v1704, %v1741
        %v1758 = vadd.f32 %v1705, %v1742
        %v1759 = vadd.f32 %v1706, %v1743
        %v1760 = vadd.f32 %v1707, %v1744
        %v1761 = vadd.f32 %v1708, %v1745
        %v1762 = vadd.f32 %v1709, %v1746
        %v1763 = vadd.f32 %v1710, %v1747
        %v1764 = vld [vmem:[%s1498 + $0x5] sm:$0xff]
        %v1765 = vld [vmem:[%s1498 + $0xd] sm:$0xff]
        %v1766 = vld [vmem:[%s1498 + $0x1d] sm:$0xff]
        %v1767 = vld [vmem:[%s1498 + $0x25] sm:$0xff]
        %v1768 = vld [vmem:[%s1498 + $0x35] sm:$0xff]
        %v1769 = vld [vmem:[%s1498 + $0x3d] sm:$0xff]
        %v1770 = vld [vmem:[%s1498 + $0x4d] sm:$0xff]
        %v1771 = vld [vmem:[%s1498 + $0x55] sm:$0xff]
        %v1772 = vld [vmem:[%s1498 + $0x65] sm:$0xff]
        %v1773 = vld [vmem:[%s1498 + $0x6d] sm:$0xff]
        %v1774 = vld [vmem:[%s1498 + $0x7d] sm:$0xff]
        %v1775 = vld [vmem:[%s1498 + $0x85] sm:$0xff]
        %v1776 = vld [vmem:[%s1498 + $0x95] sm:$0xff]
        %v1777 = vld [vmem:[%s1498 + $0x9d] sm:$0xff]
        %v1778 = vld [vmem:[%s1498 + $0xad] sm:$0xff]
        %v1779 = vld [vmem:[%s1498 + $0xb5] sm:$0xff]
        %v1780 = vld [vmem:[%s1 + $0x1a] sm:$0x1]
        %v1781 = vlaneseq
        %v1782 = vshrl.u32 %v1781, 7
        %v1783 = vsub.s32 0, %v1782
        %v1784 = vrot.slane %v1780, %v1783
        %v1785 = vmul.f32 %v1764, %v1784
        %v1786 = vmul.f32 %v1765, %v1784
        %v1787 = vmul.f32 %v1766, %v1784
        %v1788 = vmul.f32 %v1767, %v1784
        %v1789 = vmul.f32 %v1768, %v1784
        %v1790 = vmul.f32 %v1769, %v1784
        %v1791 = vmul.f32 %v1770, %v1784
        %v1792 = vmul.f32 %v1771, %v1784
        %v1793 = vmul.f32 %v1772, %v1784
        %v1794 = vmul.f32 %v1773, %v1784
        %v1795 = vmul.f32 %v1774, %v1784
        %v1796 = vmul.f32 %v1775, %v1784
        %v1797 = vmul.f32 %v1776, %v1784
        %v1798 = vmul.f32 %v1777, %v1784
        %v1799 = vmul.f32 %v1778, %v1784
        %v1800 = vmul.f32 %v1779, %v1784
        %v1801 = vadd.f32 %v1748, %v1785
        %v1802 = vadd.f32 %v1749, %v1786
        %v1803 = vadd.f32 %v1750, %v1787
        %v1804 = vadd.f32 %v1751, %v1788
        %v1805 = vadd.f32 %v1752, %v1789
        %v1806 = vadd.f32 %v1753, %v1790
        %v1807 = vadd.f32 %v1754, %v1791
        %v1808 = vadd.f32 %v1755, %v1792
        %v1809 = vadd.f32 %v1756, %v1793
        %v1810 = vadd.f32 %v1757, %v1794
        %v1811 = vadd.f32 %v1758, %v1795
        %v1812 = vadd.f32 %v1759, %v1796
        %v1813 = vadd.f32 %v1760, %v1797
        %v1814 = vadd.f32 %v1761, %v1798
        %v1815 = vadd.f32 %v1762, %v1799
        %v1816 = vadd.f32 %v1763, %v1800
        %v1817 = vld [vmem:[%s1498 + $0x6] sm:$0xff]
        %v1818 = vld [vmem:[%s1498 + $0xe] sm:$0xff]
        %v1819 = vld [vmem:[%s1498 + $0x1e] sm:$0xff]
        %v1820 = vld [vmem:[%s1498 + $0x26] sm:$0xff]
        %v1821 = vld [vmem:[%s1498 + $0x36] sm:$0xff]
        %v1822 = vld [vmem:[%s1498 + $0x3e] sm:$0xff]
        %v1823 = vld [vmem:[%s1498 + $0x4e] sm:$0xff]
        %v1824 = vld [vmem:[%s1498 + $0x56] sm:$0xff]
        %v1825 = vld [vmem:[%s1498 + $0x66] sm:$0xff]
        %v1826 = vld [vmem:[%s1498 + $0x6e] sm:$0xff]
        %v1827 = vld [vmem:[%s1498 + $0x7e] sm:$0xff]
        %v1828 = vld [vmem:[%s1498 + $0x86] sm:$0xff]
        %v1829 = vld [vmem:[%s1498 + $0x96] sm:$0xff]
        %v1830 = vld [vmem:[%s1498 + $0x9e] sm:$0xff]
        %v1831 = vld [vmem:[%s1498 + $0xae] sm:$0xff]
        %v1832 = vld [vmem:[%s1498 + $0xb6] sm:$0xff]
        %v1833 = vld [vmem:[%s1 + $0x1b] sm:$0x1]
        %v1834 = vlaneseq
        %v1835 = vshrl.u32 %v1834, 7
        %v1836 = vsub.s32 0, %v1835
        %v1837 = vrot.slane %v1833, %v1836
        %v1838 = vmul.f32 %v1817, %v1837
        %v1839 = vmul.f32 %v1818, %v1837
        %v1840 = vmul.f32 %v1819, %v1837
        %v1841 = vmul.f32 %v1820, %v1837
        %v1842 = vmul.f32 %v1821, %v1837
        %v1843 = vmul.f32 %v1822, %v1837
        %v1844 = vmul.f32 %v1823, %v1837
        %v1845 = vmul.f32 %v1824, %v1837
        %v1846 = vmul.f32 %v1825, %v1837
        %v1847 = vmul.f32 %v1826, %v1837
        %v1848 = vmul.f32 %v1827, %v1837
        %v1849 = vmul.f32 %v1828, %v1837
        %v1850 = vmul.f32 %v1829, %v1837
        %v1851 = vmul.f32 %v1830, %v1837
        %v1852 = vmul.f32 %v1831, %v1837
        %v1853 = vmul.f32 %v1832, %v1837
        %v1854 = vadd.f32 %v1801, %v1838
        %v1855 = vadd.f32 %v1802, %v1839
        %v1856 = vadd.f32 %v1803, %v1840
        %v1857 = vadd.f32 %v1804, %v1841
        %v1858 = vadd.f32 %v1805, %v1842
        %v1859 = vadd.f32 %v1806, %v1843
        %v1860 = vadd.f32 %v1807, %v1844
        %v1861 = vadd.f32 %v1808, %v1845
        %v1862 = vadd.f32 %v1809, %v1846
        %v1863 = vadd.f32 %v1810, %v1847
        %v1864 = vadd.f32 %v1811, %v1848
        %v1865 = vadd.f32 %v1812, %v1849
        %v1866 = vadd.f32 %v1813, %v1850
        %v1867 = vadd.f32 %v1814, %v1851
        %v1868 = vadd.f32 %v1815, %v1852
        %v1869 = vadd.f32 %v1816, %v1853
        %s1870 = sadd.s32 %s374, 4
        %s1871 = smul.u32 %s1870, 24
        %s1872 = scalar_lea.vmem %s371, %s1871
        %v1873 = vld [vmem:[%s1872] sm:$0xff]
        %v1874 = vld [vmem:[%s1872 + $0x8] sm:$0xff]
        %v1875 = vld [vmem:[%s1872 + $0x18] sm:$0xff]
        %v1876 = vld [vmem:[%s1872 + $0x20] sm:$0xff]
        %v1877 = vld [vmem:[%s1872 + $0x30] sm:$0xff]
        %v1878 = vld [vmem:[%s1872 + $0x38] sm:$0xff]
        %v1879 = vld [vmem:[%s1872 + $0x48] sm:$0xff]
        %v1880 = vld [vmem:[%s1872 + $0x50] sm:$0xff]
        %v1881 = vld [vmem:[%s1872 + $0x60] sm:$0xff]
        %v1882 = vld [vmem:[%s1872 + $0x68] sm:$0xff]
        %v1883 = vld [vmem:[%s1872 + $0x78] sm:$0xff]
        %v1884 = vld [vmem:[%s1872 + $0x80] sm:$0xff]
        %v1885 = vld [vmem:[%s1872 + $0x90] sm:$0xff]
        %v1886 = vld [vmem:[%s1872 + $0x98] sm:$0xff]
        %v1887 = vld [vmem:[%s1872 + $0xa8] sm:$0xff]
        %v1888 = vld [vmem:[%s1872 + $0xb0] sm:$0xff]
        %v1889 = vld [vmem:[%s1 + $0x1c] sm:$0x1]
        %v1890 = vlaneseq
        %v1891 = vshrl.u32 %v1890, 7
        %v1892 = vsub.s32 0, %v1891
        %v1893 = vrot.slane %v1889, %v1892
        %v1894 = vmul.f32 %v1873, %v1893
        %v1895 = vmul.f32 %v1874, %v1893
        %v1896 = vmul.f32 %v1875, %v1893
        %v1897 = vmul.f32 %v1876, %v1893
        %v1898 = vmul.f32 %v1877, %v1893
        %v1899 = vmul.f32 %v1878, %v1893
        %v1900 = vmul.f32 %v1879, %v1893
        %v1901 = vmul.f32 %v1880, %v1893
        %v1902 = vmul.f32 %v1881, %v1893
        %v1903 = vmul.f32 %v1882, %v1893
        %v1904 = vmul.f32 %v1883, %v1893
        %v1905 = vmul.f32 %v1884, %v1893
        %v1906 = vmul.f32 %v1885, %v1893
        %v1907 = vmul.f32 %v1886, %v1893
        %v1908 = vmul.f32 %v1887, %v1893
        %v1909 = vmul.f32 %v1888, %v1893
        %v1910 = vadd.f32 %v1854, %v1894
        %v1911 = vadd.f32 %v1855, %v1895
        %v1912 = vadd.f32 %v1856, %v1896
        %v1913 = vadd.f32 %v1857, %v1897
        %v1914 = vadd.f32 %v1858, %v1898
        %v1915 = vadd.f32 %v1859, %v1899
        %v1916 = vadd.f32 %v1860, %v1900
        %v1917 = vadd.f32 %v1861, %v1901
        %v1918 = vadd.f32 %v1862, %v1902
        %v1919 = vadd.f32 %v1863, %v1903
        %v1920 = vadd.f32 %v1864, %v1904
        %v1921 = vadd.f32 %v1865, %v1905
        %v1922 = vadd.f32 %v1866, %v1906
        %v1923 = vadd.f32 %v1867, %v1907
        %v1924 = vadd.f32 %v1868, %v1908
        %v1925 = vadd.f32 %v1869, %v1909
        %v1926 = vld [vmem:[%s1872 + $0x1] sm:$0xff]
        %v1927 = vld [vmem:[%s1872 + $0x9] sm:$0xff]
        %v1928 = vld [vmem:[%s1872 + $0x19] sm:$0xff]
        %v1929 = vld [vmem:[%s1872 + $0x21] sm:$0xff]
        %v1930 = vld [vmem:[%s1872 + $0x31] sm:$0xff]
        %v1931 = vld [vmem:[%s1872 + $0x39] sm:$0xff]
        %v1932 = vld [vmem:[%s1872 + $0x49] sm:$0xff]
        %v1933 = vld [vmem:[%s1872 + $0x51] sm:$0xff]
        %v1934 = vld [vmem:[%s1872 + $0x61] sm:$0xff]
        %v1935 = vld [vmem:[%s1872 + $0x69] sm:$0xff]
        %v1936 = vld [vmem:[%s1872 + $0x79] sm:$0xff]
        %v1937 = vld [vmem:[%s1872 + $0x81] sm:$0xff]
        %v1938 = vld [vmem:[%s1872 + $0x91] sm:$0xff]
        %v1939 = vld [vmem:[%s1872 + $0x99] sm:$0xff]
        %v1940 = vld [vmem:[%s1872 + $0xa9] sm:$0xff]
        %v1941 = vld [vmem:[%s1872 + $0xb1] sm:$0xff]
        %v1942 = vld [vmem:[%s1 + $0x1d] sm:$0x1]
        %v1943 = vlaneseq
        %v1944 = vshrl.u32 %v1943, 7
        %v1945 = vsub.s32 0, %v1944
        %v1946 = vrot.slane %v1942, %v1945
        %v1947 = vmul.f32 %v1926, %v1946
        %v1948 = vmul.f32 %v1927, %v1946
        %v1949 = vmul.f32 %v1928, %v1946
        %v1950 = vmul.f32 %v1929, %v1946
        %v1951 = vmul.f32 %v1930, %v1946
        %v1952 = vmul.f32 %v1931, %v1946
        %v1953 = vmul.f32 %v1932, %v1946
        %v1954 = vmul.f32 %v1933, %v1946
        %v1955 = vmul.f32 %v1934, %v1946
        %v1956 = vmul.f32 %v1935, %v1946
        %v1957 = vmul.f32 %v1936, %v1946
        %v1958 = vmul.f32 %v1937, %v1946
        %v1959 = vmul.f32 %v1938, %v1946
        %v1960 = vmul.f32 %v1939, %v1946
        %v1961 = vmul.f32 %v1940, %v1946
        %v1962 = vmul.f32 %v1941, %v1946
        %v1963 = vadd.f32 %v1910, %v1947
        %v1964 = vadd.f32 %v1911, %v1948
        %v1965 = vadd.f32 %v1912, %v1949
        %v1966 = vadd.f32 %v1913, %v1950
        %v1967 = vadd.f32 %v1914, %v1951
        %v1968 = vadd.f32 %v1915, %v1952
        %v1969 = vadd.f32 %v1916, %v1953
        %v1970 = vadd.f32 %v1917, %v1954
        %v1971 = vadd.f32 %v1918, %v1955
        %v1972 = vadd.f32 %v1919, %v1956
        %v1973 = vadd.f32 %v1920, %v1957
        %v1974 = vadd.f32 %v1921, %v1958
        %v1975 = vadd.f32 %v1922, %v1959
        %v1976 = vadd.f32 %v1923, %v1960
        %v1977 = vadd.f32 %v1924, %v1961
        %v1978 = vadd.f32 %v1925, %v1962
        %v1979 = vld [vmem:[%s1872 + $0x2] sm:$0xff]
        %v1980 = vld [vmem:[%s1872 + $0xa] sm:$0xff]
        %v1981 = vld [vmem:[%s1872 + $0x1a] sm:$0xff]
        %v1982 = vld [vmem:[%s1872 + $0x22] sm:$0xff]
        %v1983 = vld [vmem:[%s1872 + $0x32] sm:$0xff]
        %v1984 = vld [vmem:[%s1872 + $0x3a] sm:$0xff]
        %v1985 = vld [vmem:[%s1872 + $0x4a] sm:$0xff]
        %v1986 = vld [vmem:[%s1872 + $0x52] sm:$0xff]
        %v1987 = vld [vmem:[%s1872 + $0x62] sm:$0xff]
        %v1988 = vld [vmem:[%s1872 + $0x6a] sm:$0xff]
        %v1989 = vld [vmem:[%s1872 + $0x7a] sm:$0xff]
        %v1990 = vld [vmem:[%s1872 + $0x82] sm:$0xff]
        %v1991 = vld [vmem:[%s1872 + $0x92] sm:$0xff]
        %v1992 = vld [vmem:[%s1872 + $0x9a] sm:$0xff]
        %v1993 = vld [vmem:[%s1872 + $0xaa] sm:$0xff]
        %v1994 = vld [vmem:[%s1872 + $0xb2] sm:$0xff]
        %v1995 = vld [vmem:[%s1 + $0x1e] sm:$0x1]
        %v1996 = vlaneseq
        %v1997 = vshrl.u32 %v1996, 7
        %v1998 = vsub.s32 0, %v1997
        %v1999 = vrot.slane %v1995, %v1998
        %v2000 = vmul.f32 %v1979, %v1999
        %v2001 = vmul.f32 %v1980, %v1999
        %v2002 = vmul.f32 %v1981, %v1999
        %v2003 = vmul.f32 %v1982, %v1999
        %v2004 = vmul.f32 %v1983, %v1999
        %v2005 = vmul.f32 %v1984, %v1999
        %v2006 = vmul.f32 %v1985, %v1999
        %v2007 = vmul.f32 %v1986, %v1999
        %v2008 = vmul.f32 %v1987, %v1999
        %v2009 = vmul.f32 %v1988, %v1999
        %v2010 = vmul.f32 %v1989, %v1999
        %v2011 = vmul.f32 %v1990, %v1999
        %v2012 = vmul.f32 %v1991, %v1999
        %v2013 = vmul.f32 %v1992, %v1999
        %v2014 = vmul.f32 %v1993, %v1999
        %v2015 = vmul.f32 %v1994, %v1999
        %v2016 = vadd.f32 %v1963, %v2000
        %v2017 = vadd.f32 %v1964, %v2001
        %v2018 = vadd.f32 %v1965, %v2002
        %v2019 = vadd.f32 %v1966, %v2003
        %v2020 = vadd.f32 %v1967, %v2004
        %v2021 = vadd.f32 %v1968, %v2005
        %v2022 = vadd.f32 %v1969, %v2006
        %v2023 = vadd.f32 %v1970, %v2007
        %v2024 = vadd.f32 %v1971, %v2008
        %v2025 = vadd.f32 %v1972, %v2009
        %v2026 = vadd.f32 %v1973, %v2010
        %v2027 = vadd.f32 %v1974, %v2011
        %v2028 = vadd.f32 %v1975, %v2012
        %v2029 = vadd.f32 %v1976, %v2013
        %v2030 = vadd.f32 %v1977, %v2014
        %v2031 = vadd.f32 %v1978, %v2015
        %v2032 = vld [vmem:[%s1872 + $0x3] sm:$0xff]
        %v2033 = vld [vmem:[%s1872 + $0xb] sm:$0xff]
        %v2034 = vld [vmem:[%s1872 + $0x1b] sm:$0xff]
        %v2035 = vld [vmem:[%s1872 + $0x23] sm:$0xff]
        %v2036 = vld [vmem:[%s1872 + $0x33] sm:$0xff]
        %v2037 = vld [vmem:[%s1872 + $0x3b] sm:$0xff]
        %v2038 = vld [vmem:[%s1872 + $0x4b] sm:$0xff]
        %v2039 = vld [vmem:[%s1872 + $0x53] sm:$0xff]
        %v2040 = vld [vmem:[%s1872 + $0x63] sm:$0xff]
        %v2041 = vld [vmem:[%s1872 + $0x6b] sm:$0xff]
        %v2042 = vld [vmem:[%s1872 + $0x7b] sm:$0xff]
        %v2043 = vld [vmem:[%s1872 + $0x83] sm:$0xff]
        %v2044 = vld [vmem:[%s1872 + $0x93] sm:$0xff]
        %v2045 = vld [vmem:[%s1872 + $0x9b] sm:$0xff]
        %v2046 = vld [vmem:[%s1872 + $0xab] sm:$0xff]
        %v2047 = vld [vmem:[%s1872 + $0xb3] sm:$0xff]
        %v2048 = vld [vmem:[%s1 + $0x1f] sm:$0x1]
        %v2049 = vlaneseq
        %v2050 = vshrl.u32 %v2049, 7
        %v2051 = vsub.s32 0, %v2050
        %v2052 = vrot.slane %v2048, %v2051
        %v2053 = vmul.f32 %v2032, %v2052
        %v2054 = vmul.f32 %v2033, %v2052
        %v2055 = vmul.f32 %v2034, %v2052
        %v2056 = vmul.f32 %v2035, %v2052
        %v2057 = vmul.f32 %v2036, %v2052
        %v2058 = vmul.f32 %v2037, %v2052
        %v2059 = vmul.f32 %v2038, %v2052
        %v2060 = vmul.f32 %v2039, %v2052
        %v2061 = vmul.f32 %v2040, %v2052
        %v2062 = vmul.f32 %v2041, %v2052
        %v2063 = vmul.f32 %v2042, %v2052
        %v2064 = vmul.f32 %v2043, %v2052
        %v2065 = vmul.f32 %v2044, %v2052
        %v2066 = vmul.f32 %v2045, %v2052
        %v2067 = vmul.f32 %v2046, %v2052
        %v2068 = vmul.f32 %v2047, %v2052
        %v2069 = vadd.f32 %v2016, %v2053
        %v2070 = vadd.f32 %v2017, %v2054
        %v2071 = vadd.f32 %v2018, %v2055
        %v2072 = vadd.f32 %v2019, %v2056
        %v2073 = vadd.f32 %v2020, %v2057
        %v2074 = vadd.f32 %v2021, %v2058
        %v2075 = vadd.f32 %v2022, %v2059
        %v2076 = vadd.f32 %v2023, %v2060
        %v2077 = vadd.f32 %v2024, %v2061
        %v2078 = vadd.f32 %v2025, %v2062
        %v2079 = vadd.f32 %v2026, %v2063
        %v2080 = vadd.f32 %v2027, %v2064
        %v2081 = vadd.f32 %v2028, %v2065
        %v2082 = vadd.f32 %v2029, %v2066
        %v2083 = vadd.f32 %v2030, %v2067
        %v2084 = vadd.f32 %v2031, %v2068
        %v2085 = vld [vmem:[%s1872 + $0x4] sm:$0xff]
        %v2086 = vld [vmem:[%s1872 + $0xc] sm:$0xff]
        %v2087 = vld [vmem:[%s1872 + $0x1c] sm:$0xff]
        %v2088 = vld [vmem:[%s1872 + $0x24] sm:$0xff]
        %v2089 = vld [vmem:[%s1872 + $0x34] sm:$0xff]
        %v2090 = vld [vmem:[%s1872 + $0x3c] sm:$0xff]
        %v2091 = vld [vmem:[%s1872 + $0x4c] sm:$0xff]
        %v2092 = vld [vmem:[%s1872 + $0x54] sm:$0xff]
        %v2093 = vld [vmem:[%s1872 + $0x64] sm:$0xff]
        %v2094 = vld [vmem:[%s1872 + $0x6c] sm:$0xff]
        %v2095 = vld [vmem:[%s1872 + $0x7c] sm:$0xff]
        %v2096 = vld [vmem:[%s1872 + $0x84] sm:$0xff]
        %v2097 = vld [vmem:[%s1872 + $0x94] sm:$0xff]
        %v2098 = vld [vmem:[%s1872 + $0x9c] sm:$0xff]
        %v2099 = vld [vmem:[%s1872 + $0xac] sm:$0xff]
        %v2100 = vld [vmem:[%s1872 + $0xb4] sm:$0xff]
        %v2101 = vld [vmem:[%s1 + $0x20] sm:$0x1]
        %v2102 = vlaneseq
        %v2103 = vshrl.u32 %v2102, 7
        %v2104 = vsub.s32 0, %v2103
        %v2105 = vrot.slane %v2101, %v2104
        %v2106 = vmul.f32 %v2085, %v2105
        %v2107 = vmul.f32 %v2086, %v2105
        %v2108 = vmul.f32 %v2087, %v2105
        %v2109 = vmul.f32 %v2088, %v2105
        %v2110 = vmul.f32 %v2089, %v2105
        %v2111 = vmul.f32 %v2090, %v2105
        %v2112 = vmul.f32 %v2091, %v2105
        %v2113 = vmul.f32 %v2092, %v2105
        %v2114 = vmul.f32 %v2093, %v2105
        %v2115 = vmul.f32 %v2094, %v2105
        %v2116 = vmul.f32 %v2095, %v2105
        %v2117 = vmul.f32 %v2096, %v2105
        %v2118 = vmul.f32 %v2097, %v2105
        %v2119 = vmul.f32 %v2098, %v2105
        %v2120 = vmul.f32 %v2099, %v2105
        %v2121 = vmul.f32 %v2100, %v2105
        %v2122 = vadd.f32 %v2069, %v2106
        %v2123 = vadd.f32 %v2070, %v2107
        %v2124 = vadd.f32 %v2071, %v2108
        %v2125 = vadd.f32 %v2072, %v2109
        %v2126 = vadd.f32 %v2073, %v2110
        %v2127 = vadd.f32 %v2074, %v2111
        %v2128 = vadd.f32 %v2075, %v2112
        %v2129 = vadd.f32 %v2076, %v2113
        %v2130 = vadd.f32 %v2077, %v2114
        %v2131 = vadd.f32 %v2078, %v2115
        %v2132 = vadd.f32 %v2079, %v2116
        %v2133 = vadd.f32 %v2080, %v2117
        %v2134 = vadd.f32 %v2081, %v2118
        %v2135 = vadd.f32 %v2082, %v2119
        %v2136 = vadd.f32 %v2083, %v2120
        %v2137 = vadd.f32 %v2084, %v2121
        %v2138 = vld [vmem:[%s1872 + $0x5] sm:$0xff]
        %v2139 = vld [vmem:[%s1872 + $0xd] sm:$0xff]
        %v2140 = vld [vmem:[%s1872 + $0x1d] sm:$0xff]
        %v2141 = vld [vmem:[%s1872 + $0x25] sm:$0xff]
        %v2142 = vld [vmem:[%s1872 + $0x35] sm:$0xff]
        %v2143 = vld [vmem:[%s1872 + $0x3d] sm:$0xff]
        %v2144 = vld [vmem:[%s1872 + $0x4d] sm:$0xff]
        %v2145 = vld [vmem:[%s1872 + $0x55] sm:$0xff]
        %v2146 = vld [vmem:[%s1872 + $0x65] sm:$0xff]
        %v2147 = vld [vmem:[%s1872 + $0x6d] sm:$0xff]
        %v2148 = vld [vmem:[%s1872 + $0x7d] sm:$0xff]
        %v2149 = vld [vmem:[%s1872 + $0x85] sm:$0xff]
        %v2150 = vld [vmem:[%s1872 + $0x95] sm:$0xff]
        %v2151 = vld [vmem:[%s1872 + $0x9d] sm:$0xff]
        %v2152 = vld [vmem:[%s1872 + $0xad] sm:$0xff]
        %v2153 = vld [vmem:[%s1872 + $0xb5] sm:$0xff]
        %v2154 = vld [vmem:[%s1 + $0x21] sm:$0x1]
        %v2155 = vlaneseq
        %v2156 = vshrl.u32 %v2155, 7
        %v2157 = vsub.s32 0, %v2156
        %v2158 = vrot.slane %v2154, %v2157
        %v2159 = vmul.f32 %v2138, %v2158
        %v2160 = vmul.f32 %v2139, %v2158
        %v2161 = vmul.f32 %v2140, %v2158
        %v2162 = vmul.f32 %v2141, %v2158
        %v2163 = vmul.f32 %v2142, %v2158
        %v2164 = vmul.f32 %v2143, %v2158
        %v2165 = vmul.f32 %v2144, %v2158
        %v2166 = vmul.f32 %v2145, %v2158
        %v2167 = vmul.f32 %v2146, %v2158
        %v2168 = vmul.f32 %v2147, %v2158
        %v2169 = vmul.f32 %v2148, %v2158
        %v2170 = vmul.f32 %v2149, %v2158
        %v2171 = vmul.f32 %v2150, %v2158
        %v2172 = vmul.f32 %v2151, %v2158
        %v2173 = vmul.f32 %v2152, %v2158
        %v2174 = vmul.f32 %v2153, %v2158
        %v2175 = vadd.f32 %v2122, %v2159
        %v2176 = vadd.f32 %v2123, %v2160
        %v2177 = vadd.f32 %v2124, %v2161
        %v2178 = vadd.f32 %v2125, %v2162
        %v2179 = vadd.f32 %v2126, %v2163
        %v2180 = vadd.f32 %v2127, %v2164
        %v2181 = vadd.f32 %v2128, %v2165
        %v2182 = vadd.f32 %v2129, %v2166
        %v2183 = vadd.f32 %v2130, %v2167
        %v2184 = vadd.f32 %v2131, %v2168
        %v2185 = vadd.f32 %v2132, %v2169
        %v2186 = vadd.f32 %v2133, %v2170
        %v2187 = vadd.f32 %v2134, %v2171
        %v2188 = vadd.f32 %v2135, %v2172
        %v2189 = vadd.f32 %v2136, %v2173
        %v2190 = vadd.f32 %v2137, %v2174
        %v2191 = vld [vmem:[%s1872 + $0x6] sm:$0xff]
        %v2192 = vld [vmem:[%s1872 + $0xe] sm:$0xff]
        %v2193 = vld [vmem:[%s1872 + $0x1e] sm:$0xff]
        %v2194 = vld [vmem:[%s1872 + $0x26] sm:$0xff]
        %v2195 = vld [vmem:[%s1872 + $0x36] sm:$0xff]
        %v2196 = vld [vmem:[%s1872 + $0x3e] sm:$0xff]
        %v2197 = vld [vmem:[%s1872 + $0x4e] sm:$0xff]
        %v2198 = vld [vmem:[%s1872 + $0x56] sm:$0xff]
        %v2199 = vld [vmem:[%s1872 + $0x66] sm:$0xff]
        %v2200 = vld [vmem:[%s1872 + $0x6e] sm:$0xff]
        %v2201 = vld [vmem:[%s1872 + $0x7e] sm:$0xff]
        %v2202 = vld [vmem:[%s1872 + $0x86] sm:$0xff]
        %v2203 = vld [vmem:[%s1872 + $0x96] sm:$0xff]
        %v2204 = vld [vmem:[%s1872 + $0x9e] sm:$0xff]
        %v2205 = vld [vmem:[%s1872 + $0xae] sm:$0xff]
        %v2206 = vld [vmem:[%s1872 + $0xb6] sm:$0xff]
        %v2207 = vld [vmem:[%s1 + $0x22] sm:$0x1]
        %v2208 = vlaneseq
        %v2209 = vshrl.u32 %v2208, 7
        %v2210 = vsub.s32 0, %v2209
        %v2211 = vrot.slane %v2207, %v2210
        %v2212 = vmul.f32 %v2191, %v2211
        %v2213 = vmul.f32 %v2192, %v2211
        %v2214 = vmul.f32 %v2193, %v2211
        %v2215 = vmul.f32 %v2194, %v2211
        %v2216 = vmul.f32 %v2195, %v2211
        %v2217 = vmul.f32 %v2196, %v2211
        %v2218 = vmul.f32 %v2197, %v2211
        %v2219 = vmul.f32 %v2198, %v2211
        %v2220 = vmul.f32 %v2199, %v2211
        %v2221 = vmul.f32 %v2200, %v2211
        %v2222 = vmul.f32 %v2201, %v2211
        %v2223 = vmul.f32 %v2202, %v2211
        %v2224 = vmul.f32 %v2203, %v2211
        %v2225 = vmul.f32 %v2204, %v2211
        %v2226 = vmul.f32 %v2205, %v2211
        %v2227 = vmul.f32 %v2206, %v2211
        %v2228 = vadd.f32 %v2175, %v2212
        %v2229 = vadd.f32 %v2176, %v2213
        %v2230 = vadd.f32 %v2177, %v2214
        %v2231 = vadd.f32 %v2178, %v2215
        %v2232 = vadd.f32 %v2179, %v2216
        %v2233 = vadd.f32 %v2180, %v2217
        %v2234 = vadd.f32 %v2181, %v2218
        %v2235 = vadd.f32 %v2182, %v2219
        %v2236 = vadd.f32 %v2183, %v2220
        %v2237 = vadd.f32 %v2184, %v2221
        %v2238 = vadd.f32 %v2185, %v2222
        %v2239 = vadd.f32 %v2186, %v2223
        %v2240 = vadd.f32 %v2187, %v2224
        %v2241 = vadd.f32 %v2188, %v2225
        %v2242 = vadd.f32 %v2189, %v2226
        %v2243 = vadd.f32 %v2190, %v2227
        %s2244 = sadd.s32 %s374, 5
        %s2245 = smul.u32 %s2244, 24
        %s2246 = scalar_lea.vmem %s371, %s2245
        %v2247 = vld [vmem:[%s2246] sm:$0xff]
        %v2248 = vld [vmem:[%s2246 + $0x8] sm:$0xff]
        %v2249 = vld [vmem:[%s2246 + $0x18] sm:$0xff]
        %v2250 = vld [vmem:[%s2246 + $0x20] sm:$0xff]
        %v2251 = vld [vmem:[%s2246 + $0x30] sm:$0xff]
        %v2252 = vld [vmem:[%s2246 + $0x38] sm:$0xff]
        %v2253 = vld [vmem:[%s2246 + $0x48] sm:$0xff]
        %v2254 = vld [vmem:[%s2246 + $0x50] sm:$0xff]
        %v2255 = vld [vmem:[%s2246 + $0x60] sm:$0xff]
        %v2256 = vld [vmem:[%s2246 + $0x68] sm:$0xff]
        %v2257 = vld [vmem:[%s2246 + $0x78] sm:$0xff]
        %v2258 = vld [vmem:[%s2246 + $0x80] sm:$0xff]
        %v2259 = vld [vmem:[%s2246 + $0x90] sm:$0xff]
        %v2260 = vld [vmem:[%s2246 + $0x98] sm:$0xff]
        %v2261 = vld [vmem:[%s2246 + $0xa8] sm:$0xff]
        %v2262 = vld [vmem:[%s2246 + $0xb0] sm:$0xff]
        %v2263 = vld [vmem:[%s1 + $0x23] sm:$0x1]
        %v2264 = vlaneseq
        %v2265 = vshrl.u32 %v2264, 7
        %v2266 = vsub.s32 0, %v2265
        %v2267 = vrot.slane %v2263, %v2266
        %v2268 = vmul.f32 %v2247, %v2267
        %v2269 = vmul.f32 %v2248, %v2267
        %v2270 = vmul.f32 %v2249, %v2267
        %v2271 = vmul.f32 %v2250, %v2267
        %v2272 = vmul.f32 %v2251, %v2267
        %v2273 = vmul.f32 %v2252, %v2267
        %v2274 = vmul.f32 %v2253, %v2267
        %v2275 = vmul.f32 %v2254, %v2267
        %v2276 = vmul.f32 %v2255, %v2267
        %v2277 = vmul.f32 %v2256, %v2267
        %v2278 = vmul.f32 %v2257, %v2267
        %v2279 = vmul.f32 %v2258, %v2267
        %v2280 = vmul.f32 %v2259, %v2267
        %v2281 = vmul.f32 %v2260, %v2267
        %v2282 = vmul.f32 %v2261, %v2267
        %v2283 = vmul.f32 %v2262, %v2267
        %v2284 = vadd.f32 %v2228, %v2268
        %v2285 = vadd.f32 %v2229, %v2269
        %v2286 = vadd.f32 %v2230, %v2270
        %v2287 = vadd.f32 %v2231, %v2271
        %v2288 = vadd.f32 %v2232, %v2272
        %v2289 = vadd.f32 %v2233, %v2273
        %v2290 = vadd.f32 %v2234, %v2274
        %v2291 = vadd.f32 %v2235, %v2275
        %v2292 = vadd.f32 %v2236, %v2276
        %v2293 = vadd.f32 %v2237, %v2277
        %v2294 = vadd.f32 %v2238, %v2278
        %v2295 = vadd.f32 %v2239, %v2279
        %v2296 = vadd.f32 %v2240, %v2280
        %v2297 = vadd.f32 %v2241, %v2281
        %v2298 = vadd.f32 %v2242, %v2282
        %v2299 = vadd.f32 %v2243, %v2283
        %v2300 = vld [vmem:[%s2246 + $0x1] sm:$0xff]
        %v2301 = vld [vmem:[%s2246 + $0x9] sm:$0xff]
        %v2302 = vld [vmem:[%s2246 + $0x19] sm:$0xff]
        %v2303 = vld [vmem:[%s2246 + $0x21] sm:$0xff]
        %v2304 = vld [vmem:[%s2246 + $0x31] sm:$0xff]
        %v2305 = vld [vmem:[%s2246 + $0x39] sm:$0xff]
        %v2306 = vld [vmem:[%s2246 + $0x49] sm:$0xff]
        %v2307 = vld [vmem:[%s2246 + $0x51] sm:$0xff]
        %v2308 = vld [vmem:[%s2246 + $0x61] sm:$0xff]
        %v2309 = vld [vmem:[%s2246 + $0x69] sm:$0xff]
        %v2310 = vld [vmem:[%s2246 + $0x79] sm:$0xff]
        %v2311 = vld [vmem:[%s2246 + $0x81] sm:$0xff]
        %v2312 = vld [vmem:[%s2246 + $0x91] sm:$0xff]
        %v2313 = vld [vmem:[%s2246 + $0x99] sm:$0xff]
        %v2314 = vld [vmem:[%s2246 + $0xa9] sm:$0xff]
        %v2315 = vld [vmem:[%s2246 + $0xb1] sm:$0xff]
        %v2316 = vld [vmem:[%s1 + $0x24] sm:$0x1]
        %v2317 = vlaneseq
        %v2318 = vshrl.u32 %v2317, 7
        %v2319 = vsub.s32 0, %v2318
        %v2320 = vrot.slane %v2316, %v2319
        %v2321 = vmul.f32 %v2300, %v2320
        %v2322 = vmul.f32 %v2301, %v2320
        %v2323 = vmul.f32 %v2302, %v2320
        %v2324 = vmul.f32 %v2303, %v2320
        %v2325 = vmul.f32 %v2304, %v2320
        %v2326 = vmul.f32 %v2305, %v2320
        %v2327 = vmul.f32 %v2306, %v2320
        %v2328 = vmul.f32 %v2307, %v2320
        %v2329 = vmul.f32 %v2308, %v2320
        %v2330 = vmul.f32 %v2309, %v2320
        %v2331 = vmul.f32 %v2310, %v2320
        %v2332 = vmul.f32 %v2311, %v2320
        %v2333 = vmul.f32 %v2312, %v2320
        %v2334 = vmul.f32 %v2313, %v2320
        %v2335 = vmul.f32 %v2314, %v2320
        %v2336 = vmul.f32 %v2315, %v2320
        %v2337 = vadd.f32 %v2284, %v2321
        %v2338 = vadd.f32 %v2285, %v2322
        %v2339 = vadd.f32 %v2286, %v2323
        %v2340 = vadd.f32 %v2287, %v2324
        %v2341 = vadd.f32 %v2288, %v2325
        %v2342 = vadd.f32 %v2289, %v2326
        %v2343 = vadd.f32 %v2290, %v2327
        %v2344 = vadd.f32 %v2291, %v2328
        %v2345 = vadd.f32 %v2292, %v2329
        %v2346 = vadd.f32 %v2293, %v2330
        %v2347 = vadd.f32 %v2294, %v2331
        %v2348 = vadd.f32 %v2295, %v2332
        %v2349 = vadd.f32 %v2296, %v2333
        %v2350 = vadd.f32 %v2297, %v2334
        %v2351 = vadd.f32 %v2298, %v2335
        %v2352 = vadd.f32 %v2299, %v2336
        %v2353 = vld [vmem:[%s2246 + $0x2] sm:$0xff]
        %v2354 = vld [vmem:[%s2246 + $0xa] sm:$0xff]
        %v2355 = vld [vmem:[%s2246 + $0x1a] sm:$0xff]
        %v2356 = vld [vmem:[%s2246 + $0x22] sm:$0xff]
        %v2357 = vld [vmem:[%s2246 + $0x32] sm:$0xff]
        %v2358 = vld [vmem:[%s2246 + $0x3a] sm:$0xff]
        %v2359 = vld [vmem:[%s2246 + $0x4a] sm:$0xff]
        %v2360 = vld [vmem:[%s2246 + $0x52] sm:$0xff]
        %v2361 = vld [vmem:[%s2246 + $0x62] sm:$0xff]
        %v2362 = vld [vmem:[%s2246 + $0x6a] sm:$0xff]
        %v2363 = vld [vmem:[%s2246 + $0x7a] sm:$0xff]
        %v2364 = vld [vmem:[%s2246 + $0x82] sm:$0xff]
        %v2365 = vld [vmem:[%s2246 + $0x92] sm:$0xff]
        %v2366 = vld [vmem:[%s2246 + $0x9a] sm:$0xff]
        %v2367 = vld [vmem:[%s2246 + $0xaa] sm:$0xff]
        %v2368 = vld [vmem:[%s2246 + $0xb2] sm:$0xff]
        %v2369 = vld [vmem:[%s1 + $0x25] sm:$0x1]
        %v2370 = vlaneseq
        %v2371 = vshrl.u32 %v2370, 7
        %v2372 = vsub.s32 0, %v2371
        %v2373 = vrot.slane %v2369, %v2372
        %v2374 = vmul.f32 %v2353, %v2373
        %v2375 = vmul.f32 %v2354, %v2373
        %v2376 = vmul.f32 %v2355, %v2373
        %v2377 = vmul.f32 %v2356, %v2373
        %v2378 = vmul.f32 %v2357, %v2373
        %v2379 = vmul.f32 %v2358, %v2373
        %v2380 = vmul.f32 %v2359, %v2373
        %v2381 = vmul.f32 %v2360, %v2373
        %v2382 = vmul.f32 %v2361, %v2373
        %v2383 = vmul.f32 %v2362, %v2373
        %v2384 = vmul.f32 %v2363, %v2373
        %v2385 = vmul.f32 %v2364, %v2373
        %v2386 = vmul.f32 %v2365, %v2373
        %v2387 = vmul.f32 %v2366, %v2373
        %v2388 = vmul.f32 %v2367, %v2373
        %v2389 = vmul.f32 %v2368, %v2373
        %v2390 = vadd.f32 %v2337, %v2374
        %v2391 = vadd.f32 %v2338, %v2375
        %v2392 = vadd.f32 %v2339, %v2376
        %v2393 = vadd.f32 %v2340, %v2377
        %v2394 = vadd.f32 %v2341, %v2378
        %v2395 = vadd.f32 %v2342, %v2379
        %v2396 = vadd.f32 %v2343, %v2380
        %v2397 = vadd.f32 %v2344, %v2381
        %v2398 = vadd.f32 %v2345, %v2382
        %v2399 = vadd.f32 %v2346, %v2383
        %v2400 = vadd.f32 %v2347, %v2384
        %v2401 = vadd.f32 %v2348, %v2385
        %v2402 = vadd.f32 %v2349, %v2386
        %v2403 = vadd.f32 %v2350, %v2387
        %v2404 = vadd.f32 %v2351, %v2388
        %v2405 = vadd.f32 %v2352, %v2389
        %v2406 = vld [vmem:[%s2246 + $0x3] sm:$0xff]
        %v2407 = vld [vmem:[%s2246 + $0xb] sm:$0xff]
        %v2408 = vld [vmem:[%s2246 + $0x1b] sm:$0xff]
        %v2409 = vld [vmem:[%s2246 + $0x23] sm:$0xff]
        %v2410 = vld [vmem:[%s2246 + $0x33] sm:$0xff]
        %v2411 = vld [vmem:[%s2246 + $0x3b] sm:$0xff]
        %v2412 = vld [vmem:[%s2246 + $0x4b] sm:$0xff]
        %v2413 = vld [vmem:[%s2246 + $0x53] sm:$0xff]
        %v2414 = vld [vmem:[%s2246 + $0x63] sm:$0xff]
        %v2415 = vld [vmem:[%s2246 + $0x6b] sm:$0xff]
        %v2416 = vld [vmem:[%s2246 + $0x7b] sm:$0xff]
        %v2417 = vld [vmem:[%s2246 + $0x83] sm:$0xff]
        %v2418 = vld [vmem:[%s2246 + $0x93] sm:$0xff]
        %v2419 = vld [vmem:[%s2246 + $0x9b] sm:$0xff]
        %v2420 = vld [vmem:[%s2246 + $0xab] sm:$0xff]
        %v2421 = vld [vmem:[%s2246 + $0xb3] sm:$0xff]
        %v2422 = vld [vmem:[%s1 + $0x26] sm:$0x1]
        %v2423 = vlaneseq
        %v2424 = vshrl.u32 %v2423, 7
        %v2425 = vsub.s32 0, %v2424
        %v2426 = vrot.slane %v2422, %v2425
        %v2427 = vmul.f32 %v2406, %v2426
        %v2428 = vmul.f32 %v2407, %v2426
        %v2429 = vmul.f32 %v2408, %v2426
        %v2430 = vmul.f32 %v2409, %v2426
        %v2431 = vmul.f32 %v2410, %v2426
        %v2432 = vmul.f32 %v2411, %v2426
        %v2433 = vmul.f32 %v2412, %v2426
        %v2434 = vmul.f32 %v2413, %v2426
        %v2435 = vmul.f32 %v2414, %v2426
        %v2436 = vmul.f32 %v2415, %v2426
        %v2437 = vmul.f32 %v2416, %v2426
        %v2438 = vmul.f32 %v2417, %v2426
        %v2439 = vmul.f32 %v2418, %v2426
        %v2440 = vmul.f32 %v2419, %v2426
        %v2441 = vmul.f32 %v2420, %v2426
        %v2442 = vmul.f32 %v2421, %v2426
        %v2443 = vadd.f32 %v2390, %v2427
        %v2444 = vadd.f32 %v2391, %v2428
        %v2445 = vadd.f32 %v2392, %v2429
        %v2446 = vadd.f32 %v2393, %v2430
        %v2447 = vadd.f32 %v2394, %v2431
        %v2448 = vadd.f32 %v2395, %v2432
        %v2449 = vadd.f32 %v2396, %v2433
        %v2450 = vadd.f32 %v2397, %v2434
        %v2451 = vadd.f32 %v2398, %v2435
        %v2452 = vadd.f32 %v2399, %v2436
        %v2453 = vadd.f32 %v2400, %v2437
        %v2454 = vadd.f32 %v2401, %v2438
        %v2455 = vadd.f32 %v2402, %v2439
        %v2456 = vadd.f32 %v2403, %v2440
        %v2457 = vadd.f32 %v2404, %v2441
        %v2458 = vadd.f32 %v2405, %v2442
        %v2459 = vld [vmem:[%s2246 + $0x4] sm:$0xff]
        %v2460 = vld [vmem:[%s2246 + $0xc] sm:$0xff]
        %v2461 = vld [vmem:[%s2246 + $0x1c] sm:$0xff]
        %v2462 = vld [vmem:[%s2246 + $0x24] sm:$0xff]
        %v2463 = vld [vmem:[%s2246 + $0x34] sm:$0xff]
        %v2464 = vld [vmem:[%s2246 + $0x3c] sm:$0xff]
        %v2465 = vld [vmem:[%s2246 + $0x4c] sm:$0xff]
        %v2466 = vld [vmem:[%s2246 + $0x54] sm:$0xff]
        %v2467 = vld [vmem:[%s2246 + $0x64] sm:$0xff]
        %v2468 = vld [vmem:[%s2246 + $0x6c] sm:$0xff]
        %v2469 = vld [vmem:[%s2246 + $0x7c] sm:$0xff]
        %v2470 = vld [vmem:[%s2246 + $0x84] sm:$0xff]
        %v2471 = vld [vmem:[%s2246 + $0x94] sm:$0xff]
        %v2472 = vld [vmem:[%s2246 + $0x9c] sm:$0xff]
        %v2473 = vld [vmem:[%s2246 + $0xac] sm:$0xff]
        %v2474 = vld [vmem:[%s2246 + $0xb4] sm:$0xff]
        %v2475 = vld [vmem:[%s1 + $0x27] sm:$0x1]
        %v2476 = vlaneseq
        %v2477 = vshrl.u32 %v2476, 7
        %v2478 = vsub.s32 0, %v2477
        %v2479 = vrot.slane %v2475, %v2478
        %v2480 = vmul.f32 %v2459, %v2479
        %v2481 = vmul.f32 %v2460, %v2479
        %v2482 = vmul.f32 %v2461, %v2479
        %v2483 = vmul.f32 %v2462, %v2479
        %v2484 = vmul.f32 %v2463, %v2479
        %v2485 = vmul.f32 %v2464, %v2479
        %v2486 = vmul.f32 %v2465, %v2479
        %v2487 = vmul.f32 %v2466, %v2479
        %v2488 = vmul.f32 %v2467, %v2479
        %v2489 = vmul.f32 %v2468, %v2479
        %v2490 = vmul.f32 %v2469, %v2479
        %v2491 = vmul.f32 %v2470, %v2479
        %v2492 = vmul.f32 %v2471, %v2479
        %v2493 = vmul.f32 %v2472, %v2479
        %v2494 = vmul.f32 %v2473, %v2479
        %v2495 = vmul.f32 %v2474, %v2479
        %v2496 = vadd.f32 %v2443, %v2480
        %v2497 = vadd.f32 %v2444, %v2481
        %v2498 = vadd.f32 %v2445, %v2482
        %v2499 = vadd.f32 %v2446, %v2483
        %v2500 = vadd.f32 %v2447, %v2484
        %v2501 = vadd.f32 %v2448, %v2485
        %v2502 = vadd.f32 %v2449, %v2486
        %v2503 = vadd.f32 %v2450, %v2487
        %v2504 = vadd.f32 %v2451, %v2488
        %v2505 = vadd.f32 %v2452, %v2489
        %v2506 = vadd.f32 %v2453, %v2490
        %v2507 = vadd.f32 %v2454, %v2491
        %v2508 = vadd.f32 %v2455, %v2492
        %v2509 = vadd.f32 %v2456, %v2493
        %v2510 = vadd.f32 %v2457, %v2494
        %v2511 = vadd.f32 %v2458, %v2495
        %v2512 = vld [vmem:[%s2246 + $0x5] sm:$0xff]
        %v2513 = vld [vmem:[%s2246 + $0xd] sm:$0xff]
        %v2514 = vld [vmem:[%s2246 + $0x1d] sm:$0xff]
        %v2515 = vld [vmem:[%s2246 + $0x25] sm:$0xff]
        %v2516 = vld [vmem:[%s2246 + $0x35] sm:$0xff]
        %v2517 = vld [vmem:[%s2246 + $0x3d] sm:$0xff]
        %v2518 = vld [vmem:[%s2246 + $0x4d] sm:$0xff]
        %v2519 = vld [vmem:[%s2246 + $0x55] sm:$0xff]
        %v2520 = vld [vmem:[%s2246 + $0x65] sm:$0xff]
        %v2521 = vld [vmem:[%s2246 + $0x6d] sm:$0xff]
        %v2522 = vld [vmem:[%s2246 + $0x7d] sm:$0xff]
        %v2523 = vld [vmem:[%s2246 + $0x85] sm:$0xff]
        %v2524 = vld [vmem:[%s2246 + $0x95] sm:$0xff]
        %v2525 = vld [vmem:[%s2246 + $0x9d] sm:$0xff]
        %v2526 = vld [vmem:[%s2246 + $0xad] sm:$0xff]
        %v2527 = vld [vmem:[%s2246 + $0xb5] sm:$0xff]
        %v2528 = vld [vmem:[%s1 + $0x28] sm:$0x1]
        %v2529 = vlaneseq
        %v2530 = vshrl.u32 %v2529, 7
        %v2531 = vsub.s32 0, %v2530
        %v2532 = vrot.slane %v2528, %v2531
        %v2533 = vmul.f32 %v2512, %v2532
        %v2534 = vmul.f32 %v2513, %v2532
        %v2535 = vmul.f32 %v2514, %v2532
        %v2536 = vmul.f32 %v2515, %v2532
        %v2537 = vmul.f32 %v2516, %v2532
        %v2538 = vmul.f32 %v2517, %v2532
        %v2539 = vmul.f32 %v2518, %v2532
        %v2540 = vmul.f32 %v2519, %v2532
        %v2541 = vmul.f32 %v2520, %v2532
        %v2542 = vmul.f32 %v2521, %v2532
        %v2543 = vmul.f32 %v2522, %v2532
        %v2544 = vmul.f32 %v2523, %v2532
        %v2545 = vmul.f32 %v2524, %v2532
        %v2546 = vmul.f32 %v2525, %v2532
        %v2547 = vmul.f32 %v2526, %v2532
        %v2548 = vmul.f32 %v2527, %v2532
        %v2549 = vadd.f32 %v2496, %v2533
        %v2550 = vadd.f32 %v2497, %v2534
        %v2551 = vadd.f32 %v2498, %v2535
        %v2552 = vadd.f32 %v2499, %v2536
        %v2553 = vadd.f32 %v2500, %v2537
        %v2554 = vadd.f32 %v2501, %v2538
        %v2555 = vadd.f32 %v2502, %v2539
        %v2556 = vadd.f32 %v2503, %v2540
        %v2557 = vadd.f32 %v2504, %v2541
        %v2558 = vadd.f32 %v2505, %v2542
        %v2559 = vadd.f32 %v2506, %v2543
        %v2560 = vadd.f32 %v2507, %v2544
        %v2561 = vadd.f32 %v2508, %v2545
        %v2562 = vadd.f32 %v2509, %v2546
        %v2563 = vadd.f32 %v2510, %v2547
        %v2564 = vadd.f32 %v2511, %v2548
        %v2565 = vld [vmem:[%s2246 + $0x6] sm:$0xff]
        %v2566 = vld [vmem:[%s2246 + $0xe] sm:$0xff]
        %v2567 = vld [vmem:[%s2246 + $0x1e] sm:$0xff]
        %v2568 = vld [vmem:[%s2246 + $0x26] sm:$0xff]
        %v2569 = vld [vmem:[%s2246 + $0x36] sm:$0xff]
        %v2570 = vld [vmem:[%s2246 + $0x3e] sm:$0xff]
        %v2571 = vld [vmem:[%s2246 + $0x4e] sm:$0xff]
        %v2572 = vld [vmem:[%s2246 + $0x56] sm:$0xff]
        %v2573 = vld [vmem:[%s2246 + $0x66] sm:$0xff]
        %v2574 = vld [vmem:[%s2246 + $0x6e] sm:$0xff]
        %v2575 = vld [vmem:[%s2246 + $0x7e] sm:$0xff]
        %v2576 = vld [vmem:[%s2246 + $0x86] sm:$0xff]
        %v2577 = vld [vmem:[%s2246 + $0x96] sm:$0xff]
        %v2578 = vld [vmem:[%s2246 + $0x9e] sm:$0xff]
        %v2579 = vld [vmem:[%s2246 + $0xae] sm:$0xff]
        %v2580 = vld [vmem:[%s2246 + $0xb6] sm:$0xff]
        %v2581 = vld [vmem:[%s1 + $0x29] sm:$0x1]
        %v2582 = vlaneseq
        %v2583 = vshrl.u32 %v2582, 7
        %v2584 = vsub.s32 0, %v2583
        %v2585 = vrot.slane %v2581, %v2584
        %v2586 = vmul.f32 %v2565, %v2585
        %v2587 = vmul.f32 %v2566, %v2585
        %v2588 = vmul.f32 %v2567, %v2585
        %v2589 = vmul.f32 %v2568, %v2585
        %v2590 = vmul.f32 %v2569, %v2585
        %v2591 = vmul.f32 %v2570, %v2585
        %v2592 = vmul.f32 %v2571, %v2585
        %v2593 = vmul.f32 %v2572, %v2585
        %v2594 = vmul.f32 %v2573, %v2585
        %v2595 = vmul.f32 %v2574, %v2585
        %v2596 = vmul.f32 %v2575, %v2585
        %v2597 = vmul.f32 %v2576, %v2585
        %v2598 = vmul.f32 %v2577, %v2585
        %v2599 = vmul.f32 %v2578, %v2585
        %v2600 = vmul.f32 %v2579, %v2585
        %v2601 = vmul.f32 %v2580, %v2585
        %v2602 = vadd.f32 %v2549, %v2586
        %v2603 = vadd.f32 %v2550, %v2587
        %v2604 = vadd.f32 %v2551, %v2588
        %v2605 = vadd.f32 %v2552, %v2589
        %v2606 = vadd.f32 %v2553, %v2590
        %v2607 = vadd.f32 %v2554, %v2591
        %v2608 = vadd.f32 %v2555, %v2592
        %v2609 = vadd.f32 %v2556, %v2593
        %v2610 = vadd.f32 %v2557, %v2594
        %v2611 = vadd.f32 %v2558, %v2595
        %v2612 = vadd.f32 %v2559, %v2596
        %v2613 = vadd.f32 %v2560, %v2597
        %v2614 = vadd.f32 %v2561, %v2598
        %v2615 = vadd.f32 %v2562, %v2599
        %v2616 = vadd.f32 %v2563, %v2600
        %v2617 = vadd.f32 %v2564, %v2601
        %s2618 = sadd.s32 %s374, 6
        %s2619 = smul.u32 %s2618, 24
        %s2620 = scalar_lea.vmem %s371, %s2619
        %v2621 = vld [vmem:[%s2620] sm:$0xff]
        %v2622 = vld [vmem:[%s2620 + $0x8] sm:$0xff]
        %v2623 = vld [vmem:[%s2620 + $0x18] sm:$0xff]
        %v2624 = vld [vmem:[%s2620 + $0x20] sm:$0xff]
        %v2625 = vld [vmem:[%s2620 + $0x30] sm:$0xff]
        %v2626 = vld [vmem:[%s2620 + $0x38] sm:$0xff]
        %v2627 = vld [vmem:[%s2620 + $0x48] sm:$0xff]
        %v2628 = vld [vmem:[%s2620 + $0x50] sm:$0xff]
        %v2629 = vld [vmem:[%s2620 + $0x60] sm:$0xff]
        %v2630 = vld [vmem:[%s2620 + $0x68] sm:$0xff]
        %v2631 = vld [vmem:[%s2620 + $0x78] sm:$0xff]
        %v2632 = vld [vmem:[%s2620 + $0x80] sm:$0xff]
        %v2633 = vld [vmem:[%s2620 + $0x90] sm:$0xff]
        %v2634 = vld [vmem:[%s2620 + $0x98] sm:$0xff]
        %v2635 = vld [vmem:[%s2620 + $0xa8] sm:$0xff]
        %v2636 = vld [vmem:[%s2620 + $0xb0] sm:$0xff]
        %v2637 = vld [vmem:[%s1 + $0x2a] sm:$0x1]
        %v2638 = vlaneseq
        %v2639 = vshrl.u32 %v2638, 7
        %v2640 = vsub.s32 0, %v2639
        %v2641 = vrot.slane %v2637, %v2640
        %v2642 = vmul.f32 %v2621, %v2641
        %v2643 = vmul.f32 %v2622, %v2641
        %v2644 = vmul.f32 %v2623, %v2641
        %v2645 = vmul.f32 %v2624, %v2641
        %v2646 = vmul.f32 %v2625, %v2641
        %v2647 = vmul.f32 %v2626, %v2641
        %v2648 = vmul.f32 %v2627, %v2641
        %v2649 = vmul.f32 %v2628, %v2641
        %v2650 = vmul.f32 %v2629, %v2641
        %v2651 = vmul.f32 %v2630, %v2641
        %v2652 = vmul.f32 %v2631, %v2641
        %v2653 = vmul.f32 %v2632, %v2641
        %v2654 = vmul.f32 %v2633, %v2641
        %v2655 = vmul.f32 %v2634, %v2641
        %v2656 = vmul.f32 %v2635, %v2641
        %v2657 = vmul.f32 %v2636, %v2641
        %v2658 = vadd.f32 %v2602, %v2642
        %v2659 = vadd.f32 %v2603, %v2643
        %v2660 = vadd.f32 %v2604, %v2644
        %v2661 = vadd.f32 %v2605, %v2645
        %v2662 = vadd.f32 %v2606, %v2646
        %v2663 = vadd.f32 %v2607, %v2647
        %v2664 = vadd.f32 %v2608, %v2648
        %v2665 = vadd.f32 %v2609, %v2649
        %v2666 = vadd.f32 %v2610, %v2650
        %v2667 = vadd.f32 %v2611, %v2651
        %v2668 = vadd.f32 %v2612, %v2652
        %v2669 = vadd.f32 %v2613, %v2653
        %v2670 = vadd.f32 %v2614, %v2654
        %v2671 = vadd.f32 %v2615, %v2655
        %v2672 = vadd.f32 %v2616, %v2656
        %v2673 = vadd.f32 %v2617, %v2657
        %v2674 = vld [vmem:[%s2620 + $0x1] sm:$0xff]
        %v2675 = vld [vmem:[%s2620 + $0x9] sm:$0xff]
        %v2676 = vld [vmem:[%s2620 + $0x19] sm:$0xff]
        %v2677 = vld [vmem:[%s2620 + $0x21] sm:$0xff]
        %v2678 = vld [vmem:[%s2620 + $0x31] sm:$0xff]
        %v2679 = vld [vmem:[%s2620 + $0x39] sm:$0xff]
        %v2680 = vld [vmem:[%s2620 + $0x49] sm:$0xff]
        %v2681 = vld [vmem:[%s2620 + $0x51] sm:$0xff]
        %v2682 = vld [vmem:[%s2620 + $0x61] sm:$0xff]
        %v2683 = vld [vmem:[%s2620 + $0x69] sm:$0xff]
        %v2684 = vld [vmem:[%s2620 + $0x79] sm:$0xff]
        %v2685 = vld [vmem:[%s2620 + $0x81] sm:$0xff]
        %v2686 = vld [vmem:[%s2620 + $0x91] sm:$0xff]
        %v2687 = vld [vmem:[%s2620 + $0x99] sm:$0xff]
        %v2688 = vld [vmem:[%s2620 + $0xa9] sm:$0xff]
        %v2689 = vld [vmem:[%s2620 + $0xb1] sm:$0xff]
        %v2690 = vld [vmem:[%s1 + $0x2b] sm:$0x1]
        %v2691 = vlaneseq
        %v2692 = vshrl.u32 %v2691, 7
        %v2693 = vsub.s32 0, %v2692
        %v2694 = vrot.slane %v2690, %v2693
        %v2695 = vmul.f32 %v2674, %v2694
        %v2696 = vmul.f32 %v2675, %v2694
        %v2697 = vmul.f32 %v2676, %v2694
        %v2698 = vmul.f32 %v2677, %v2694
        %v2699 = vmul.f32 %v2678, %v2694
        %v2700 = vmul.f32 %v2679, %v2694
        %v2701 = vmul.f32 %v2680, %v2694
        %v2702 = vmul.f32 %v2681, %v2694
        %v2703 = vmul.f32 %v2682, %v2694
        %v2704 = vmul.f32 %v2683, %v2694
        %v2705 = vmul.f32 %v2684, %v2694
        %v2706 = vmul.f32 %v2685, %v2694
        %v2707 = vmul.f32 %v2686, %v2694
        %v2708 = vmul.f32 %v2687, %v2694
        %v2709 = vmul.f32 %v2688, %v2694
        %v2710 = vmul.f32 %v2689, %v2694
        %v2711 = vadd.f32 %v2658, %v2695
        %v2712 = vadd.f32 %v2659, %v2696
        %v2713 = vadd.f32 %v2660, %v2697
        %v2714 = vadd.f32 %v2661, %v2698
        %v2715 = vadd.f32 %v2662, %v2699
        %v2716 = vadd.f32 %v2663, %v2700
        %v2717 = vadd.f32 %v2664, %v2701
        %v2718 = vadd.f32 %v2665, %v2702
        %v2719 = vadd.f32 %v2666, %v2703
        %v2720 = vadd.f32 %v2667, %v2704
        %v2721 = vadd.f32 %v2668, %v2705
        %v2722 = vadd.f32 %v2669, %v2706
        %v2723 = vadd.f32 %v2670, %v2707
        %v2724 = vadd.f32 %v2671, %v2708
        %v2725 = vadd.f32 %v2672, %v2709
        %v2726 = vadd.f32 %v2673, %v2710
        %v2727 = vld [vmem:[%s2620 + $0x2] sm:$0xff]
        %v2728 = vld [vmem:[%s2620 + $0xa] sm:$0xff]
        %v2729 = vld [vmem:[%s2620 + $0x1a] sm:$0xff]
        %v2730 = vld [vmem:[%s2620 + $0x22] sm:$0xff]
        %v2731 = vld [vmem:[%s2620 + $0x32] sm:$0xff]
        %v2732 = vld [vmem:[%s2620 + $0x3a] sm:$0xff]
        %v2733 = vld [vmem:[%s2620 + $0x4a] sm:$0xff]
        %v2734 = vld [vmem:[%s2620 + $0x52] sm:$0xff]
        %v2735 = vld [vmem:[%s2620 + $0x62] sm:$0xff]
        %v2736 = vld [vmem:[%s2620 + $0x6a] sm:$0xff]
        %v2737 = vld [vmem:[%s2620 + $0x7a] sm:$0xff]
        %v2738 = vld [vmem:[%s2620 + $0x82] sm:$0xff]
        %v2739 = vld [vmem:[%s2620 + $0x92] sm:$0xff]
        %v2740 = vld [vmem:[%s2620 + $0x9a] sm:$0xff]
        %v2741 = vld [vmem:[%s2620 + $0xaa] sm:$0xff]
        %v2742 = vld [vmem:[%s2620 + $0xb2] sm:$0xff]
        %v2743 = vld [vmem:[%s1 + $0x2c] sm:$0x1]
        %v2744 = vlaneseq
        %v2745 = vshrl.u32 %v2744, 7
        %v2746 = vsub.s32 0, %v2745
        %v2747 = vrot.slane %v2743, %v2746
        %v2748 = vmul.f32 %v2727, %v2747
        %v2749 = vmul.f32 %v2728, %v2747
        %v2750 = vmul.f32 %v2729, %v2747
        %v2751 = vmul.f32 %v2730, %v2747
        %v2752 = vmul.f32 %v2731, %v2747
        %v2753 = vmul.f32 %v2732, %v2747
        %v2754 = vmul.f32 %v2733, %v2747
        %v2755 = vmul.f32 %v2734, %v2747
        %v2756 = vmul.f32 %v2735, %v2747
        %v2757 = vmul.f32 %v2736, %v2747
        %v2758 = vmul.f32 %v2737, %v2747
        %v2759 = vmul.f32 %v2738, %v2747
        %v2760 = vmul.f32 %v2739, %v2747
        %v2761 = vmul.f32 %v2740, %v2747
        %v2762 = vmul.f32 %v2741, %v2747
        %v2763 = vmul.f32 %v2742, %v2747
        %v2764 = vadd.f32 %v2711, %v2748
        %v2765 = vadd.f32 %v2712, %v2749
        %v2766 = vadd.f32 %v2713, %v2750
        %v2767 = vadd.f32 %v2714, %v2751
        %v2768 = vadd.f32 %v2715, %v2752
        %v2769 = vadd.f32 %v2716, %v2753
        %v2770 = vadd.f32 %v2717, %v2754
        %v2771 = vadd.f32 %v2718, %v2755
        %v2772 = vadd.f32 %v2719, %v2756
        %v2773 = vadd.f32 %v2720, %v2757
        %v2774 = vadd.f32 %v2721, %v2758
        %v2775 = vadd.f32 %v2722, %v2759
        %v2776 = vadd.f32 %v2723, %v2760
        %v2777 = vadd.f32 %v2724, %v2761
        %v2778 = vadd.f32 %v2725, %v2762
        %v2779 = vadd.f32 %v2726, %v2763
        %v2780 = vld [vmem:[%s2620 + $0x3] sm:$0xff]
        %v2781 = vld [vmem:[%s2620 + $0xb] sm:$0xff]
        %v2782 = vld [vmem:[%s2620 + $0x1b] sm:$0xff]
        %v2783 = vld [vmem:[%s2620 + $0x23] sm:$0xff]
        %v2784 = vld [vmem:[%s2620 + $0x33] sm:$0xff]
        %v2785 = vld [vmem:[%s2620 + $0x3b] sm:$0xff]
        %v2786 = vld [vmem:[%s2620 + $0x4b] sm:$0xff]
        %v2787 = vld [vmem:[%s2620 + $0x53] sm:$0xff]
        %v2788 = vld [vmem:[%s2620 + $0x63] sm:$0xff]
        %v2789 = vld [vmem:[%s2620 + $0x6b] sm:$0xff]
        %v2790 = vld [vmem:[%s2620 + $0x7b] sm:$0xff]
        %v2791 = vld [vmem:[%s2620 + $0x83] sm:$0xff]
        %v2792 = vld [vmem:[%s2620 + $0x93] sm:$0xff]
        %v2793 = vld [vmem:[%s2620 + $0x9b] sm:$0xff]
        %v2794 = vld [vmem:[%s2620 + $0xab] sm:$0xff]
        %v2795 = vld [vmem:[%s2620 + $0xb3] sm:$0xff]
        %v2796 = vld [vmem:[%s1 + $0x2d] sm:$0x1]
        %v2797 = vlaneseq
        %v2798 = vshrl.u32 %v2797, 7
        %v2799 = vsub.s32 0, %v2798
        %v2800 = vrot.slane %v2796, %v2799
        %v2801 = vmul.f32 %v2780, %v2800
        %v2802 = vmul.f32 %v2781, %v2800
        %v2803 = vmul.f32 %v2782, %v2800
        %v2804 = vmul.f32 %v2783, %v2800
        %v2805 = vmul.f32 %v2784, %v2800
        %v2806 = vmul.f32 %v2785, %v2800
        %v2807 = vmul.f32 %v2786, %v2800
        %v2808 = vmul.f32 %v2787, %v2800
        %v2809 = vmul.f32 %v2788, %v2800
        %v2810 = vmul.f32 %v2789, %v2800
        %v2811 = vmul.f32 %v2790, %v2800
        %v2812 = vmul.f32 %v2791, %v2800
        %v2813 = vmul.f32 %v2792, %v2800
        %v2814 = vmul.f32 %v2793, %v2800
        %v2815 = vmul.f32 %v2794, %v2800
        %v2816 = vmul.f32 %v2795, %v2800
        %v2817 = vadd.f32 %v2764, %v2801
        %v2818 = vadd.f32 %v2765, %v2802
        %v2819 = vadd.f32 %v2766, %v2803
        %v2820 = vadd.f32 %v2767, %v2804
        %v2821 = vadd.f32 %v2768, %v2805
        %v2822 = vadd.f32 %v2769, %v2806
        %v2823 = vadd.f32 %v2770, %v2807
        %v2824 = vadd.f32 %v2771, %v2808
        %v2825 = vadd.f32 %v2772, %v2809
        %v2826 = vadd.f32 %v2773, %v2810
        %v2827 = vadd.f32 %v2774, %v2811
        %v2828 = vadd.f32 %v2775, %v2812
        %v2829 = vadd.f32 %v2776, %v2813
        %v2830 = vadd.f32 %v2777, %v2814
        %v2831 = vadd.f32 %v2778, %v2815
        %v2832 = vadd.f32 %v2779, %v2816
        %v2833 = vld [vmem:[%s2620 + $0x4] sm:$0xff]
        %v2834 = vld [vmem:[%s2620 + $0xc] sm:$0xff]
        %v2835 = vld [vmem:[%s2620 + $0x1c] sm:$0xff]
        %v2836 = vld [vmem:[%s2620 + $0x24] sm:$0xff]
        %v2837 = vld [vmem:[%s2620 + $0x34] sm:$0xff]
        %v2838 = vld [vmem:[%s2620 + $0x3c] sm:$0xff]
        %v2839 = vld [vmem:[%s2620 + $0x4c] sm:$0xff]
        %v2840 = vld [vmem:[%s2620 + $0x54] sm:$0xff]
        %v2841 = vld [vmem:[%s2620 + $0x64] sm:$0xff]
        %v2842 = vld [vmem:[%s2620 + $0x6c] sm:$0xff]
        %v2843 = vld [vmem:[%s2620 + $0x7c] sm:$0xff]
        %v2844 = vld [vmem:[%s2620 + $0x84] sm:$0xff]
        %v2845 = vld [vmem:[%s2620 + $0x94] sm:$0xff]
        %v2846 = vld [vmem:[%s2620 + $0x9c] sm:$0xff]
        %v2847 = vld [vmem:[%s2620 + $0xac] sm:$0xff]
        %v2848 = vld [vmem:[%s2620 + $0xb4] sm:$0xff]
        %v2849 = vld [vmem:[%s1 + $0x2e] sm:$0x1]
        %v2850 = vlaneseq
        %v2851 = vshrl.u32 %v2850, 7
        %v2852 = vsub.s32 0, %v2851
        %v2853 = vrot.slane %v2849, %v2852
        %v2854 = vmul.f32 %v2833, %v2853
        %v2855 = vmul.f32 %v2834, %v2853
        %v2856 = vmul.f32 %v2835, %v2853
        %v2857 = vmul.f32 %v2836, %v2853
        %v2858 = vmul.f32 %v2837, %v2853
        %v2859 = vmul.f32 %v2838, %v2853
        %v2860 = vmul.f32 %v2839, %v2853
        %v2861 = vmul.f32 %v2840, %v2853
        %v2862 = vmul.f32 %v2841, %v2853
        %v2863 = vmul.f32 %v2842, %v2853
        %v2864 = vmul.f32 %v2843, %v2853
        %v2865 = vmul.f32 %v2844, %v2853
        %v2866 = vmul.f32 %v2845, %v2853
        %v2867 = vmul.f32 %v2846, %v2853
        %v2868 = vmul.f32 %v2847, %v2853
        %v2869 = vmul.f32 %v2848, %v2853
        %v2870 = vadd.f32 %v2817, %v2854
        %v2871 = vadd.f32 %v2818, %v2855
        %v2872 = vadd.f32 %v2819, %v2856
        %v2873 = vadd.f32 %v2820, %v2857
        %v2874 = vadd.f32 %v2821, %v2858
        %v2875 = vadd.f32 %v2822, %v2859
        %v2876 = vadd.f32 %v2823, %v2860
        %v2877 = vadd.f32 %v2824, %v2861
        %v2878 = vadd.f32 %v2825, %v2862
        %v2879 = vadd.f32 %v2826, %v2863
        %v2880 = vadd.f32 %v2827, %v2864
        %v2881 = vadd.f32 %v2828, %v2865
        %v2882 = vadd.f32 %v2829, %v2866
        %v2883 = vadd.f32 %v2830, %v2867
        %v2884 = vadd.f32 %v2831, %v2868
        %v2885 = vadd.f32 %v2832, %v2869
        %v2886 = vld [vmem:[%s2620 + $0x5] sm:$0xff]
        %v2887 = vld [vmem:[%s2620 + $0xd] sm:$0xff]
        %v2888 = vld [vmem:[%s2620 + $0x1d] sm:$0xff]
        %v2889 = vld [vmem:[%s2620 + $0x25] sm:$0xff]
        %v2890 = vld [vmem:[%s2620 + $0x35] sm:$0xff]
        %v2891 = vld [vmem:[%s2620 + $0x3d] sm:$0xff]
        %v2892 = vld [vmem:[%s2620 + $0x4d] sm:$0xff]
        %v2893 = vld [vmem:[%s2620 + $0x55] sm:$0xff]
        %v2894 = vld [vmem:[%s2620 + $0x65] sm:$0xff]
        %v2895 = vld [vmem:[%s2620 + $0x6d] sm:$0xff]
        %v2896 = vld [vmem:[%s2620 + $0x7d] sm:$0xff]
        %v2897 = vld [vmem:[%s2620 + $0x85] sm:$0xff]
        %v2898 = vld [vmem:[%s2620 + $0x95] sm:$0xff]
        %v2899 = vld [vmem:[%s2620 + $0x9d] sm:$0xff]
        %v2900 = vld [vmem:[%s2620 + $0xad] sm:$0xff]
        %v2901 = vld [vmem:[%s2620 + $0xb5] sm:$0xff]
        %v2902 = vld [vmem:[%s1 + $0x2f] sm:$0x1]
        %v2903 = vlaneseq
        %v2904 = vshrl.u32 %v2903, 7
        %v2905 = vsub.s32 0, %v2904
        %v2906 = vrot.slane %v2902, %v2905
        %v2907 = vmul.f32 %v2886, %v2906
        %v2908 = vmul.f32 %v2887, %v2906
        %v2909 = vmul.f32 %v2888, %v2906
        %v2910 = vmul.f32 %v2889, %v2906
        %v2911 = vmul.f32 %v2890, %v2906
        %v2912 = vmul.f32 %v2891, %v2906
        %v2913 = vmul.f32 %v2892, %v2906
        %v2914 = vmul.f32 %v2893, %v2906
        %v2915 = vmul.f32 %v2894, %v2906
        %v2916 = vmul.f32 %v2895, %v2906
        %v2917 = vmul.f32 %v2896, %v2906
        %v2918 = vmul.f32 %v2897, %v2906
        %v2919 = vmul.f32 %v2898, %v2906
        %v2920 = vmul.f32 %v2899, %v2906
        %v2921 = vmul.f32 %v2900, %v2906
        %v2922 = vmul.f32 %v2901, %v2906
        %v2923 = vadd.f32 %v2870, %v2907
        %v2924 = vadd.f32 %v2871, %v2908
        %v2925 = vadd.f32 %v2872, %v2909
        %v2926 = vadd.f32 %v2873, %v2910
        %v2927 = vadd.f32 %v2874, %v2911
        %v2928 = vadd.f32 %v2875, %v2912
        %v2929 = vadd.f32 %v2876, %v2913
        %v2930 = vadd.f32 %v2877, %v2914
        %v2931 = vadd.f32 %v2878, %v2915
        %v2932 = vadd.f32 %v2879, %v2916
        %v2933 = vadd.f32 %v2880, %v2917
        %v2934 = vadd.f32 %v2881, %v2918
        %v2935 = vadd.f32 %v2882, %v2919
        %v2936 = vadd.f32 %v2883, %v2920
        %v2937 = vadd.f32 %v2884, %v2921
        %v2938 = vadd.f32 %v2885, %v2922
        %v2939 = vld [vmem:[%s2620 + $0x6] sm:$0xff]
        %v2940 = vld [vmem:[%s2620 + $0xe] sm:$0xff]
        %v2941 = vld [vmem:[%s2620 + $0x1e] sm:$0xff]
        %v2942 = vld [vmem:[%s2620 + $0x26] sm:$0xff]
        %v2943 = vld [vmem:[%s2620 + $0x36] sm:$0xff]
        %v2944 = vld [vmem:[%s2620 + $0x3e] sm:$0xff]
        %v2945 = vld [vmem:[%s2620 + $0x4e] sm:$0xff]
        %v2946 = vld [vmem:[%s2620 + $0x56] sm:$0xff]
        %v2947 = vld [vmem:[%s2620 + $0x66] sm:$0xff]
        %v2948 = vld [vmem:[%s2620 + $0x6e] sm:$0xff]
        %v2949 = vld [vmem:[%s2620 + $0x7e] sm:$0xff]
        %v2950 = vld [vmem:[%s2620 + $0x86] sm:$0xff]
        %v2951 = vld [vmem:[%s2620 + $0x96] sm:$0xff]
        %v2952 = vld [vmem:[%s2620 + $0x9e] sm:$0xff]
        %v2953 = vld [vmem:[%s2620 + $0xae] sm:$0xff]
        %v2954 = vld [vmem:[%s2620 + $0xb6] sm:$0xff]
        %v2955 = vld [vmem:[%s1 + $0x30] sm:$0x1]
        %v2956 = vlaneseq
        %v2957 = vshrl.u32 %v2956, 7
        %v2958 = vsub.s32 0, %v2957
        %v2959 = vrot.slane %v2955, %v2958
        %v2960 = vmul.f32 %v2939, %v2959
        %v2961 = vmul.f32 %v2940, %v2959
        %v2962 = vmul.f32 %v2941, %v2959
        %v2963 = vmul.f32 %v2942, %v2959
        %v2964 = vmul.f32 %v2943, %v2959
        %v2965 = vmul.f32 %v2944, %v2959
        %v2966 = vmul.f32 %v2945, %v2959
        %v2967 = vmul.f32 %v2946, %v2959
        %v2968 = vmul.f32 %v2947, %v2959
        %v2969 = vmul.f32 %v2948, %v2959
        %v2970 = vmul.f32 %v2949, %v2959
        %v2971 = vmul.f32 %v2950, %v2959
        %v2972 = vmul.f32 %v2951, %v2959
        %v2973 = vmul.f32 %v2952, %v2959
        %v2974 = vmul.f32 %v2953, %v2959
        %v2975 = vmul.f32 %v2954, %v2959
        %v2976 = vadd.f32 %v2923, %v2960
        %v2977 = vadd.f32 %v2924, %v2961
        %v2978 = vadd.f32 %v2925, %v2962
        %v2979 = vadd.f32 %v2926, %v2963
        %v2980 = vadd.f32 %v2927, %v2964
        %v2981 = vadd.f32 %v2928, %v2965
        %v2982 = vadd.f32 %v2929, %v2966
        %v2983 = vadd.f32 %v2930, %v2967
        %v2984 = vadd.f32 %v2931, %v2968
        %v2985 = vadd.f32 %v2932, %v2969
        %v2986 = vadd.f32 %v2933, %v2970
        %v2987 = vadd.f32 %v2934, %v2971
        %v2988 = vadd.f32 %v2935, %v2972
        %v2989 = vadd.f32 %v2936, %v2973
        %v2990 = vadd.f32 %v2937, %v2974
        %v2991 = vadd.f32 %v2938, %v2975
        %v2992 = vld [vmem:[%s2] sm:$0x1]
        %v2994 = vlaneseq
        %v2995 = vshrl.u32 %v2994, 7
        %v2996 = vsub.s32 0, %v2995
        %v2997 = vrot.slane %v2992, %v2996
        %v2999 = vadd.f32 %v2976, %v2997
        %v3000 = vadd.f32 %v2977, %v2997
        %v3001 = vadd.f32 %v2978, %v2997
        %v3002 = vadd.f32 %v2979, %v2997
        %v3003 = vadd.f32 %v2980, %v2997
        %v3004 = vadd.f32 %v2981, %v2997
        %v3005 = vadd.f32 %v2982, %v2997
        %v3006 = vadd.f32 %v2983, %v2997
        %v3007 = vadd.f32 %v2984, %v2997
        %v3008 = vadd.f32 %v2985, %v2997
        %v3009 = vadd.f32 %v2986, %v2997
        %v3010 = vadd.f32 %v2987, %v2997
        %v3011 = vadd.f32 %v2988, %v2997
        %v3012 = vadd.f32 %v2989, %v2997
        %v3013 = vadd.f32 %v2990, %v2997
        %v3014 = vadd.f32 %v2991, %v2997
        %vm3015 = vcmask 261120
        %v3016 = vsel %vm3015, %v2999, 0.0
        %3017 = vadd.xlane.f32.xlu0 %v3016
        %v3018 = vpop.xlane.xlu0 %3017
        %v3019 = vsel %vm3015, %v3000, 0.0
        %3020 = vadd.xlane.f32.xlu0 %v3019
        %v3021 = vpop.xlane.xlu0 %3020
        %v3022 = vsel %vm3015, %v3001, 0.0
        %3023 = vadd.xlane.f32.xlu0 %v3022
        %v3024 = vpop.xlane.xlu0 %3023
        %v3025 = vsel %vm3015, %v3002, 0.0
        %3026 = vadd.xlane.f32.xlu0 %v3025
        %v3027 = vpop.xlane.xlu0 %3026
        %v3028 = vsel %vm3015, %v3003, 0.0
        %3029 = vadd.xlane.f32.xlu0 %v3028
        %v3030 = vpop.xlane.xlu0 %3029
        %v3031 = vsel %vm3015, %v3004, 0.0
        %3032 = vadd.xlane.f32.xlu0 %v3031
        %v3033 = vpop.xlane.xlu0 %3032
        %v3034 = vsel %vm3015, %v3005, 0.0
        %3035 = vadd.xlane.f32.xlu0 %v3034
        %v3036 = vpop.xlane.xlu0 %3035
        %v3037 = vsel %vm3015, %v3006, 0.0
        %3038 = vadd.xlane.f32.xlu0 %v3037
        %v3039 = vpop.xlane.xlu0 %3038
        %v3040 = vsel %vm3015, %v3007, 0.0
        %3041 = vadd.xlane.f32.xlu0 %v3040
        %v3042 = vpop.xlane.xlu0 %3041
        %v3043 = vsel %vm3015, %v3008, 0.0
        %3044 = vadd.xlane.f32.xlu0 %v3043
        %v3045 = vpop.xlane.xlu0 %3044
        %v3046 = vsel %vm3015, %v3009, 0.0
        %3047 = vadd.xlane.f32.xlu0 %v3046
        %v3048 = vpop.xlane.xlu0 %3047
        %v3049 = vsel %vm3015, %v3010, 0.0
        %3050 = vadd.xlane.f32.xlu0 %v3049
        %v3051 = vpop.xlane.xlu0 %3050
        %v3052 = vsel %vm3015, %v3011, 0.0
        %3053 = vadd.xlane.f32.xlu0 %v3052
        %v3054 = vpop.xlane.xlu0 %3053
        %v3055 = vsel %vm3015, %v3012, 0.0
        %3056 = vadd.xlane.f32.xlu0 %v3055
        %v3057 = vpop.xlane.xlu0 %3056
        %v3058 = vsel %vm3015, %v3013, 0.0
        %3059 = vadd.xlane.f32.xlu0 %v3058
        %v3060 = vpop.xlane.xlu0 %3059
        %v3061 = vsel %vm3015, %v3014, 0.0
        %3062 = vadd.xlane.f32.xlu0 %v3061
        %v3063 = vpop.xlane.xlu0 %3062
        %v3064 = vrcp.pop 32.0
        %v3065 = vmul.f32 %v3018, %v3064
        %v3066 = vmul.f32 %v3021, %v3064
        %v3067 = vmul.f32 %v3024, %v3064
        %v3068 = vmul.f32 %v3027, %v3064
        %v3069 = vmul.f32 %v3030, %v3064
        %v3070 = vmul.f32 %v3033, %v3064
        %v3071 = vmul.f32 %v3036, %v3064
        %v3072 = vmul.f32 %v3039, %v3064
        %v3073 = vmul.f32 %v3042, %v3064
        %v3074 = vmul.f32 %v3045, %v3064
        %v3075 = vmul.f32 %v3048, %v3064
        %v3076 = vmul.f32 %v3051, %v3064
        %v3077 = vmul.f32 %v3054, %v3064
        %v3078 = vmul.f32 %v3057, %v3064
        %v3079 = vmul.f32 %v3060, %v3064
        %v3080 = vmul.f32 %v3063, %v3064
        %v3081 = vsub.f32 %v2999, %v3065
        %v3082 = vsub.f32 %v3000, %v3066
        %v3083 = vsub.f32 %v3001, %v3067
        %v3084 = vsub.f32 %v3002, %v3068
        %v3085 = vsub.f32 %v3003, %v3069
        %v3086 = vsub.f32 %v3004, %v3070
        %v3087 = vsub.f32 %v3005, %v3071
        %v3088 = vsub.f32 %v3006, %v3072
        %v3089 = vsub.f32 %v3007, %v3073
        %v3090 = vsub.f32 %v3008, %v3074
        %v3091 = vsub.f32 %v3009, %v3075
        %v3092 = vsub.f32 %v3010, %v3076
        %v3093 = vsub.f32 %v3011, %v3077
        %v3094 = vsub.f32 %v3012, %v3078
        %v3095 = vsub.f32 %v3013, %v3079
        %v3096 = vsub.f32 %v3014, %v3080
        %v3097 = vmul.f32 %v3081, %v3081
        %v3098 = vmul.f32 %v3082, %v3082
        %v3099 = vmul.f32 %v3083, %v3083
        %v3100 = vmul.f32 %v3084, %v3084
        %v3101 = vmul.f32 %v3085, %v3085
        %v3102 = vmul.f32 %v3086, %v3086
        %v3103 = vmul.f32 %v3087, %v3087
        %v3104 = vmul.f32 %v3088, %v3088
        %v3105 = vmul.f32 %v3089, %v3089
        %v3106 = vmul.f32 %v3090, %v3090
        %v3107 = vmul.f32 %v3091, %v3091
        %v3108 = vmul.f32 %v3092, %v3092
        %v3109 = vmul.f32 %v3093, %v3093
        %v3110 = vmul.f32 %v3094, %v3094
        %v3111 = vmul.f32 %v3095, %v3095
        %v3112 = vmul.f32 %v3096, %v3096
        %v3113 = vsel %vm3015, %v3097, 0.0
        %3114 = vadd.xlane.f32.xlu0 %v3113
        %v3115 = vpop.xlane.xlu0 %3114
        %v3116 = vsel %vm3015, %v3098, 0.0
        %3117 = vadd.xlane.f32.xlu0 %v3116
        %v3118 = vpop.xlane.xlu0 %3117
        %v3119 = vsel %vm3015, %v3099, 0.0
        %3120 = vadd.xlane.f32.xlu0 %v3119
        %v3121 = vpop.xlane.xlu0 %3120
        %v3122 = vsel %vm3015, %v3100, 0.0
        %3123 = vadd.xlane.f32.xlu0 %v3122
        %v3124 = vpop.xlane.xlu0 %3123
        %v3125 = vsel %vm3015, %v3101, 0.0
        %3126 = vadd.xlane.f32.xlu0 %v3125
        %v3127 = vpop.xlane.xlu0 %3126
        %v3128 = vsel %vm3015, %v3102, 0.0
        %3129 = vadd.xlane.f32.xlu0 %v3128
        %v3130 = vpop.xlane.xlu0 %3129
        %v3131 = vsel %vm3015, %v3103, 0.0
        %3132 = vadd.xlane.f32.xlu0 %v3131
        %v3133 = vpop.xlane.xlu0 %3132
        %v3134 = vsel %vm3015, %v3104, 0.0
        %3135 = vadd.xlane.f32.xlu0 %v3134
        %v3136 = vpop.xlane.xlu0 %3135
        %v3137 = vsel %vm3015, %v3105, 0.0
        %3138 = vadd.xlane.f32.xlu0 %v3137
        %v3139 = vpop.xlane.xlu0 %3138
        %v3140 = vsel %vm3015, %v3106, 0.0
        %3141 = vadd.xlane.f32.xlu0 %v3140
        %v3142 = vpop.xlane.xlu0 %3141
        %v3143 = vsel %vm3015, %v3107, 0.0
        %3144 = vadd.xlane.f32.xlu0 %v3143
        %v3145 = vpop.xlane.xlu0 %3144
        %v3146 = vsel %vm3015, %v3108, 0.0
        %3147 = vadd.xlane.f32.xlu0 %v3146
        %v3148 = vpop.xlane.xlu0 %3147
        %v3149 = vsel %vm3015, %v3109, 0.0
        %3150 = vadd.xlane.f32.xlu0 %v3149
        %v3151 = vpop.xlane.xlu0 %3150
        %v3152 = vsel %vm3015, %v3110, 0.0
        %3153 = vadd.xlane.f32.xlu0 %v3152
        %v3154 = vpop.xlane.xlu0 %3153
        %v3155 = vsel %vm3015, %v3111, 0.0
        %3156 = vadd.xlane.f32.xlu0 %v3155
        %v3157 = vpop.xlane.xlu0 %3156
        %v3158 = vsel %vm3015, %v3112, 0.0
        %3159 = vadd.xlane.f32.xlu0 %v3158
        %v3160 = vpop.xlane.xlu0 %3159
        %v3161 = vmul.f32 %v3115, %v3064
        %v3162 = vmul.f32 %v3118, %v3064
        %v3163 = vmul.f32 %v3121, %v3064
        %v3164 = vmul.f32 %v3124, %v3064
        %v3165 = vmul.f32 %v3127, %v3064
        %v3166 = vmul.f32 %v3130, %v3064
        %v3167 = vmul.f32 %v3133, %v3064
        %v3168 = vmul.f32 %v3136, %v3064
        %v3169 = vmul.f32 %v3139, %v3064
        %v3170 = vmul.f32 %v3142, %v3064
        %v3171 = vmul.f32 %v3145, %v3064
        %v3172 = vmul.f32 %v3148, %v3064
        %v3173 = vmul.f32 %v3151, %v3064
        %v3174 = vmul.f32 %v3154, %v3064
        %v3175 = vmul.f32 %v3157, %v3064
        %v3176 = vmul.f32 %v3160, %v3064
        %v3177 = vadd.f32 %v3161, 1e-06
        %v3178 = vadd.f32 %v3162, 1e-06
        %v3179 = vadd.f32 %v3163, 1e-06
        %v3180 = vadd.f32 %v3164, 1e-06
        %v3181 = vadd.f32 %v3165, 1e-06
        %v3182 = vadd.f32 %v3166, 1e-06
        %v3183 = vadd.f32 %v3167, 1e-06
        %v3184 = vadd.f32 %v3168, 1e-06
        %v3185 = vadd.f32 %v3169, 1e-06
        %v3186 = vadd.f32 %v3170, 1e-06
        %v3187 = vadd.f32 %v3171, 1e-06
        %v3188 = vadd.f32 %v3172, 1e-06
        %v3189 = vadd.f32 %v3173, 1e-06
        %v3190 = vadd.f32 %v3174, 1e-06
        %v3191 = vadd.f32 %v3175, 1e-06
        %v3192 = vadd.f32 %v3176, 1e-06
        %v3193 = vrsqrt.pop %v3177
        %v3194 = vrsqrt.pop %v3178
        %v3195 = vrsqrt.pop %v3179
        %v3196 = vrsqrt.pop %v3180
        %v3197 = vrsqrt.pop %v3181
        %v3198 = vrsqrt.pop %v3182
        %v3199 = vrsqrt.pop %v3183
        %v3200 = vrsqrt.pop %v3184
        %v3201 = vrsqrt.pop %v3185
        %v3202 = vrsqrt.pop %v3186
        %v3203 = vrsqrt.pop %v3187
        %v3204 = vrsqrt.pop %v3188
        %v3205 = vrsqrt.pop %v3189
        %v3206 = vrsqrt.pop %v3190
        %v3207 = vrsqrt.pop %v3191
        %v3208 = vrsqrt.pop %v3192
        %v3209 = vmul.f32 %v3081, %v3193
        %v3210 = vmul.f32 %v3082, %v3194
        %v3211 = vmul.f32 %v3083, %v3195
        %v3212 = vmul.f32 %v3084, %v3196
        %v3213 = vmul.f32 %v3085, %v3197
        %v3214 = vmul.f32 %v3086, %v3198
        %v3215 = vmul.f32 %v3087, %v3199
        %v3216 = vmul.f32 %v3088, %v3200
        %v3217 = vmul.f32 %v3089, %v3201
        %v3218 = vmul.f32 %v3090, %v3202
        %v3219 = vmul.f32 %v3091, %v3203
        %v3220 = vmul.f32 %v3092, %v3204
        %v3221 = vmul.f32 %v3093, %v3205
        %v3222 = vmul.f32 %v3094, %v3206
        %v3223 = vmul.f32 %v3095, %v3207
        %v3224 = vmul.f32 %v3096, %v3208
        %v3225 = vld [vmem:[%s3] sm:$0x1]
        %v3227 = vlaneseq
        %v3228 = vshrl.u32 %v3227, 7
        %v3229 = vsub.s32 0, %v3228
        %v3230 = vrot.slane %v3225, %v3229
        %v3232 = vmul.f32 %v3209, %v3230
        %v3233 = vmul.f32 %v3210, %v3230
        %v3234 = vmul.f32 %v3211, %v3230
        %v3235 = vmul.f32 %v3212, %v3230
        %v3236 = vmul.f32 %v3213, %v3230
        %v3237 = vmul.f32 %v3214, %v3230
        %v3238 = vmul.f32 %v3215, %v3230
        %v3239 = vmul.f32 %v3216, %v3230
        %v3240 = vmul.f32 %v3217, %v3230
        %v3241 = vmul.f32 %v3218, %v3230
        %v3242 = vmul.f32 %v3219, %v3230
        %v3243 = vmul.f32 %v3220, %v3230
        %v3244 = vmul.f32 %v3221, %v3230
        %v3245 = vmul.f32 %v3222, %v3230
        %v3246 = vmul.f32 %v3223, %v3230
        %v3247 = vmul.f32 %v3224, %v3230
        %v3248 = vld [vmem:[%s4] sm:$0x1]
        %v3250 = vlaneseq
        %v3251 = vshrl.u32 %v3250, 7
        %v3252 = vsub.s32 0, %v3251
        %v3253 = vrot.slane %v3248, %v3252
        %v3255 = vadd.f32 %v3232, %v3253
        %v3256 = vadd.f32 %v3233, %v3253
        %v3257 = vadd.f32 %v3234, %v3253
        %v3258 = vadd.f32 %v3235, %v3253
        %v3259 = vadd.f32 %v3236, %v3253
        %v3260 = vadd.f32 %v3237, %v3253
        %v3261 = vadd.f32 %v3238, %v3253
        %v3262 = vadd.f32 %v3239, %v3253
        %v3263 = vadd.f32 %v3240, %v3253
        %v3264 = vadd.f32 %v3241, %v3253
        %v3265 = vadd.f32 %v3242, %v3253
        %v3266 = vadd.f32 %v3243, %v3253
        %v3267 = vadd.f32 %v3244, %v3253
        %v3268 = vadd.f32 %v3245, %v3253
        %v3269 = vadd.f32 %v3246, %v3253
        %v3270 = vadd.f32 %v3247, %v3253
        %v3271 = vpack.c.bf16 %v3256, %v3255
        %v3272 = vpack.c.bf16 %v3258, %v3257
        %v3273 = vpack.c.bf16 %v3260, %v3259
        %v3274 = vpack.c.bf16 %v3262, %v3261
        %v3275 = vpack.c.bf16 %v3264, %v3263
        %v3276 = vpack.c.bf16 %v3266, %v3265
        %v3277 = vpack.c.bf16 %v3268, %v3267
        %v3278 = vpack.c.bf16 %v3270, %v3269
        %v3279 = vld [vmem:[%s5] sm:$0xf]
        %v3280 = vld [vmem:[%s5 + $0x4] sm:$0xf]
        %v3281 = vld [vmem:[%s5 + $0x8] sm:$0xf]
        %v3282 = vld [vmem:[%s5 + $0xc] sm:$0xf]
        %v3283 = vld [vmem:[%s6] sm:$0x1]
        %v3285 = vlaneseq
        %v3286 = vshrl.u32 %v3285, 7
        %v3287 = vsub.s32 0, %v3286
        %v3288 = vrot.slane %v3283, %v3287
        %v3294 = vunpack.c.l.b16 %v3279
        %v3295 = vunpack.c.l.b16 %v3280
        %v3296 = vunpack.c.l.b16 %v3281
        %v3297 = vunpack.c.l.b16 %v3282
        %v3298 = vpack.c.b16 %v3295, %v3294
        %v3299 = vpack.c.b16 %v3297, %v3296
        %v3303 = vsel %vm3015, %v3271, 0
        %v3306 = vsel %vm3015, %v3272, 0
        %v3309 = vsel %vm3015, %v3273, 0
        %v3312 = vsel %vm3015, %v3274, 0
        %v3315 = vsel %vm3015, %v3275, 0
        %v3318 = vsel %vm3015, %v3276, 0
        %v3321 = vsel %vm3015, %v3277, 0
        %v3324 = vsel %vm3015, %v3278, 0
        %3326 = vmatprep.subr.bf16.mxu0 0
        %3327 = vmatpush1.bf16.msra.mxu0 0
        %3328 = vmatprep.subr.bf16.mxu0 0
        %3329 = vmatpush1.bf16.msra.mxu0 0
        %3330 = vmatprep.subr.bf16.mxu0 0
        %3331 = vmatpush1.bf16.msra.mxu0 0
        %3332 = vmatprep.subr.bf16.mxu0 0
        %3333 = vmatpush1.bf16.msra.mxu0 0
        %3334 = vmatprep.subr.bf16.mxu0 0
        %3335 = vmatpush1.bf16.msra.mxu0 0
        %3336 = vmatprep.subr.bf16.mxu0 0
        %3337 = vmatpush1.bf16.msra.mxu0 0
        %3338 = vmatprep.subr.bf16.mxu0 0
        %3339 = vmatpush1.bf16.msra.mxu0 %v3299
        %3340 = vmatprep.subr.bf16.mxu0 0
        %3341 = vmatpush1.bf16.msra.mxu0 %v3298
        %3342 = vmatprep.subr.bf16.mxu0 0
        %3343 = vmatpush2.bf16.msra.mxu0 0
        %3344 = vmatprep.subr.bf16.mxu0 0
        %3345 = vmatpush2.bf16.msra.mxu0 0
        %3346 = vmatprep.subr.bf16.mxu0 0
        %3347 = vmatpush2.bf16.msra.mxu0 0
        %3348 = vmatprep.subr.bf16.mxu0 0
        %3349 = vmatpush2.bf16.msra.mxu0 0
        %3350 = vmatprep.subr.bf16.mxu0 0
        %3351 = vmatpush2.bf16.msra.mxu0 0
        %3352 = vmatprep.subr.bf16.mxu0 0
        %3353 = vmatpush2.bf16.msra.mxu0 0
        %3354 = vmatprep.subr.bf16.mxu0 0
        %3355 = vmatpush2.bf16.msra.mxu0 0
        %3356 = vmatprep.subr.bf16.mxu0 0
        %3357 = vmatpush2.bf16.msra.mxu0 0
        %3358 = vmatprep.mubr.bf16.mxu0 0
        %3359 = vmatmul.mubr.bf16.gmra.mxu0 %v3303
        %v3360 = vpop.f32.mrf.mxu0
        %v3361 = vadd.f32 %v3288, %v3360
        %v3362 = vpop.f32.mrf.mxu0
        %v3363 = vpop.f32.mrf.mxu0
        %v3364 = vadd.f32 %v3288, %v3363
        %v3365 = vpop.f32.mrf.mxu0
        %3366 = vmatprep.mubr.bf16.mxu0 0
        %3367 = vmatmul.mubr.bf16.gmra.mxu0 %v3306
        %v3368 = vpop.f32.mrf.mxu0
        %v3369 = vadd.f32 %v3288, %v3368
        %v3370 = vpop.f32.mrf.mxu0
        %v3371 = vpop.f32.mrf.mxu0
        %v3372 = vadd.f32 %v3288, %v3371
        %v3373 = vpop.f32.mrf.mxu0
        %3374 = vmatprep.mubr.bf16.mxu0 0
        %3375 = vmatmul.mubr.bf16.gmra.mxu0 %v3309
        %v3376 = vpop.f32.mrf.mxu0
        %v3377 = vadd.f32 %v3288, %v3376
        %v3378 = vpop.f32.mrf.mxu0
        %v3379 = vpop.f32.mrf.mxu0
        %v3380 = vadd.f32 %v3288, %v3379
        %v3381 = vpop.f32.mrf.mxu0
        %3382 = vmatprep.mubr.bf16.mxu0 0
        %3383 = vmatmul.mubr.bf16.gmra.mxu0 %v3312
        %v3384 = vpop.f32.mrf.mxu0
        %v3385 = vadd.f32 %v3288, %v3384
        %v3386 = vpop.f32.mrf.mxu0
        %v3387 = vpop.f32.mrf.mxu0
        %v3388 = vadd.f32 %v3288, %v3387
        %v3389 = vpop.f32.mrf.mxu0
        %3390 = vmatprep.mubr.bf16.mxu0 0
        %3391 = vmatmul.mubr.bf16.gmra.mxu0 %v3315
        %v3392 = vpop.f32.mrf.mxu0
        %v3393 = vadd.f32 %v3288, %v3392
        %v3394 = vpop.f32.mrf.mxu0
        %v3395 = vpop.f32.mrf.mxu0
        %v3396 = vadd.f32 %v3288, %v3395
        %v3397 = vpop.f32.mrf.mxu0
        %3398 = vmatprep.mubr.bf16.mxu0 0
        %3399 = vmatmul.mubr.bf16.gmra.mxu0 %v3318
        %v3400 = vpop.f32.mrf.mxu0
        %v3401 = vadd.f32 %v3288, %v3400
        %v3402 = vpop.f32.mrf.mxu0
        %v3403 = vpop.f32.mrf.mxu0
        %v3404 = vadd.f32 %v3288, %v3403
        %v3405 = vpop.f32.mrf.mxu0
        %3406 = vmatprep.mubr.bf16.mxu0 0
        %3407 = vmatmul.mubr.bf16.gmra.mxu0 %v3321
        %v3408 = vpop.f32.mrf.mxu0
        %v3409 = vadd.f32 %v3288, %v3408
        %v3410 = vpop.f32.mrf.mxu0
        %v3411 = vpop.f32.mrf.mxu0
        %v3412 = vadd.f32 %v3288, %v3411
        %v3413 = vpop.f32.mrf.mxu0
        %3414 = vmatprep.mubr.bf16.mxu0 0
        %3415 = vmatmul.mubr.bf16.gmra.mxu0 %v3324
        %v3416 = vpop.f32.mrf.mxu0
        %v3417 = vadd.f32 %v3288, %v3416
        %v3418 = vpop.f32.mrf.mxu0
        %v3419 = vpop.f32.mrf.mxu0
        %v3420 = vadd.f32 %v3288, %v3419
        %v3421 = vpop.f32.mrf.mxu0
        %3422 = vdwg.mxu0
        %v3423 = vmul.f32 %v3361, 0.5
        %v3424 = vmul.f32 %v3364, 0.5
        %v3425 = vmul.f32 %v3369, 0.5
        %v3426 = vmul.f32 %v3372, 0.5
        %v3427 = vmul.f32 %v3377, 0.5
        %v3428 = vmul.f32 %v3380, 0.5
        %v3429 = vmul.f32 %v3385, 0.5
        %v3430 = vmul.f32 %v3388, 0.5
        %v3431 = vmul.f32 %v3393, 0.5
        %v3432 = vmul.f32 %v3396, 0.5
        %v3433 = vmul.f32 %v3401, 0.5
        %v3434 = vmul.f32 %v3404, 0.5
        %v3435 = vmul.f32 %v3409, 0.5
        %v3436 = vmul.f32 %v3412, 0.5
        %v3437 = vmul.f32 %v3417, 0.5
        %v3438 = vmul.f32 %v3420, 0.5
        %v3439 = vmul.f32 %v3361, 0.70710677
        %v3440 = vmul.f32 %v3364, 0.70710677
        %v3441 = vmul.f32 %v3369, 0.70710677
        %v3442 = vmul.f32 %v3372, 0.70710677
        %v3443 = vmul.f32 %v3377, 0.70710677
        %v3444 = vmul.f32 %v3380, 0.70710677
        %v3445 = vmul.f32 %v3385, 0.70710677
        %v3446 = vmul.f32 %v3388, 0.70710677
        %v3447 = vmul.f32 %v3393, 0.70710677
        %v3448 = vmul.f32 %v3396, 0.70710677
        %v3449 = vmul.f32 %v3401, 0.70710677
        %v3450 = vmul.f32 %v3404, 0.70710677
        %v3451 = vmul.f32 %v3409, 0.70710677
        %v3452 = vmul.f32 %v3412, 0.70710677
        %v3453 = vmul.f32 %v3417, 0.70710677
        %v3454 = vmul.f32 %v3420, 0.70710677
        %v3455 = verf.f32.pop %v3439
        %v3456 = verf.f32.pop %v3440
        %v3457 = verf.f32.pop %v3441
        %v3458 = verf.f32.pop %v3442
        %v3459 = verf.f32.pop %v3443
        %v3460 = verf.f32.pop %v3444
        %v3461 = verf.f32.pop %v3445
        %v3462 = verf.f32.pop %v3446
        %v3463 = verf.f32.pop %v3447
        %v3464 = verf.f32.pop %v3448
        %v3465 = verf.f32.pop %v3449
        %v3466 = verf.f32.pop %v3450
        %v3467 = verf.f32.pop %v3451
        %v3468 = verf.f32.pop %v3452
        %v3469 = verf.f32.pop %v3453
        %v3470 = verf.f32.pop %v3454
        %v3471 = vadd.f32 %v3455, 1.0
        %v3472 = vadd.f32 %v3456, 1.0
        %v3473 = vadd.f32 %v3457, 1.0
        %v3474 = vadd.f32 %v3458, 1.0
        %v3475 = vadd.f32 %v3459, 1.0
        %v3476 = vadd.f32 %v3460, 1.0
        %v3477 = vadd.f32 %v3461, 1.0
        %v3478 = vadd.f32 %v3462, 1.0
        %v3479 = vadd.f32 %v3463, 1.0
        %v3480 = vadd.f32 %v3464, 1.0
        %v3481 = vadd.f32 %v3465, 1.0
        %v3482 = vadd.f32 %v3466, 1.0
        %v3483 = vadd.f32 %v3467, 1.0
        %v3484 = vadd.f32 %v3468, 1.0
        %v3485 = vadd.f32 %v3469, 1.0
        %v3486 = vadd.f32 %v3470, 1.0
        %v3487 = vmul.f32 %v3423, %v3471
        %v3488 = vmul.f32 %v3424, %v3472
        %v3489 = vmul.f32 %v3425, %v3473
        %v3490 = vmul.f32 %v3426, %v3474
        %v3491 = vmul.f32 %v3427, %v3475
        %v3492 = vmul.f32 %v3428, %v3476
        %v3493 = vmul.f32 %v3429, %v3477
        %v3494 = vmul.f32 %v3430, %v3478
        %v3495 = vmul.f32 %v3431, %v3479
        %v3496 = vmul.f32 %v3432, %v3480
        %v3497 = vmul.f32 %v3433, %v3481
        %v3498 = vmul.f32 %v3434, %v3482
        %v3499 = vmul.f32 %v3435, %v3483
        %v3500 = vmul.f32 %v3436, %v3484
        %v3501 = vmul.f32 %v3437, %v3485
        %v3502 = vmul.f32 %v3438, %v3486
        %v3503 = vpack.c.bf16 %v3488, %v3487
        %v3504 = vpack.c.bf16 %v3490, %v3489
        %v3505 = vpack.c.bf16 %v3492, %v3491
        %v3506 = vpack.c.bf16 %v3494, %v3493
        %v3507 = vpack.c.bf16 %v3496, %v3495
        %v3508 = vpack.c.bf16 %v3498, %v3497
        %v3509 = vpack.c.bf16 %v3500, %v3499
        %v3510 = vpack.c.bf16 %v3502, %v3501
        %v3511 = vld [vmem:[%s7] sm:$0xf]
        %v3512 = vld [vmem:[%s7 + $0x4] sm:$0xf]
        %v3513 = vld [vmem:[%s7 + $0x8] sm:$0xf]
        %v3514 = vld [vmem:[%s7 + $0xc] sm:$0xf]
        %v3515 = vld [vmem:[%s7 + $0x10] sm:$0xf]
        %v3516 = vld [vmem:[%s7 + $0x14] sm:$0xf]
        %v3517 = vld [vmem:[%s7 + $0x18] sm:$0xf]
        %v3518 = vld [vmem:[%s7 + $0x1c] sm:$0xf]
        %v3519 = vld [vmem:[%s7 + $0x20] sm:$0xf]
        %v3520 = vld [vmem:[%s7 + $0x24] sm:$0xf]
        %v3521 = vld [vmem:[%s7 + $0x28] sm:$0xf]
        %v3522 = vld [vmem:[%s7 + $0x2c] sm:$0xf]
        %v3523 = vld [vmem:[%s7 + $0x30] sm:$0xf]
        %v3524 = vld [vmem:[%s7 + $0x34] sm:$0xf]
        %v3525 = vld [vmem:[%s7 + $0x38] sm:$0xf]
        %v3526 = vld [vmem:[%s7 + $0x3c] sm:$0xf]
        %v3527 = vld [vmem:[%s8] sm:$0x1]
        %v3529 = vlaneseq
        %v3530 = vshrl.u32 %v3529, 7
        %v3531 = vsub.s32 0, %v3530
        %v3532 = vrot.slane %v3527, %v3531
        %v3550 = vunpack.c.l.b16 %v3511
        %v3551 = vunpack.c.l.b16 %v3512
        %v3552 = vunpack.c.l.b16 %v3513
        %v3553 = vunpack.c.l.b16 %v3514
        %v3554 = vunpack.c.l.b16 %v3515
        %v3555 = vunpack.c.l.b16 %v3516
        %v3556 = vunpack.c.l.b16 %v3517
        %v3557 = vunpack.c.l.b16 %v3518
        %v3558 = vunpack.c.l.b16 %v3519
        %v3559 = vunpack.c.l.b16 %v3520
        %v3560 = vunpack.c.l.b16 %v3521
        %v3561 = vunpack.c.l.b16 %v3522
        %v3562 = vunpack.c.l.b16 %v3523
        %v3563 = vunpack.c.l.b16 %v3524
        %v3564 = vunpack.c.l.b16 %v3525
        %v3565 = vunpack.c.l.b16 %v3526
        %v3566 = vpack.c.b16 %v3551, %v3550
        %v3567 = vpack.c.b16 %v3553, %v3552
        %v3568 = vpack.c.b16 %v3555, %v3554
        %v3569 = vpack.c.b16 %v3557, %v3556
        %v3570 = vpack.c.b16 %v3559, %v3558
        %v3571 = vpack.c.b16 %v3561, %v3560
        %v3572 = vpack.c.b16 %v3563, %v3562
        %v3573 = vpack.c.b16 %v3565, %v3564
        %3582 = vmatprep.subr.bf16.mxu0 0
        %3583 = vmatpush1.bf16.msra.mxu0 %v3573
        %3584 = vmatprep.subr.bf16.mxu0 0
        %3585 = vmatpush1.bf16.msra.mxu0 %v3572
        %3586 = vmatprep.subr.bf16.mxu0 0
        %3587 = vmatpush1.bf16.msra.mxu0 %v3571
        %3588 = vmatprep.subr.bf16.mxu0 0
        %3589 = vmatpush1.bf16.msra.mxu0 %v3570
        %3590 = vmatprep.subr.bf16.mxu0 0
        %3591 = vmatpush1.bf16.msra.mxu0 %v3569
        %3592 = vmatprep.subr.bf16.mxu0 0
        %3593 = vmatpush1.bf16.msra.mxu0 %v3568
        %3594 = vmatprep.subr.bf16.mxu0 0
        %3595 = vmatpush1.bf16.msra.mxu0 %v3567
        %3596 = vmatprep.subr.bf16.mxu0 0
        %3597 = vmatpush1.bf16.msra.mxu0 %v3566
        %3598 = vmatprep.subr.bf16.mxu0 0
        %3599 = vmatpush2.bf16.msra.mxu0 0
        %3600 = vmatprep.subr.bf16.mxu0 0
        %3601 = vmatpush2.bf16.msra.mxu0 0
        %3602 = vmatprep.subr.bf16.mxu0 0
        %3603 = vmatpush2.bf16.msra.mxu0 0
        %3604 = vmatprep.subr.bf16.mxu0 0
        %3605 = vmatpush2.bf16.msra.mxu0 0
        %3606 = vmatprep.subr.bf16.mxu0 0
        %3607 = vmatpush2.bf16.msra.mxu0 0
        %3608 = vmatprep.subr.bf16.mxu0 0
        %3609 = vmatpush2.bf16.msra.mxu0 0
        %3610 = vmatprep.subr.bf16.mxu0 0
        %3611 = vmatpush2.bf16.msra.mxu0 0
        %3612 = vmatprep.subr.bf16.mxu0 0
        %3613 = vmatpush2.bf16.msra.mxu0 0
        %3614 = vmatprep.mubr.bf16.mxu0 0
        %3615 = vmatmul.mubr.bf16.gmra.mxu0 %v3503
        %v3616 = vpop.f32.mrf.mxu0
        %v3617 = vadd.f32 %v3532, %v3616
        %v3618 = vpop.f32.mrf.mxu0
        %v3619 = vpop.f32.mrf.mxu0
        %v3620 = vadd.f32 %v3532, %v3619
        %v3621 = vpop.f32.mrf.mxu0
        %3622 = vmatprep.mubr.bf16.mxu0 0
        %3623 = vmatmul.mubr.bf16.gmra.mxu0 %v3504
        %v3624 = vpop.f32.mrf.mxu0
        %v3625 = vadd.f32 %v3532, %v3624
        %v3626 = vpop.f32.mrf.mxu0
        %v3627 = vpop.f32.mrf.mxu0
        %v3628 = vadd.f32 %v3532, %v3627
        %v3629 = vpop.f32.mrf.mxu0
        %3630 = vmatprep.mubr.bf16.mxu0 0
        %3631 = vmatmul.mubr.bf16.gmra.mxu0 %v3505
        %v3632 = vpop.f32.mrf.mxu0
        %v3633 = vadd.f32 %v3532, %v3632
        %v3634 = vpop.f32.mrf.mxu0
        %v3635 = vpop.f32.mrf.mxu0
        %v3636 = vadd.f32 %v3532, %v3635
        %v3637 = vpop.f32.mrf.mxu0
        %3638 = vmatprep.mubr.bf16.mxu0 0
        %3639 = vmatmul.mubr.bf16.gmra.mxu0 %v3506
        %v3640 = vpop.f32.mrf.mxu0
        %v3641 = vadd.f32 %v3532, %v3640
        %v3642 = vpop.f32.mrf.mxu0
        %v3643 = vpop.f32.mrf.mxu0
        %v3644 = vadd.f32 %v3532, %v3643
        %v3645 = vpop.f32.mrf.mxu0
        %3646 = vmatprep.mubr.bf16.mxu0 0
        %3647 = vmatmul.mubr.bf16.gmra.mxu0 %v3507
        %v3648 = vpop.f32.mrf.mxu0
        %v3649 = vadd.f32 %v3532, %v3648
        %v3650 = vpop.f32.mrf.mxu0
        %v3651 = vpop.f32.mrf.mxu0
        %v3652 = vadd.f32 %v3532, %v3651
        %v3653 = vpop.f32.mrf.mxu0
        %3654 = vmatprep.mubr.bf16.mxu0 0
        %3655 = vmatmul.mubr.bf16.gmra.mxu0 %v3508
        %v3656 = vpop.f32.mrf.mxu0
        %v3657 = vadd.f32 %v3532, %v3656
        %v3658 = vpop.f32.mrf.mxu0
        %v3659 = vpop.f32.mrf.mxu0
        %v3660 = vadd.f32 %v3532, %v3659
        %v3661 = vpop.f32.mrf.mxu0
        %3662 = vmatprep.mubr.bf16.mxu0 0
        %3663 = vmatmul.mubr.bf16.gmra.mxu0 %v3509
        %v3664 = vpop.f32.mrf.mxu0
        %v3665 = vadd.f32 %v3532, %v3664
        %v3666 = vpop.f32.mrf.mxu0
        %v3667 = vpop.f32.mrf.mxu0
        %v3668 = vadd.f32 %v3532, %v3667
        %v3669 = vpop.f32.mrf.mxu0
        %3670 = vmatprep.mubr.bf16.mxu0 0
        %3671 = vmatmul.mubr.bf16.gmra.mxu0 %v3510
        %v3672 = vpop.f32.mrf.mxu0
        %v3673 = vadd.f32 %v3532, %v3672
        %v3674 = vpop.f32.mrf.mxu0
        %v3675 = vpop.f32.mrf.mxu0
        %v3676 = vadd.f32 %v3532, %v3675
        %v3677 = vpop.f32.mrf.mxu0
        %3678 = vdwg.mxu0
        %v3679 = vld [vmem:[%s9] sm:$0x1]
        %v3681 = vlaneseq
        %v3682 = vshrl.u32 %v3681, 7
        %v3683 = vsub.s32 0, %v3682
        %v3684 = vrot.slane %v3679, %v3683
        %v3686 = vmul.f32 %v3617, %v3684
        %v3687 = vmul.f32 %v3620, %v3684
        %v3688 = vmul.f32 %v3625, %v3684
        %v3689 = vmul.f32 %v3628, %v3684
        %v3690 = vmul.f32 %v3633, %v3684
        %v3691 = vmul.f32 %v3636, %v3684
        %v3692 = vmul.f32 %v3641, %v3684
        %v3693 = vmul.f32 %v3644, %v3684
        %v3694 = vmul.f32 %v3649, %v3684
        %v3695 = vmul.f32 %v3652, %v3684
        %v3696 = vmul.f32 %v3657, %v3684
        %v3697 = vmul.f32 %v3660, %v3684
        %v3698 = vmul.f32 %v3665, %v3684
        %v3699 = vmul.f32 %v3668, %v3684
        %v3700 = vmul.f32 %v3673, %v3684
        %v3701 = vmul.f32 %v3676, %v3684
        %v3702 = vadd.f32 %v1658, %v3686
        %v3703 = vadd.f32 %v1659, %v3687
        %v3704 = vadd.f32 %v1660, %v3688
        %v3705 = vadd.f32 %v1661, %v3689
        %v3706 = vadd.f32 %v1662, %v3690
        %v3707 = vadd.f32 %v1663, %v3691
        %v3708 = vadd.f32 %v1664, %v3692
        %v3709 = vadd.f32 %v1665, %v3693
        %v3710 = vadd.f32 %v1666, %v3694
        %v3711 = vadd.f32 %v1667, %v3695
        %v3712 = vadd.f32 %v1668, %v3696
        %v3713 = vadd.f32 %v1669, %v3697
        %v3714 = vadd.f32 %v1670, %v3698
        %v3715 = vadd.f32 %v1671, %v3699
        %v3716 = vadd.f32 %v1672, %v3700
        %v3717 = vadd.f32 %v1673, %v3701
        %3718 = vst.msk [vmem:[%s366] sm:$0xff] %vm3015, %v3702
        %3719 = vst.msk [vmem:[%s366 + $0x8] sm:$0xff] %vm3015, %v3703
        %3720 = vst.msk [vmem:[%s366 + $0x10] sm:$0xff] %vm3015, %v3704
        %3721 = vst.msk [vmem:[%s366 + $0x18] sm:$0xff] %vm3015, %v3705
        %3722 = vst.msk [vmem:[%s366 + $0x20] sm:$0xff] %vm3015, %v3706
        %3723 = vst.msk [vmem:[%s366 + $0x28] sm:$0xff] %vm3015, %v3707
        %3724 = vst.msk [vmem:[%s366 + $0x30] sm:$0xff] %vm3015, %v3708
        %3725 = vst.msk [vmem:[%s366 + $0x38] sm:$0xff] %vm3015, %v3709
        %3726 = vst.msk [vmem:[%s366 + $0x40] sm:$0xff] %vm3015, %v3710
        %3727 = vst.msk [vmem:[%s366 + $0x48] sm:$0xff] %vm3015, %v3711
        %3728 = vst.msk [vmem:[%s366 + $0x50] sm:$0xff] %vm3015, %v3712
        %3729 = vst.msk [vmem:[%s366 + $0x58] sm:$0xff] %vm3015, %v3713
        %3730 = vst.msk [vmem:[%s366 + $0x60] sm:$0xff] %vm3015, %v3714
        %3731 = vst.msk [vmem:[%s366 + $0x68] sm:$0xff] %vm3015, %v3715
        %3732 = vst.msk [vmem:[%s366 + $0x70] sm:$0xff] %vm3015, %v3716
        %3733 = vst.msk [vmem:[%s366 + $0x78] sm:$0xff] %vm3015, %v3717
        %s3734 = sand.u32 %s261, 1
        %s3735 = scalar_lea.sflag [#allocation3], %s3734
        %s3736 = sand.u32 %s261, 1
        %s3737 = smul.addr %s3736, 128
        %s3738 = scalar_lea.vmem [#allocation2], %s3737
        // Predicated region
        $region61: #{tpu_custom_call.1} parent=59 // pred_check
          %p3739 = pneg %p271
        $region62: #{tpu_custom_call.1} parent=59 // pred_check_branch
          %3741 = sbr.rel (%p3739) target = $region64
        $region63: #{tpu_custom_call.1} parent=59 // pred_region
          %s3742 = smul.u32 8, %s29
          %s3744 = ssub.s32 2048, 2048
          %3745 = vsyncadd %s3735, %s3744
          %s3746 = smul.addr %s3742, 2
          %s3747 = smul.addr %s28, 32
          %s3748 = sadd.s32 %s3746, %s3747
          %s3749 = smul.addr %s3748, 128
          %s3750 = scalar_lea.hbm %s10, %s3749
          %s3751 = sshll.u32 %s3738, 4
          %s3752 = int_to_ptr.vmem [resolvable:$true] %s3751
          %3757 = dma.vmem_to_hbm [thread:$0]  %s3752, 2048, %s3750, %s3735, 128, 128, 8
        $region64: #{tpu_custom_call.1} parent=59 // pred_fallthru
          _
      $region60: #{tpu_custom_call.1} parent=5 // pred_fallthru
        _
      %p3758 = scmp.le.s32.totalorder 2, %s19
      // Predicated region
      $region65: #{tpu_custom_call.1} parent=5 // pred_check
        %p3759 = pneg %p3758
      $region66: #{tpu_custom_call.1} parent=5 // pred_check_branch
        %3761 = sbr.rel (%p3759) target = $region68
      $region67: #{tpu_custom_call.1} parent=5 // pred_region
        %s3762 = ssub.s32 %s19, 2
        // Predicated region
        $region69: #{tpu_custom_call.1} parent=67 // pred_check
          %p3763 = pneg %p277
        $region70: #{tpu_custom_call.1} parent=67 // pred_check_branch
          %3765 = sbr.rel (%p3763) target = $region72
        $region71: #{tpu_custom_call.1} parent=67 // pred_region
          %s3766 = sand.u32 %s262, 1
          %s3767 = scalar_lea.sflag [#allocation3], %s3766
          %s3768 = sand.u32 %s262, 1
          %s3769 = smul.addr %s3768, 128
          %s3770 = scalar_lea.vmem [#allocation2], %s3769
          %3771 = dma.done %s3767, 2048
        $region72: #{tpu_custom_call.1} parent=67 // pred_fallthru
          _
      $region68: #{tpu_custom_call.1} parent=5 // pred_fallthru
        _
    $region6: #{tpu_custom_call.1} parent=1 // loop_footer
      %s23 = sadd.s32 1, %s19
    $region7: #{tpu_custom_call.1} parent=1 // loop_footer_branch
      %18 = sbr.rel target = $region3
    $region8: #{tpu_custom_call.1} parent=1 // loop_exit
      _
    %3772 = vsyncpa [#allocation3], 1
    %s3773 = scalar_lea.sflag [#allocation3], 1
    %3774 = vsyncpa %s3773, 1

</llo_original>
